<compile_context>
chip_gen: v5e
topology: v5e:2x2
jax: 0.10.0
libtpu: 0.0.40
codegen_flags: <defaults>
</compile_context>

<pallas_src>
import jax
import jax.numpy as jnp
from jax.experimental import pallas as pl
from jax.experimental.pallas import tpu as pltpu

# ---------------- problem sizes (small, consistent with the module) --------
B, C, H, W = 2, 4, 16, 16
D = C * H * W            # 1024 features per sample
T_STEPS = 100            # diffusion steps
NUM_CLASSES = 10
BETA = (1e-4, 0.02)


def _diffusion_loss_kernel(stacked_ref, rates_ref, w_ref, ploss_ref):
    """One batch-row tile: mix -> denoiser matmul -> squared-error partial."""
    x0 = stacked_ref[0]          # (TM, D) f32
    eps = stacked_ref[1]         # (TM, D) f32
    cond = stacked_ref[2]        # (TM, D) f32  = time_emb[t] + class_emb[c]
    sr = rates_ref[:, 0:1]       # (TM, 1) f32  signal_rate[t]
    nr = rates_ref[:, 1:2]       # (TM, 1) f32  noise_rate[t]

    # (1) forward-diffusion mix — pure f32 on the VPU.
    x_t = sr * x0 + nr * eps

    # (2) synthetic denoiser: cast only at the MXU boundary (bf16 inputs,
    #     f32 accumulation), then add the conditioning in f32.
    eps_theta = jnp.dot(x_t.astype(jnp.bfloat16), w_ref[...],
                        preferred_element_type=jnp.float32) + cond

    # (3) squared error, folded over groups of 8 sublanes into an aligned,
    #     lane-dense (8, D) partial (final sum happens outside the kernel).
    diff = eps_theta - eps
    tm = diff.shape[0]
    ploss_ref[...] = jnp.sum((diff * diff).reshape(tm // 8, 8, D), axis=0)


def diffusion_trainer_loss(x0, eps, sr_b, nr_b, w_bf16, cond_rows):
    """x0, eps: (B, C, H, W) f32.  sr_b/nr_b: (B, 1) f32.  w_bf16: (D, D) bf16.
    cond_rows: (B, D) f32 (time_emb[t] + class_emb[c]).

    Returns the scalar sum-of-squares diffusion training loss.
    """
    b = x0.shape[0]
    d = w_bf16.shape[0]
    x0f = x0.reshape(b, d).astype(jnp.float32)
    epsf = eps.reshape(b, d).astype(jnp.float32)

    # Batch-row tile size: 8 (min sublane granularity) for tiny batches,
    # 128 rows once there is enough work to amortize each MXU weight push
    # (v5e MXU is 128x128; use 256 on v6e/v7x for even fuller utilization).
    tm = 128 if b >= 128 else 8
    b_pad = ((b + tm - 1) // tm) * tm
    pad = b_pad - b
    num_tiles = b_pad // tm

    # One stacked input slab -> one data DMA per tile instead of four.
    stacked = jnp.stack([x0f, epsf, cond_rows.astype(jnp.float32)], axis=0)
    rates = jnp.concatenate([sr_b, nr_b], axis=1).astype(jnp.float32)  # (b, 2)
    if pad:
        # Zero rows (zero rates, zero eps, zero cond) contribute 0 to the loss.
        stacked = jnp.pad(stacked, ((0, 0), (0, pad), (0, 0)))
        rates = jnp.pad(rates, ((0, pad), (0, 0)))

    partial = pl.pallas_call(
        _diffusion_loss_kernel,
        out_shape=jax.ShapeDtypeStruct((num_tiles * 8, d), jnp.float32),
        grid_spec=pltpu.PrefetchScalarGridSpec(
            num_scalar_prefetch=0,
            grid=(num_tiles,),
            in_specs=[
                # stacked [x0, eps, cond]: one (3, TM, D) block per tile.
                pl.BlockSpec((3, tm, d), lambda i: (0, i, 0)),
                # per-row [signal_rate, noise_rate] scalars, merged block.
                pl.BlockSpec((tm, 2), lambda i: (i, 0)),
                # W: constant block index -> DMA'd once, resident in VMEM
                # across the whole batch grid.  (pipeline_mode=pl.Buffered(1)
                # would also drop its second buffer; left default for safety.)
                pl.BlockSpec((d, d), lambda i: (0, 0)),
            ],
            # Lane-dense, (8,128)-aligned per-tile partial losses.
            out_specs=pl.BlockSpec((8, d), lambda i: (i, 0)),
        ),
        compiler_params=pltpu.CompilerParams(
            # Batch tiles are independent: shards across both TCs on v7x.
            dimension_semantics=("parallel",),
            # W (2 MiB bf16, double-buffered) + stacked tiles: < 8 MiB even
            # at tm=128; 32 MiB leaves headroom on all of v5e/v6e/v7x.
            vmem_limit_bytes=32 * 1024 * 1024,
        ),
    )(stacked, rates, w_bf16)

    # Final scalar reduction of the partials (trivial XLA reduce).
    return jnp.sum(partial)


if __name__ == "__main__":
    key = jax.random.PRNGKey(0)
    k_x0, k_t, k_eps, k_c, k_w, k_te, k_ce = jax.random.split(key, 7)

    # ----- diffusion schedule (mirrors the __init__ buffers) ---------------
    beta_t = jnp.linspace(BETA[0], BETA[1], T_STEPS, dtype=jnp.float32)
    alpha_t = 1.0 - beta_t
    alpha_t_bar = jnp.cumprod(alpha_t, axis=0)
    signal_rate = jnp.sqrt(alpha_t_bar)               # (T,)
    noise_rate = jnp.sqrt(1.0 - alpha_t_bar)          # (T,)

    # ----- deterministic synthetic model parameters ------------------------
    w_param = (jax.random.normal(k_w, (D, D), dtype=jnp.float32)
               / jnp.sqrt(jnp.float32(D)))
    w_bf16 = w_param.astype(jnp.bfloat16)             # MXU-native weights
    time_emb = 0.1 * jax.random.normal(k_te, (T_STEPS, D), dtype=jnp.float32)
    class_emb = 0.1 * jax.random.normal(k_ce, (NUM_CLASSES, D),
                                        dtype=jnp.float32)

    # ----- forward-pass inputs (randint / randn_like of the forward) -------
    x_0 = jax.random.normal(k_x0, (B, C, H, W), dtype=jnp.float32)
    t = jax.random.randint(k_t, (B,), 0, T_STEPS)
    epsilon = jax.random.normal(k_eps, (B, C, H, W), dtype=jnp.float32)
    c = jax.random.randint(k_c, (B,), 0, NUM_CLASSES)

    # glue: `extract` (gather of per-batch scalars) and embedding lookups
    sr_b = signal_rate[t].reshape(B, 1).astype(jnp.float32)
    nr_b = noise_rate[t].reshape(B, 1).astype(jnp.float32)
    cond_rows = time_emb[t] + class_emb[c]             # (B, D)

    loss = diffusion_trainer_loss(x_0, epsilon, sr_b, nr_b, w_bf16, cond_rows)
    loss = jax.block_until_ready(loss)

    # plain-JAX reference for the same synthetic model (same bf16 cast at the
    # matmul boundary so the tolerance check stays tight).
    x0f = x_0.reshape(B, D)
    epsf = epsilon.reshape(B, D)
    x_t_ref = sr_b * x0f + nr_b * epsf
    eps_theta_ref = jnp.dot(x_t_ref.astype(jnp.bfloat16), w_bf16,
                            preferred_element_type=jnp.float32) + cond_rows
    loss_ref = jnp.sum((eps_theta_ref - epsf) ** 2)

    assert jnp.allclose(loss, loss_ref, rtol=1e-3, atol=1e-2), (loss, loss_ref)
    print("KERNEL_OK")
</pallas_src>

<mosaic_0001>
module attributes {stable_mosaic.version = 11 : i64} {
  func.func @_diffusion_loss_kernel(%arg0: i32, %arg1: memref<3x8x1024xf32, #tpu.memory_space<vmem>>, %arg2: memref<8x2xf32, #tpu.memory_space<vmem>>, %arg3: memref<1024x1024xbf16, #tpu.memory_space<vmem>>, %arg4: memref<8x1024xf32, #tpu.memory_space<vmem>>) attributes {dimension_semantics = [#tpu.dimension_semantics<parallel>], iteration_bounds = array<i64: 1>, scalar_prefetch = 0 : i64, scratch_operands = 0 : i64, tpu.core_type = #tpu.core_type<tc>, window_params = [{transform_indices = @transform_0, window_bounds = array<i64: 3, 8, 1024>}, {transform_indices = @transform_1, window_bounds = array<i64: 8, 2>}, {pipeline_mode = #tpu.pipeline_mode<synchronous>, transform_indices = @transform_2, window_bounds = array<i64: 1024, 1024>}, {transform_indices = @transform_3, window_bounds = array<i64: 8, 1024>}]} {
    %c0 = arith.constant 0 : index
    %c0_0 = arith.constant 0 : index
    %c0_1 = arith.constant 0 : index
    %0 = vector.load %arg1[%c0, %c0_0, %c0_1] : memref<3x8x1024xf32, #tpu.memory_space<vmem>>, vector<1x8x1024xf32>
    %1 = vector.shape_cast %0 : vector<1x8x1024xf32> to vector<8x1024xf32>
    %c1 = arith.constant 1 : index
    %c0_2 = arith.constant 0 : index
    %c0_3 = arith.constant 0 : index
    %2 = vector.load %arg1[%c1, %c0_2, %c0_3] : memref<3x8x1024xf32, #tpu.memory_space<vmem>>, vector<1x8x1024xf32>
    %3 = vector.shape_cast %2 : vector<1x8x1024xf32> to vector<8x1024xf32>
    %c2 = arith.constant 2 : index
    %c0_4 = arith.constant 0 : index
    %c0_5 = arith.constant 0 : index
    %4 = vector.load %arg1[%c2, %c0_4, %c0_5] : memref<3x8x1024xf32, #tpu.memory_space<vmem>>, vector<1x8x1024xf32>
    %5 = vector.shape_cast %4 : vector<1x8x1024xf32> to vector<8x1024xf32>
    %c0_6 = arith.constant 0 : index
    %c0_7 = arith.constant 0 : index
    %6 = vector.load %arg2[%c0_6, %c0_7] : memref<8x2xf32, #tpu.memory_space<vmem>>, vector<8x1xf32>
    %c0_8 = arith.constant 0 : index
    %c1_9 = arith.constant 1 : index
    %7 = vector.load %arg2[%c0_8, %c1_9] : memref<8x2xf32, #tpu.memory_space<vmem>>, vector<8x1xf32>
    %8 = vector.broadcast %6 : vector<8x1xf32> to vector<8x1024xf32>
    %9 = arith.mulf %8, %1 : vector<8x1024xf32>
    %10 = vector.broadcast %7 : vector<8x1xf32> to vector<8x1024xf32>
    %11 = arith.mulf %10, %3 : vector<8x1024xf32>
    %12 = arith.addf %9, %11 : vector<8x1024xf32>
    %13 = arith.truncf %12 : vector<8x1024xf32> to vector<8x1024xbf16>
    %c0_10 = arith.constant 0 : index
    %c0_11 = arith.constant 0 : index
    %14 = vector.load %arg3[%c0_10, %c0_11] : memref<1024x1024xbf16, #tpu.memory_space<vmem>>, vector<1024x1024xbf16>
    %cst = arith.constant dense<0.000000e+00> : vector<8x1024xf32>
    %15 = tpu.matmul %13, %14, %cst {dimension_numbers = #tpu.dot_dimension_numbers<[1], [0], [0], [1], [0, 0, 1, 1], [], []>} : vector<8x1024xbf16>, vector<1024x1024xbf16>, vector<8x1024xf32> -> vector<8x1024xf32>
    %16 = arith.addf %15, %5 : vector<8x1024xf32>
    %17 = arith.subf %16, %3 : vector<8x1024xf32>
    %18 = arith.mulf %17, %17 : vector<8x1024xf32>
    %19 = vector.shape_cast %18 : vector<8x1024xf32> to vector<1x8x1024xf32>
    %cst_12 = arith.constant dense<0.000000e+00> : vector<8x1024xf32>
    %20 = vector.multi_reduction <add>, %19, %cst_12 [0] : vector<1x8x1024xf32> to vector<8x1024xf32>
    %c0_13 = arith.constant 0 : index
    %c0_14 = arith.constant 0 : index
    %21 = vector.load %arg4[%c0_13, %c0_14] : memref<8x1024xf32, #tpu.memory_space<vmem>>, vector<8x1024xf32>
    tpu.vector_store %arg4[%c0_13, %c0_14], %20 {strides = array<i32>} : memref<8x1024xf32, #tpu.memory_space<vmem>>, vector<8x1024xf32>,
    return
  }
  func.func @transform_0(%arg0: i32) -> (i32, i32, i32) {
    %c0_i32 = arith.constant 0 : i32
    %c0_i32_0 = arith.constant 0 : i32
    %c0_i32_1 = arith.constant 0 : i32
    return %c0_i32, %arg0, %c0_i32_0 : i32, i32, i32
  }
  func.func @transform_1(%arg0: i32) -> (i32, i32) {
    %c0_i32 = arith.constant 0 : i32
    %c0_i32_0 = arith.constant 0 : i32
    return %arg0, %c0_i32 : i32, i32
  }
  func.func @transform_2(%arg0: i32) -> (i32, i32) {
    %c0_i32 = arith.constant 0 : i32
    %c0_i32_0 = arith.constant 0 : i32
    %c0_i32_1 = arith.constant 0 : i32
    return %c0_i32, %c0_i32_0 : i32, i32
  }
  func.func @transform_3(%arg0: i32) -> (i32, i32) {
    %c0_i32 = arith.constant 0 : i32
    %c0_i32_0 = arith.constant 0 : i32
    return %arg0, %c0_i32 : i32, i32
  }
}

</mosaic_0001>

<llo_original>
// kernel: tpu_custom_call.1
$region0: #{tpu_custom_call.1}
  #allocation0 [shape = 'u32[]', space=smem, size = 0x4, offset = 0x4, fixed_abs, tag = 'smem constant byte address 0x4 - core index']
  #allocation1 [shape = 'u32[72,128]{1,0:T(1,128)}', space=vmem, size = 0x9000, scoped, tag = 'internal scratch']
  %s0 = inlined_call_operand.hbm [shape: f32[3,8,1024], index: 0, kind: input, shape index: {}]
  %s1 = inlined_call_operand.vmem [shape: f32[8,2], index: 1, kind: input, shape index: {}]
  %s2 = inlined_call_operand.hbm [shape: bf16[1024,1024], index: 2, kind: input, shape index: {}]
  %s3 = inlined_call_operand.hbm [shape: f32[8,1024], index: 3, kind: output, shape index: {}]
  %s4 = sld [smem:[#allocation0]]
  $region30: #{tpu_custom_call.1} parent=0
    _
  %s6 = ssub.s32 1, %s4
  %s7 = scalar_select 0, %s6, %s4
  $region1: #{tpu_custom_call.1} parent=0
    #allocation2 [shape = 'u8[98304]{0}', space=vmem, size = 0x18000, scoped, tag = 'input window, operand 0, single buffered']
    #allocation3 [shape = 's32[1]{0}', space=sflag, size = 0x4, scoped, tag = 'scoped memory for tpu_custom_call.1']
    #allocation4 [shape = 's32[1]{0}', space=sflag, size = 0x4, scoped, tag = 'scoped memory for tpu_custom_call.1']
    #allocation5 [shape = 'u8[2097152]{0}', space=vmem, size = 0x200000, scoped, tag = 'input window, operand 2, single buffered']
    #allocation6 [shape = 's32[1]{0}', space=sflag, size = 0x4, scoped, tag = 'scoped memory for tpu_custom_call.1']
    #allocation7 [shape = 'u8[32768]{0}', space=vmem, size = 0x8000, scoped, tag = 'output window, operand 0, single buffered']
    %8 = vsyncpa [#allocation3], 0
    %9 = vsyncpa [#allocation6], 0
    %10 = vsyncpa [#allocation4], 0
    // Predicated region
    $region2: #{tpu_custom_call.1} parent=1 // pred_check
      _
    $region3: #{tpu_custom_call.1} parent=1 // pred_check_branch
      %12 = sbr.rel (0) target = $region5
    $region4: #{tpu_custom_call.1} parent=1 // pred_region
      %14 = vsyncadd [#allocation3], 0
      %s15 = sshll.u32 %s0, 4
      %s16 = int_to_ptr.hbm [resolvable:$true] %s15
      %s17 = sshll.u32 [#allocation2], 4
      %s18 = int_to_ptr.vmem [resolvable:$true] %s17
      %23 = dma.hbm_to_vmem [thread:$0]  %s16, 3072, %s18, [#allocation3], 1024, 1024, 64
    $region5: #{tpu_custom_call.1} parent=1 // pred_fallthru
      _
    // Predicated region
    $region6: #{tpu_custom_call.1} parent=1 // pred_check
      _
    $region7: #{tpu_custom_call.1} parent=1 // pred_check_branch
      %25 = sbr.rel (0) target = $region9
    $region8: #{tpu_custom_call.1} parent=1 // pred_region
      _
    $region9: #{tpu_custom_call.1} parent=1 // pred_fallthru
      _
    // Predicated region
    $region10: #{tpu_custom_call.1} parent=1 // pred_check
      _
    $region11: #{tpu_custom_call.1} parent=1 // pred_check_branch
      %27 = sbr.rel (0) target = $region13
    $region12: #{tpu_custom_call.1} parent=1 // pred_region
      %29 = vsyncadd [#allocation6], 0
      %s30 = sshll.u32 %s2, 4
      %s31 = int_to_ptr.hbm [resolvable:$true] %s30
      %s32 = sshll.u32 [#allocation5], 4
      %s33 = int_to_ptr.vmem [resolvable:$true] %s32
      %38 = dma.hbm_to_vmem [thread:$0]  %s31, 65536, %s33, [#allocation6], 512, 512, 32
    $region13: #{tpu_custom_call.1} parent=1 // pred_fallthru
      _
    // Predicated region
    $region14: #{tpu_custom_call.1} parent=1 // pred_check
      _
    $region15: #{tpu_custom_call.1} parent=1 // pred_check_branch
      %40 = sbr.rel (0) target = $region17
    $region16: #{tpu_custom_call.1} parent=1 // pred_region
      %42 = dma.done [#allocation3], 3072
    $region17: #{tpu_custom_call.1} parent=1 // pred_fallthru
      _
    // Predicated region
    $region18: #{tpu_custom_call.1} parent=1 // pred_check
      _
    $region19: #{tpu_custom_call.1} parent=1 // pred_check_branch
      %44 = sbr.rel (0) target = $region21
    $region20: #{tpu_custom_call.1} parent=1 // pred_region
      %46 = dma.done [#allocation6], 65536
    $region21: #{tpu_custom_call.1} parent=1 // pred_fallthru
      _
    %v47 = vld [vmem:[#allocation2] sm:$0xff]
    %v48 = vld [vmem:[#allocation2 + $0x8] sm:$0xff]
    %v49 = vld [vmem:[#allocation2 + $0x10] sm:$0xff]
    %v50 = vld [vmem:[#allocation2 + $0x18] sm:$0xff]
    %v51 = vld [vmem:[#allocation2 + $0x20] sm:$0xff]
    %v52 = vld [vmem:[#allocation2 + $0x28] sm:$0xff]
    %v53 = vld [vmem:[#allocation2 + $0x30] sm:$0xff]
    %v54 = vld [vmem:[#allocation2 + $0x38] sm:$0xff]
    %s55 = scalar_lea.vmem [#allocation2], 64
    %v56 = vld [vmem:[%s55] sm:$0xff]
    %v57 = vld [vmem:[%s55 + $0x8] sm:$0xff]
    %v58 = vld [vmem:[%s55 + $0x10] sm:$0xff]
    %v59 = vld [vmem:[%s55 + $0x18] sm:$0xff]
    %v60 = vld [vmem:[%s55 + $0x20] sm:$0xff]
    %v61 = vld [vmem:[%s55 + $0x28] sm:$0xff]
    %v62 = vld [vmem:[%s55 + $0x30] sm:$0xff]
    %v63 = vld [vmem:[%s55 + $0x38] sm:$0xff]
    %s64 = scalar_lea.vmem [#allocation2], 128
    %v65 = vld [vmem:[%s64] sm:$0xff]
    %v66 = vld [vmem:[%s64 + $0x8] sm:$0xff]
    %v67 = vld [vmem:[%s64 + $0x10] sm:$0xff]
    %v68 = vld [vmem:[%s64 + $0x18] sm:$0xff]
    %v69 = vld [vmem:[%s64 + $0x20] sm:$0xff]
    %v70 = vld [vmem:[%s64 + $0x28] sm:$0xff]
    %v71 = vld [vmem:[%s64 + $0x30] sm:$0xff]
    %v72 = vld [vmem:[%s64 + $0x38] sm:$0xff]
    %v73 = vld [vmem:[%s1] sm:$0xff]
    %75 = vset.pattern.permute.xlu0 0
    %76 = vperm.xlu0 %75, %v73
    %v77 = vpop.permute.xlu0 %76
    %v79 = vmul.f32 %v77, %v47
    %v80 = vmul.f32 %v77, %v48
    %v81 = vmul.f32 %v77, %v49
    %v82 = vmul.f32 %v77, %v50
    %v83 = vmul.f32 %v77, %v51
    %v84 = vmul.f32 %v77, %v52
    %v85 = vmul.f32 %v77, %v53
    %v86 = vmul.f32 %v77, %v54
    %87 = vset.pattern.permute.xlu0 1
    %88 = vperm.xlu0 %87, %v73
    %v89 = vpop.permute.xlu0 %88
    %v91 = vmul.f32 %v89, %v56
    %v92 = vmul.f32 %v89, %v57
    %v93 = vmul.f32 %v89, %v58
    %v94 = vmul.f32 %v89, %v59
    %v95 = vmul.f32 %v89, %v60
    %v96 = vmul.f32 %v89, %v61
    %v97 = vmul.f32 %v89, %v62
    %v98 = vmul.f32 %v89, %v63
    %v99 = vadd.f32 %v79, %v91
    %v100 = vadd.f32 %v80, %v92
    %v101 = vadd.f32 %v81, %v93
    %v102 = vadd.f32 %v82, %v94
    %v103 = vadd.f32 %v83, %v95
    %v104 = vadd.f32 %v84, %v96
    %v105 = vadd.f32 %v85, %v97
    %v106 = vadd.f32 %v86, %v98
    %v107 = vpack.c.bf16 %v99, %v99
    %v108 = vpack.c.bf16 %v100, %v100
    %v109 = vpack.c.bf16 %v101, %v101
    %v110 = vpack.c.bf16 %v102, %v102
    %v111 = vpack.c.bf16 %v103, %v103
    %v112 = vpack.c.bf16 %v104, %v104
    %v113 = vpack.c.bf16 %v105, %v105
    %v114 = vpack.c.bf16 %v106, %v106
    %v115 = vld [vmem:[#allocation5] sm:$0xff]
    %v116 = vld [vmem:[#allocation5 + $0x8] sm:$0xff]
    %v117 = vld [vmem:[#allocation5 + $0x10] sm:$0xff]
    %v118 = vld [vmem:[#allocation5 + $0x18] sm:$0xff]
    %v119 = vld [vmem:[#allocation5 + $0x20] sm:$0xff]
    %v120 = vld [vmem:[#allocation5 + $0x28] sm:$0xff]
    %v121 = vld [vmem:[#allocation5 + $0x30] sm:$0xff]
    %v122 = vld [vmem:[#allocation5 + $0x38] sm:$0xff]
    %v123 = vld [vmem:[#allocation5 + $0x40] sm:$0xff]
    %v124 = vld [vmem:[#allocation5 + $0x48] sm:$0xff]
    %v125 = vld [vmem:[#allocation5 + $0x50] sm:$0xff]
    %v126 = vld [vmem:[#allocation5 + $0x58] sm:$0xff]
    %v127 = vld [vmem:[#allocation5 + $0x60] sm:$0xff]
    %v128 = vld [vmem:[#allocation5 + $0x68] sm:$0xff]
    %v129 = vld [vmem:[#allocation5 + $0x70] sm:$0xff]
    %v130 = vld [vmem:[#allocation5 + $0x78] sm:$0xff]
    %v131 = vld [vmem:[#allocation5 + $0x80] sm:$0xff]
    %v132 = vld [vmem:[#allocation5 + $0x88] sm:$0xff]
    %v133 = vld [vmem:[#allocation5 + $0x90] sm:$0xff]
    %v134 = vld [vmem:[#allocation5 + $0x98] sm:$0xff]
    %v135 = vld [vmem:[#allocation5 + $0xa0] sm:$0xff]
    %v136 = vld [vmem:[#allocation5 + $0xa8] sm:$0xff]
    %v137 = vld [vmem:[#allocation5 + $0xb0] sm:$0xff]
    %v138 = vld [vmem:[#allocation5 + $0xb8] sm:$0xff]
    %v139 = vld [vmem:[#allocation5 + $0xc0] sm:$0xff]
    %v140 = vld [vmem:[#allocation5 + $0xc8] sm:$0xff]
    %v141 = vld [vmem:[#allocation5 + $0xd0] sm:$0xff]
    %v142 = vld [vmem:[#allocation5 + $0xd8] sm:$0xff]
    %v143 = vld [vmem:[#allocation5 + $0xe0] sm:$0xff]
    %v144 = vld [vmem:[#allocation5 + $0xe8] sm:$0xff]
    %v145 = vld [vmem:[#allocation5 + $0xf0] sm:$0xff]
    %v146 = vld [vmem:[#allocation5 + $0xf8] sm:$0xff]
    %v147 = vld [vmem:[#allocation5 + $0x100] sm:$0xff]
    %v148 = vld [vmem:[#allocation5 + $0x108] sm:$0xff]
    %v149 = vld [vmem:[#allocation5 + $0x110] sm:$0xff]
    %v150 = vld [vmem:[#allocation5 + $0x118] sm:$0xff]
    %v151 = vld [vmem:[#allocation5 + $0x120] sm:$0xff]
    %v152 = vld [vmem:[#allocation5 + $0x128] sm:$0xff]
    %v153 = vld [vmem:[#allocation5 + $0x130] sm:$0xff]
    %v154 = vld [vmem:[#allocation5 + $0x138] sm:$0xff]
    %v155 = vld [vmem:[#allocation5 + $0x140] sm:$0xff]
    %v156 = vld [vmem:[#allocation5 + $0x148] sm:$0xff]
    %v157 = vld [vmem:[#allocation5 + $0x150] sm:$0xff]
    %v158 = vld [vmem:[#allocation5 + $0x158] sm:$0xff]
    %v159 = vld [vmem:[#allocation5 + $0x160] sm:$0xff]
    %v160 = vld [vmem:[#allocation5 + $0x168] sm:$0xff]
    %v161 = vld [vmem:[#allocation5 + $0x170] sm:$0xff]
    %v162 = vld [vmem:[#allocation5 + $0x178] sm:$0xff]
    %v163 = vld [vmem:[#allocation5 + $0x180] sm:$0xff]
    %v164 = vld [vmem:[#allocation5 + $0x188] sm:$0xff]
    %v165 = vld [vmem:[#allocation5 + $0x190] sm:$0xff]
    %v166 = vld [vmem:[#allocation5 + $0x198] sm:$0xff]
    %v167 = vld [vmem:[#allocation5 + $0x1a0] sm:$0xff]
    %v168 = vld [vmem:[#allocation5 + $0x1a8] sm:$0xff]
    %v169 = vld [vmem:[#allocation5 + $0x1b0] sm:$0xff]
    %v170 = vld [vmem:[#allocation5 + $0x1b8] sm:$0xff]
    %v171 = vld [vmem:[#allocation5 + $0x1c0] sm:$0xff]
    %v172 = vld [vmem:[#allocation5 + $0x1c8] sm:$0xff]
    %v173 = vld [vmem:[#allocation5 + $0x1d0] sm:$0xff]
    %v174 = vld [vmem:[#allocation5 + $0x1d8] sm:$0xff]
    %v175 = vld [vmem:[#allocation5 + $0x1e0] sm:$0xff]
    %v176 = vld [vmem:[#allocation5 + $0x1e8] sm:$0xff]
    %v177 = vld [vmem:[#allocation5 + $0x1f0] sm:$0xff]
    %v178 = vld [vmem:[#allocation5 + $0x1f8] sm:$0xff]
    %v179 = vld [vmem:[#allocation5 + $0x200] sm:$0xff]
    %v180 = vld [vmem:[#allocation5 + $0x208] sm:$0xff]
    %v181 = vld [vmem:[#allocation5 + $0x210] sm:$0xff]
    %v182 = vld [vmem:[#allocation5 + $0x218] sm:$0xff]
    %v183 = vld [vmem:[#allocation5 + $0x220] sm:$0xff]
    %v184 = vld [vmem:[#allocation5 + $0x228] sm:$0xff]
    %v185 = vld [vmem:[#allocation5 + $0x230] sm:$0xff]
    %v186 = vld [vmem:[#allocation5 + $0x238] sm:$0xff]
    %v187 = vld [vmem:[#allocation5 + $0x240] sm:$0xff]
    %v188 = vld [vmem:[#allocation5 + $0x248] sm:$0xff]
    %v189 = vld [vmem:[#allocation5 + $0x250] sm:$0xff]
    %v190 = vld [vmem:[#allocation5 + $0x258] sm:$0xff]
    %v191 = vld [vmem:[#allocation5 + $0x260] sm:$0xff]
    %v192 = vld [vmem:[#allocation5 + $0x268] sm:$0xff]
    %v193 = vld [vmem:[#allocation5 + $0x270] sm:$0xff]
    %v194 = vld [vmem:[#allocation5 + $0x278] sm:$0xff]
    %v195 = vld [vmem:[#allocation5 + $0x280] sm:$0xff]
    %v196 = vld [vmem:[#allocation5 + $0x288] sm:$0xff]
    %v197 = vld [vmem:[#allocation5 + $0x290] sm:$0xff]
    %v198 = vld [vmem:[#allocation5 + $0x298] sm:$0xff]
    %v199 = vld [vmem:[#allocation5 + $0x2a0] sm:$0xff]
    %v200 = vld [vmem:[#allocation5 + $0x2a8] sm:$0xff]
    %v201 = vld [vmem:[#allocation5 + $0x2b0] sm:$0xff]
    %v202 = vld [vmem:[#allocation5 + $0x2b8] sm:$0xff]
    %v203 = vld [vmem:[#allocation5 + $0x2c0] sm:$0xff]
    %v204 = vld [vmem:[#allocation5 + $0x2c8] sm:$0xff]
    %v205 = vld [vmem:[#allocation5 + $0x2d0] sm:$0xff]
    %v206 = vld [vmem:[#allocation5 + $0x2d8] sm:$0xff]
    %v207 = vld [vmem:[#allocation5 + $0x2e0] sm:$0xff]
    %v208 = vld [vmem:[#allocation5 + $0x2e8] sm:$0xff]
    %v209 = vld [vmem:[#allocation5 + $0x2f0] sm:$0xff]
    %v210 = vld [vmem:[#allocation5 + $0x2f8] sm:$0xff]
    %v211 = vld [vmem:[#allocation5 + $0x300] sm:$0xff]
    %v212 = vld [vmem:[#allocation5 + $0x308] sm:$0xff]
    %v213 = vld [vmem:[#allocation5 + $0x310] sm:$0xff]
    %v214 = vld [vmem:[#allocation5 + $0x318] sm:$0xff]
    %v215 = vld [vmem:[#allocation5 + $0x320] sm:$0xff]
    %v216 = vld [vmem:[#allocation5 + $0x328] sm:$0xff]
    %v217 = vld [vmem:[#allocation5 + $0x330] sm:$0xff]
    %v218 = vld [vmem:[#allocation5 + $0x338] sm:$0xff]
    %v219 = vld [vmem:[#allocation5 + $0x340] sm:$0xff]
    %v220 = vld [vmem:[#allocation5 + $0x348] sm:$0xff]
    %v221 = vld [vmem:[#allocation5 + $0x350] sm:$0xff]
    %v222 = vld [vmem:[#allocation5 + $0x358] sm:$0xff]
    %v223 = vld [vmem:[#allocation5 + $0x360] sm:$0xff]
    %v224 = vld [vmem:[#allocation5 + $0x368] sm:$0xff]
    %v225 = vld [vmem:[#allocation5 + $0x370] sm:$0xff]
    %v226 = vld [vmem:[#allocation5 + $0x378] sm:$0xff]
    %v227 = vld [vmem:[#allocation5 + $0x380] sm:$0xff]
    %v228 = vld [vmem:[#allocation5 + $0x388] sm:$0xff]
    %v229 = vld [vmem:[#allocation5 + $0x390] sm:$0xff]
    %v230 = vld [vmem:[#allocation5 + $0x398] sm:$0xff]
    %v231 = vld [vmem:[#allocation5 + $0x3a0] sm:$0xff]
    %v232 = vld [vmem:[#allocation5 + $0x3a8] sm:$0xff]
    %v233 = vld [vmem:[#allocation5 + $0x3b0] sm:$0xff]
    %v234 = vld [vmem:[#allocation5 + $0x3b8] sm:$0xff]
    %v235 = vld [vmem:[#allocation5 + $0x3c0] sm:$0xff]
    %v236 = vld [vmem:[#allocation5 + $0x3c8] sm:$0xff]
    %v237 = vld [vmem:[#allocation5 + $0x3d0] sm:$0xff]
    %v238 = vld [vmem:[#allocation5 + $0x3d8] sm:$0xff]
    %v239 = vld [vmem:[#allocation5 + $0x3e0] sm:$0xff]
    %v240 = vld [vmem:[#allocation5 + $0x3e8] sm:$0xff]
    %v241 = vld [vmem:[#allocation5 + $0x3f0] sm:$0xff]
    %v242 = vld [vmem:[#allocation5 + $0x3f8] sm:$0xff]
    %v243 = vld [vmem:[#allocation5 + $0x400] sm:$0xff]
    %v244 = vld [vmem:[#allocation5 + $0x408] sm:$0xff]
    %v245 = vld [vmem:[#allocation5 + $0x410] sm:$0xff]
    %v246 = vld [vmem:[#allocation5 + $0x418] sm:$0xff]
    %v247 = vld [vmem:[#allocation5 + $0x420] sm:$0xff]
    %v248 = vld [vmem:[#allocation5 + $0x428] sm:$0xff]
    %v249 = vld [vmem:[#allocation5 + $0x430] sm:$0xff]
    %v250 = vld [vmem:[#allocation5 + $0x438] sm:$0xff]
    %v251 = vld [vmem:[#allocation5 + $0x440] sm:$0xff]
    %v252 = vld [vmem:[#allocation5 + $0x448] sm:$0xff]
    %v253 = vld [vmem:[#allocation5 + $0x450] sm:$0xff]
    %v254 = vld [vmem:[#allocation5 + $0x458] sm:$0xff]
    %v255 = vld [vmem:[#allocation5 + $0x460] sm:$0xff]
    %v256 = vld [vmem:[#allocation5 + $0x468] sm:$0xff]
    %v257 = vld [vmem:[#allocation5 + $0x470] sm:$0xff]
    %v258 = vld [vmem:[#allocation5 + $0x478] sm:$0xff]
    %v259 = vld [vmem:[#allocation5 + $0x480] sm:$0xff]
    %v260 = vld [vmem:[#allocation5 + $0x488] sm:$0xff]
    %v261 = vld [vmem:[#allocation5 + $0x490] sm:$0xff]
    %v262 = vld [vmem:[#allocation5 + $0x498] sm:$0xff]
    %v263 = vld [vmem:[#allocation5 + $0x4a0] sm:$0xff]
    %v264 = vld [vmem:[#allocation5 + $0x4a8] sm:$0xff]
    %v265 = vld [vmem:[#allocation5 + $0x4b0] sm:$0xff]
    %v266 = vld [vmem:[#allocation5 + $0x4b8] sm:$0xff]
    %v267 = vld [vmem:[#allocation5 + $0x4c0] sm:$0xff]
    %v268 = vld [vmem:[#allocation5 + $0x4c8] sm:$0xff]
    %v269 = vld [vmem:[#allocation5 + $0x4d0] sm:$0xff]
    %v270 = vld [vmem:[#allocation5 + $0x4d8] sm:$0xff]
    %v271 = vld [vmem:[#allocation5 + $0x4e0] sm:$0xff]
    %v272 = vld [vmem:[#allocation5 + $0x4e8] sm:$0xff]
    %v273 = vld [vmem:[#allocation5 + $0x4f0] sm:$0xff]
    %v274 = vld [vmem:[#allocation5 + $0x4f8] sm:$0xff]
    %v275 = vld [vmem:[#allocation5 + $0x500] sm:$0xff]
    %v276 = vld [vmem:[#allocation5 + $0x508] sm:$0xff]
    %v277 = vld [vmem:[#allocation5 + $0x510] sm:$0xff]
    %v278 = vld [vmem:[#allocation5 + $0x518] sm:$0xff]
    %v279 = vld [vmem:[#allocation5 + $0x520] sm:$0xff]
    %v280 = vld [vmem:[#allocation5 + $0x528] sm:$0xff]
    %v281 = vld [vmem:[#allocation5 + $0x530] sm:$0xff]
    %v282 = vld [vmem:[#allocation5 + $0x538] sm:$0xff]
    %v283 = vld [vmem:[#allocation5 + $0x540] sm:$0xff]
    %v284 = vld [vmem:[#allocation5 + $0x548] sm:$0xff]
    %v285 = vld [vmem:[#allocation5 + $0x550] sm:$0xff]
    %v286 = vld [vmem:[#allocation5 + $0x558] sm:$0xff]
    %v287 = vld [vmem:[#allocation5 + $0x560] sm:$0xff]
    %v288 = vld [vmem:[#allocation5 + $0x568] sm:$0xff]
    %v289 = vld [vmem:[#allocation5 + $0x570] sm:$0xff]
    %v290 = vld [vmem:[#allocation5 + $0x578] sm:$0xff]
    %v291 = vld [vmem:[#allocation5 + $0x580] sm:$0xff]
    %v292 = vld [vmem:[#allocation5 + $0x588] sm:$0xff]
    %v293 = vld [vmem:[#allocation5 + $0x590] sm:$0xff]
    %v294 = vld [vmem:[#allocation5 + $0x598] sm:$0xff]
    %v295 = vld [vmem:[#allocation5 + $0x5a0] sm:$0xff]
    %v296 = vld [vmem:[#allocation5 + $0x5a8] sm:$0xff]
    %v297 = vld [vmem:[#allocation5 + $0x5b0] sm:$0xff]
    %v298 = vld [vmem:[#allocation5 + $0x5b8] sm:$0xff]
    %v299 = vld [vmem:[#allocation5 + $0x5c0] sm:$0xff]
    %v300 = vld [vmem:[#allocation5 + $0x5c8] sm:$0xff]
    %v301 = vld [vmem:[#allocation5 + $0x5d0] sm:$0xff]
    %v302 = vld [vmem:[#allocation5 + $0x5d8] sm:$0xff]
    %v303 = vld [vmem:[#allocation5 + $0x5e0] sm:$0xff]
    %v304 = vld [vmem:[#allocation5 + $0x5e8] sm:$0xff]
    %v305 = vld [vmem:[#allocation5 + $0x5f0] sm:$0xff]
    %v306 = vld [vmem:[#allocation5 + $0x5f8] sm:$0xff]
    %v307 = vld [vmem:[#allocation5 + $0x600] sm:$0xff]
    %v308 = vld [vmem:[#allocation5 + $0x608] sm:$0xff]
    %v309 = vld [vmem:[#allocation5 + $0x610] sm:$0xff]
    %v310 = vld [vmem:[#allocation5 + $0x618] sm:$0xff]
    %v311 = vld [vmem:[#allocation5 + $0x620] sm:$0xff]
    %v312 = vld [vmem:[#allocation5 + $0x628] sm:$0xff]
    %v313 = vld [vmem:[#allocation5 + $0x630] sm:$0xff]
    %v314 = vld [vmem:[#allocation5 + $0x638] sm:$0xff]
    %v315 = vld [vmem:[#allocation5 + $0x640] sm:$0xff]
    %v316 = vld [vmem:[#allocation5 + $0x648] sm:$0xff]
    %v317 = vld [vmem:[#allocation5 + $0x650] sm:$0xff]
    %v318 = vld [vmem:[#allocation5 + $0x658] sm:$0xff]
    %v319 = vld [vmem:[#allocation5 + $0x660] sm:$0xff]
    %v320 = vld [vmem:[#allocation5 + $0x668] sm:$0xff]
    %v321 = vld [vmem:[#allocation5 + $0x670] sm:$0xff]
    %v322 = vld [vmem:[#allocation5 + $0x678] sm:$0xff]
    %v323 = vld [vmem:[#allocation5 + $0x680] sm:$0xff]
    %v324 = vld [vmem:[#allocation5 + $0x688] sm:$0xff]
    %v325 = vld [vmem:[#allocation5 + $0x690] sm:$0xff]
    %v326 = vld [vmem:[#allocation5 + $0x698] sm:$0xff]
    %v327 = vld [vmem:[#allocation5 + $0x6a0] sm:$0xff]
    %v328 = vld [vmem:[#allocation5 + $0x6a8] sm:$0xff]
    %v329 = vld [vmem:[#allocation5 + $0x6b0] sm:$0xff]
    %v330 = vld [vmem:[#allocation5 + $0x6b8] sm:$0xff]
    %v331 = vld [vmem:[#allocation5 + $0x6c0] sm:$0xff]
    %v332 = vld [vmem:[#allocation5 + $0x6c8] sm:$0xff]
    %v333 = vld [vmem:[#allocation5 + $0x6d0] sm:$0xff]
    %v334 = vld [vmem:[#allocation5 + $0x6d8] sm:$0xff]
    %v335 = vld [vmem:[#allocation5 + $0x6e0] sm:$0xff]
    %v336 = vld [vmem:[#allocation5 + $0x6e8] sm:$0xff]
    %v337 = vld [vmem:[#allocation5 + $0x6f0] sm:$0xff]
    %v338 = vld [vmem:[#allocation5 + $0x6f8] sm:$0xff]
    %v339 = vld [vmem:[#allocation5 + $0x700] sm:$0xff]
    %v340 = vld [vmem:[#allocation5 + $0x708] sm:$0xff]
    %v341 = vld [vmem:[#allocation5 + $0x710] sm:$0xff]
    %v342 = vld [vmem:[#allocation5 + $0x718] sm:$0xff]
    %v343 = vld [vmem:[#allocation5 + $0x720] sm:$0xff]
    %v344 = vld [vmem:[#allocation5 + $0x728] sm:$0xff]
    %v345 = vld [vmem:[#allocation5 + $0x730] sm:$0xff]
    %v346 = vld [vmem:[#allocation5 + $0x738] sm:$0xff]
    %v347 = vld [vmem:[#allocation5 + $0x740] sm:$0xff]
    %v348 = vld [vmem:[#allocation5 + $0x748] sm:$0xff]
    %v349 = vld [vmem:[#allocation5 + $0x750] sm:$0xff]
    %v350 = vld [vmem:[#allocation5 + $0x758] sm:$0xff]
    %v351 = vld [vmem:[#allocation5 + $0x760] sm:$0xff]
    %v352 = vld [vmem:[#allocation5 + $0x768] sm:$0xff]
    %v353 = vld [vmem:[#allocation5 + $0x770] sm:$0xff]
    %v354 = vld [vmem:[#allocation5 + $0x778] sm:$0xff]
    %v355 = vld [vmem:[#allocation5 + $0x780] sm:$0xff]
    %v356 = vld [vmem:[#allocation5 + $0x788] sm:$0xff]
    %v357 = vld [vmem:[#allocation5 + $0x790] sm:$0xff]
    %v358 = vld [vmem:[#allocation5 + $0x798] sm:$0xff]
    %v359 = vld [vmem:[#allocation5 + $0x7a0] sm:$0xff]
    %v360 = vld [vmem:[#allocation5 + $0x7a8] sm:$0xff]
    %v361 = vld [vmem:[#allocation5 + $0x7b0] sm:$0xff]
    %v362 = vld [vmem:[#allocation5 + $0x7b8] sm:$0xff]
    %v363 = vld [vmem:[#allocation5 + $0x7c0] sm:$0xff]
    %v364 = vld [vmem:[#allocation5 + $0x7c8] sm:$0xff]
    %v365 = vld [vmem:[#allocation5 + $0x7d0] sm:$0xff]
    %v366 = vld [vmem:[#allocation5 + $0x7d8] sm:$0xff]
    %v367 = vld [vmem:[#allocation5 + $0x7e0] sm:$0xff]
    %v368 = vld [vmem:[#allocation5 + $0x7e8] sm:$0xff]
    %v369 = vld [vmem:[#allocation5 + $0x7f0] sm:$0xff]
    %v370 = vld [vmem:[#allocation5 + $0x7f8] sm:$0xff]
    %v371 = vld [vmem:[#allocation5 + $0x800] sm:$0xff]
    %v372 = vld [vmem:[#allocation5 + $0x808] sm:$0xff]
    %v373 = vld [vmem:[#allocation5 + $0x810] sm:$0xff]
    %v374 = vld [vmem:[#allocation5 + $0x818] sm:$0xff]
    %v375 = vld [vmem:[#allocation5 + $0x820] sm:$0xff]
    %v376 = vld [vmem:[#allocation5 + $0x828] sm:$0xff]
    %v377 = vld [vmem:[#allocation5 + $0x830] sm:$0xff]
    %v378 = vld [vmem:[#allocation5 + $0x838] sm:$0xff]
    %v379 = vld [vmem:[#allocation5 + $0x840] sm:$0xff]
    %v380 = vld [vmem:[#allocation5 + $0x848] sm:$0xff]
    %v381 = vld [vmem:[#allocation5 + $0x850] sm:$0xff]
    %v382 = vld [vmem:[#allocation5 + $0x858] sm:$0xff]
    %v383 = vld [vmem:[#allocation5 + $0x860] sm:$0xff]
    %v384 = vld [vmem:[#allocation5 + $0x868] sm:$0xff]
    %v385 = vld [vmem:[#allocation5 + $0x870] sm:$0xff]
    %v386 = vld [vmem:[#allocation5 + $0x878] sm:$0xff]
    %v387 = vld [vmem:[#allocation5 + $0x880] sm:$0xff]
    %v388 = vld [vmem:[#allocation5 + $0x888] sm:$0xff]
    %v389 = vld [vmem:[#allocation5 + $0x890] sm:$0xff]
    %v390 = vld [vmem:[#allocation5 + $0x898] sm:$0xff]
    %v391 = vld [vmem:[#allocation5 + $0x8a0] sm:$0xff]
    %v392 = vld [vmem:[#allocation5 + $0x8a8] sm:$0xff]
    %v393 = vld [vmem:[#allocation5 + $0x8b0] sm:$0xff]
    %v394 = vld [vmem:[#allocation5 + $0x8b8] sm:$0xff]
    %v395 = vld [vmem:[#allocation5 + $0x8c0] sm:$0xff]
    %v396 = vld [vmem:[#allocation5 + $0x8c8] sm:$0xff]
    %v397 = vld [vmem:[#allocation5 + $0x8d0] sm:$0xff]
    %v398 = vld [vmem:[#allocation5 + $0x8d8] sm:$0xff]
    %v399 = vld [vmem:[#allocation5 + $0x8e0] sm:$0xff]
    %v400 = vld [vmem:[#allocation5 + $0x8e8] sm:$0xff]
    %v401 = vld [vmem:[#allocation5 + $0x8f0] sm:$0xff]
    %v402 = vld [vmem:[#allocation5 + $0x8f8] sm:$0xff]
    %v403 = vld [vmem:[#allocation5 + $0x900] sm:$0xff]
    %v404 = vld [vmem:[#allocation5 + $0x908] sm:$0xff]
    %v405 = vld [vmem:[#allocation5 + $0x910] sm:$0xff]
    %v406 = vld [vmem:[#allocation5 + $0x918] sm:$0xff]
    %v407 = vld [vmem:[#allocation5 + $0x920] sm:$0xff]
    %v408 = vld [vmem:[#allocation5 + $0x928] sm:$0xff]
    %v409 = vld [vmem:[#allocation5 + $0x930] sm:$0xff]
    %v410 = vld [vmem:[#allocation5 + $0x938] sm:$0xff]
    %v411 = vld [vmem:[#allocation5 + $0x940] sm:$0xff]
    %v412 = vld [vmem:[#allocation5 + $0x948] sm:$0xff]
    %v413 = vld [vmem:[#allocation5 + $0x950] sm:$0xff]
    %v414 = vld [vmem:[#allocation5 + $0x958] sm:$0xff]
    %v415 = vld [vmem:[#allocation5 + $0x960] sm:$0xff]
    %v416 = vld [vmem:[#allocation5 + $0x968] sm:$0xff]
    %v417 = vld [vmem:[#allocation5 + $0x970] sm:$0xff]
    %v418 = vld [vmem:[#allocation5 + $0x978] sm:$0xff]
    %v419 = vld [vmem:[#allocation5 + $0x980] sm:$0xff]
    %v420 = vld [vmem:[#allocation5 + $0x988] sm:$0xff]
    %v421 = vld [vmem:[#allocation5 + $0x990] sm:$0xff]
    %v422 = vld [vmem:[#allocation5 + $0x998] sm:$0xff]
    %v423 = vld [vmem:[#allocation5 + $0x9a0] sm:$0xff]
    %v424 = vld [vmem:[#allocation5 + $0x9a8] sm:$0xff]
    %v425 = vld [vmem:[#allocation5 + $0x9b0] sm:$0xff]
    %v426 = vld [vmem:[#allocation5 + $0x9b8] sm:$0xff]
    %v427 = vld [vmem:[#allocation5 + $0x9c0] sm:$0xff]
    %v428 = vld [vmem:[#allocation5 + $0x9c8] sm:$0xff]
    %v429 = vld [vmem:[#allocation5 + $0x9d0] sm:$0xff]
    %v430 = vld [vmem:[#allocation5 + $0x9d8] sm:$0xff]
    %v431 = vld [vmem:[#allocation5 + $0x9e0] sm:$0xff]
    %v432 = vld [vmem:[#allocation5 + $0x9e8] sm:$0xff]
    %v433 = vld [vmem:[#allocation5 + $0x9f0] sm:$0xff]
    %v434 = vld [vmem:[#allocation5 + $0x9f8] sm:$0xff]
    %v435 = vld [vmem:[#allocation5 + $0xa00] sm:$0xff]
    %v436 = vld [vmem:[#allocation5 + $0xa08] sm:$0xff]
    %v437 = vld [vmem:[#allocation5 + $0xa10] sm:$0xff]
    %v438 = vld [vmem:[#allocation5 + $0xa18] sm:$0xff]
    %v439 = vld [vmem:[#allocation5 + $0xa20] sm:$0xff]
    %v440 = vld [vmem:[#allocation5 + $0xa28] sm:$0xff]
    %v441 = vld [vmem:[#allocation5 + $0xa30] sm:$0xff]
    %v442 = vld [vmem:[#allocation5 + $0xa38] sm:$0xff]
    %v443 = vld [vmem:[#allocation5 + $0xa40] sm:$0xff]
    %v444 = vld [vmem:[#allocation5 + $0xa48] sm:$0xff]
    %v445 = vld [vmem:[#allocation5 + $0xa50] sm:$0xff]
    %v446 = vld [vmem:[#allocation5 + $0xa58] sm:$0xff]
    %v447 = vld [vmem:[#allocation5 + $0xa60] sm:$0xff]
    %v448 = vld [vmem:[#allocation5 + $0xa68] sm:$0xff]
    %v449 = vld [vmem:[#allocation5 + $0xa70] sm:$0xff]
    %v450 = vld [vmem:[#allocation5 + $0xa78] sm:$0xff]
    %v451 = vld [vmem:[#allocation5 + $0xa80] sm:$0xff]
    %v452 = vld [vmem:[#allocation5 + $0xa88] sm:$0xff]
    %v453 = vld [vmem:[#allocation5 + $0xa90] sm:$0xff]
    %v454 = vld [vmem:[#allocation5 + $0xa98] sm:$0xff]
    %v455 = vld [vmem:[#allocation5 + $0xaa0] sm:$0xff]
    %v456 = vld [vmem:[#allocation5 + $0xaa8] sm:$0xff]
    %v457 = vld [vmem:[#allocation5 + $0xab0] sm:$0xff]
    %v458 = vld [vmem:[#allocation5 + $0xab8] sm:$0xff]
    %v459 = vld [vmem:[#allocation5 + $0xac0] sm:$0xff]
    %v460 = vld [vmem:[#allocation5 + $0xac8] sm:$0xff]
    %v461 = vld [vmem:[#allocation5 + $0xad0] sm:$0xff]
    %v462 = vld [vmem:[#allocation5 + $0xad8] sm:$0xff]
    %v463 = vld [vmem:[#allocation5 + $0xae0] sm:$0xff]
    %v464 = vld [vmem:[#allocation5 + $0xae8] sm:$0xff]
    %v465 = vld [vmem:[#allocation5 + $0xaf0] sm:$0xff]
    %v466 = vld [vmem:[#allocation5 + $0xaf8] sm:$0xff]
    %v467 = vld [vmem:[#allocation5 + $0xb00] sm:$0xff]
    %v468 = vld [vmem:[#allocation5 + $0xb08] sm:$0xff]
    %v469 = vld [vmem:[#allocation5 + $0xb10] sm:$0xff]
    %v470 = vld [vmem:[#allocation5 + $0xb18] sm:$0xff]
    %v471 = vld [vmem:[#allocation5 + $0xb20] sm:$0xff]
    %v472 = vld [vmem:[#allocation5 + $0xb28] sm:$0xff]
    %v473 = vld [vmem:[#allocation5 + $0xb30] sm:$0xff]
    %v474 = vld [vmem:[#allocation5 + $0xb38] sm:$0xff]
    %v475 = vld [vmem:[#allocation5 + $0xb40] sm:$0xff]
    %v476 = vld [vmem:[#allocation5 + $0xb48] sm:$0xff]
    %v477 = vld [vmem:[#allocation5 + $0xb50] sm:$0xff]
    %v478 = vld [vmem:[#allocation5 + $0xb58] sm:$0xff]
    %v479 = vld [vmem:[#allocation5 + $0xb60] sm:$0xff]
    %v480 = vld [vmem:[#allocation5 + $0xb68] sm:$0xff]
    %v481 = vld [vmem:[#allocation5 + $0xb70] sm:$0xff]
    %v482 = vld [vmem:[#allocation5 + $0xb78] sm:$0xff]
    %v483 = vld [vmem:[#allocation5 + $0xb80] sm:$0xff]
    %v484 = vld [vmem:[#allocation5 + $0xb88] sm:$0xff]
    %v485 = vld [vmem:[#allocation5 + $0xb90] sm:$0xff]
    %v486 = vld [vmem:[#allocation5 + $0xb98] sm:$0xff]
    %v487 = vld [vmem:[#allocation5 + $0xba0] sm:$0xff]
    %v488 = vld [vmem:[#allocation5 + $0xba8] sm:$0xff]
    %v489 = vld [vmem:[#allocation5 + $0xbb0] sm:$0xff]
    %v490 = vld [vmem:[#allocation5 + $0xbb8] sm:$0xff]
    %v491 = vld [vmem:[#allocation5 + $0xbc0] sm:$0xff]
    %v492 = vld [vmem:[#allocation5 + $0xbc8] sm:$0xff]
    %v493 = vld [vmem:[#allocation5 + $0xbd0] sm:$0xff]
    %v494 = vld [vmem:[#allocation5 + $0xbd8] sm:$0xff]
    %v495 = vld [vmem:[#allocation5 + $0xbe0] sm:$0xff]
    %v496 = vld [vmem:[#allocation5 + $0xbe8] sm:$0xff]
    %v497 = vld [vmem:[#allocation5 + $0xbf0] sm:$0xff]
    %v498 = vld [vmem:[#allocation5 + $0xbf8] sm:$0xff]
    %v499 = vld [vmem:[#allocation5 + $0xc00] sm:$0xff]
    %v500 = vld [vmem:[#allocation5 + $0xc08] sm:$0xff]
    %v501 = vld [vmem:[#allocation5 + $0xc10] sm:$0xff]
    %v502 = vld [vmem:[#allocation5 + $0xc18] sm:$0xff]
    %v503 = vld [vmem:[#allocation5 + $0xc20] sm:$0xff]
    %v504 = vld [vmem:[#allocation5 + $0xc28] sm:$0xff]
    %v505 = vld [vmem:[#allocation5 + $0xc30] sm:$0xff]
    %v506 = vld [vmem:[#allocation5 + $0xc38] sm:$0xff]
    %v507 = vld [vmem:[#allocation5 + $0xc40] sm:$0xff]
    %v508 = vld [vmem:[#allocation5 + $0xc48] sm:$0xff]
    %v509 = vld [vmem:[#allocation5 + $0xc50] sm:$0xff]
    %v510 = vld [vmem:[#allocation5 + $0xc58] sm:$0xff]
    %v511 = vld [vmem:[#allocation5 + $0xc60] sm:$0xff]
    %v512 = vld [vmem:[#allocation5 + $0xc68] sm:$0xff]
    %v513 = vld [vmem:[#allocation5 + $0xc70] sm:$0xff]
    %v514 = vld [vmem:[#allocation5 + $0xc78] sm:$0xff]
    %v515 = vld [vmem:[#allocation5 + $0xc80] sm:$0xff]
    %v516 = vld [vmem:[#allocation5 + $0xc88] sm:$0xff]
    %v517 = vld [vmem:[#allocation5 + $0xc90] sm:$0xff]
    %v518 = vld [vmem:[#allocation5 + $0xc98] sm:$0xff]
    %v519 = vld [vmem:[#allocation5 + $0xca0] sm:$0xff]
    %v520 = vld [vmem:[#allocation5 + $0xca8] sm:$0xff]
    %v521 = vld [vmem:[#allocation5 + $0xcb0] sm:$0xff]
    %v522 = vld [vmem:[#allocation5 + $0xcb8] sm:$0xff]
    %v523 = vld [vmem:[#allocation5 + $0xcc0] sm:$0xff]
    %v524 = vld [vmem:[#allocation5 + $0xcc8] sm:$0xff]
    %v525 = vld [vmem:[#allocation5 + $0xcd0] sm:$0xff]
    %v526 = vld [vmem:[#allocation5 + $0xcd8] sm:$0xff]
    %v527 = vld [vmem:[#allocation5 + $0xce0] sm:$0xff]
    %v528 = vld [vmem:[#allocation5 + $0xce8] sm:$0xff]
    %v529 = vld [vmem:[#allocation5 + $0xcf0] sm:$0xff]
    %v530 = vld [vmem:[#allocation5 + $0xcf8] sm:$0xff]
    %v531 = vld [vmem:[#allocation5 + $0xd00] sm:$0xff]
    %v532 = vld [vmem:[#allocation5 + $0xd08] sm:$0xff]
    %v533 = vld [vmem:[#allocation5 + $0xd10] sm:$0xff]
    %v534 = vld [vmem:[#allocation5 + $0xd18] sm:$0xff]
    %v535 = vld [vmem:[#allocation5 + $0xd20] sm:$0xff]
    %v536 = vld [vmem:[#allocation5 + $0xd28] sm:$0xff]
    %v537 = vld [vmem:[#allocation5 + $0xd30] sm:$0xff]
    %v538 = vld [vmem:[#allocation5 + $0xd38] sm:$0xff]
    %v539 = vld [vmem:[#allocation5 + $0xd40] sm:$0xff]
    %v540 = vld [vmem:[#allocation5 + $0xd48] sm:$0xff]
    %v541 = vld [vmem:[#allocation5 + $0xd50] sm:$0xff]
    %v542 = vld [vmem:[#allocation5 + $0xd58] sm:$0xff]
    %v543 = vld [vmem:[#allocation5 + $0xd60] sm:$0xff]
    %v544 = vld [vmem:[#allocation5 + $0xd68] sm:$0xff]
    %v545 = vld [vmem:[#allocation5 + $0xd70] sm:$0xff]
    %v546 = vld [vmem:[#allocation5 + $0xd78] sm:$0xff]
    %v547 = vld [vmem:[#allocation5 + $0xd80] sm:$0xff]
    %v548 = vld [vmem:[#allocation5 + $0xd88] sm:$0xff]
    %v549 = vld [vmem:[#allocation5 + $0xd90] sm:$0xff]
    %v550 = vld [vmem:[#allocation5 + $0xd98] sm:$0xff]
    %v551 = vld [vmem:[#allocation5 + $0xda0] sm:$0xff]
    %v552 = vld [vmem:[#allocation5 + $0xda8] sm:$0xff]
    %v553 = vld [vmem:[#allocation5 + $0xdb0] sm:$0xff]
    %v554 = vld [vmem:[#allocation5 + $0xdb8] sm:$0xff]
    %v555 = vld [vmem:[#allocation5 + $0xdc0] sm:$0xff]
    %v556 = vld [vmem:[#allocation5 + $0xdc8] sm:$0xff]
    %v557 = vld [vmem:[#allocation5 + $0xdd0] sm:$0xff]
    %v558 = vld [vmem:[#allocation5 + $0xdd8] sm:$0xff]
    %v559 = vld [vmem:[#allocation5 + $0xde0] sm:$0xff]
    %v560 = vld [vmem:[#allocation5 + $0xde8] sm:$0xff]
    %v561 = vld [vmem:[#allocation5 + $0xdf0] sm:$0xff]
    %v562 = vld [vmem:[#allocation5 + $0xdf8] sm:$0xff]
    %v563 = vld [vmem:[#allocation5 + $0xe00] sm:$0xff]
    %v564 = vld [vmem:[#allocation5 + $0xe08] sm:$0xff]
    %v565 = vld [vmem:[#allocation5 + $0xe10] sm:$0xff]
    %v566 = vld [vmem:[#allocation5 + $0xe18] sm:$0xff]
    %v567 = vld [vmem:[#allocation5 + $0xe20] sm:$0xff]
    %v568 = vld [vmem:[#allocation5 + $0xe28] sm:$0xff]
    %v569 = vld [vmem:[#allocation5 + $0xe30] sm:$0xff]
    %v570 = vld [vmem:[#allocation5 + $0xe38] sm:$0xff]
    %v571 = vld [vmem:[#allocation5 + $0xe40] sm:$0xff]
    %v572 = vld [vmem:[#allocation5 + $0xe48] sm:$0xff]
    %v573 = vld [vmem:[#allocation5 + $0xe50] sm:$0xff]
    %v574 = vld [vmem:[#allocation5 + $0xe58] sm:$0xff]
    %v575 = vld [vmem:[#allocation5 + $0xe60] sm:$0xff]
    %v576 = vld [vmem:[#allocation5 + $0xe68] sm:$0xff]
    %v577 = vld [vmem:[#allocation5 + $0xe70] sm:$0xff]
    %v578 = vld [vmem:[#allocation5 + $0xe78] sm:$0xff]
    %v579 = vld [vmem:[#allocation5 + $0xe80] sm:$0xff]
    %v580 = vld [vmem:[#allocation5 + $0xe88] sm:$0xff]
    %v581 = vld [vmem:[#allocation5 + $0xe90] sm:$0xff]
    %v582 = vld [vmem:[#allocation5 + $0xe98] sm:$0xff]
    %v583 = vld [vmem:[#allocation5 + $0xea0] sm:$0xff]
    %v584 = vld [vmem:[#allocation5 + $0xea8] sm:$0xff]
    %v585 = vld [vmem:[#allocation5 + $0xeb0] sm:$0xff]
    %v586 = vld [vmem:[#allocation5 + $0xeb8] sm:$0xff]
    %v587 = vld [vmem:[#allocation5 + $0xec0] sm:$0xff]
    %v588 = vld [vmem:[#allocation5 + $0xec8] sm:$0xff]
    %v589 = vld [vmem:[#allocation5 + $0xed0] sm:$0xff]
    %v590 = vld [vmem:[#allocation5 + $0xed8] sm:$0xff]
    %v591 = vld [vmem:[#allocation5 + $0xee0] sm:$0xff]
    %v592 = vld [vmem:[#allocation5 + $0xee8] sm:$0xff]
    %v593 = vld [vmem:[#allocation5 + $0xef0] sm:$0xff]
    %v594 = vld [vmem:[#allocation5 + $0xef8] sm:$0xff]
    %v595 = vld [vmem:[#allocation5 + $0xf00] sm:$0xff]
    %v596 = vld [vmem:[#allocation5 + $0xf08] sm:$0xff]
    %v597 = vld [vmem:[#allocation5 + $0xf10] sm:$0xff]
    %v598 = vld [vmem:[#allocation5 + $0xf18] sm:$0xff]
    %v599 = vld [vmem:[#allocation5 + $0xf20] sm:$0xff]
    %v600 = vld [vmem:[#allocation5 + $0xf28] sm:$0xff]
    %v601 = vld [vmem:[#allocation5 + $0xf30] sm:$0xff]
    %v602 = vld [vmem:[#allocation5 + $0xf38] sm:$0xff]
    %v603 = vld [vmem:[#allocation5 + $0xf40] sm:$0xff]
    %v604 = vld [vmem:[#allocation5 + $0xf48] sm:$0xff]
    %v605 = vld [vmem:[#allocation5 + $0xf50] sm:$0xff]
    %v606 = vld [vmem:[#allocation5 + $0xf58] sm:$0xff]
    %v607 = vld [vmem:[#allocation5 + $0xf60] sm:$0xff]
    %v608 = vld [vmem:[#allocation5 + $0xf68] sm:$0xff]
    %v609 = vld [vmem:[#allocation5 + $0xf70] sm:$0xff]
    %v610 = vld [vmem:[#allocation5 + $0xf78] sm:$0xff]
    %v611 = vld [vmem:[#allocation5 + $0xf80] sm:$0xff]
    %v612 = vld [vmem:[#allocation5 + $0xf88] sm:$0xff]
    %v613 = vld [vmem:[#allocation5 + $0xf90] sm:$0xff]
    %v614 = vld [vmem:[#allocation5 + $0xf98] sm:$0xff]
    %v615 = vld [vmem:[#allocation5 + $0xfa0] sm:$0xff]
    %v616 = vld [vmem:[#allocation5 + $0xfa8] sm:$0xff]
    %v617 = vld [vmem:[#allocation5 + $0xfb0] sm:$0xff]
    %v618 = vld [vmem:[#allocation5 + $0xfb8] sm:$0xff]
    %v619 = vld [vmem:[#allocation5 + $0xfc0] sm:$0xff]
    %v620 = vld [vmem:[#allocation5 + $0xfc8] sm:$0xff]
    %v621 = vld [vmem:[#allocation5 + $0xfd0] sm:$0xff]
    %v622 = vld [vmem:[#allocation5 + $0xfd8] sm:$0xff]
    %v623 = vld [vmem:[#allocation5 + $0xfe0] sm:$0xff]
    %v624 = vld [vmem:[#allocation5 + $0xfe8] sm:$0xff]
    %v625 = vld [vmem:[#allocation5 + $0xff0] sm:$0xff]
    %v626 = vld [vmem:[#allocation5 + $0xff8] sm:$0xff]
    %v1139 = vunpack.c.l.b16 %v115
    %v1140 = vunpack.c.h.b16 %v115
    %v1141 = vunpack.c.l.b16 %v116
    %v1142 = vunpack.c.h.b16 %v116
    %v1143 = vunpack.c.l.b16 %v117
    %v1144 = vunpack.c.h.b16 %v117
    %v1145 = vunpack.c.l.b16 %v118
    %v1146 = vunpack.c.h.b16 %v118
    %v1147 = vunpack.c.l.b16 %v119
    %v1148 = vunpack.c.h.b16 %v119
    %v1149 = vunpack.c.l.b16 %v120
    %v1150 = vunpack.c.h.b16 %v120
    %v1151 = vunpack.c.l.b16 %v121
    %v1152 = vunpack.c.h.b16 %v121
    %v1153 = vunpack.c.l.b16 %v122
    %v1154 = vunpack.c.h.b16 %v122
    %v1155 = vunpack.c.l.b16 %v123
    %v1156 = vunpack.c.h.b16 %v123
    %v1157 = vunpack.c.l.b16 %v124
    %v1158 = vunpack.c.h.b16 %v124
    %v1159 = vunpack.c.l.b16 %v125
    %v1160 = vunpack.c.h.b16 %v125
    %v1161 = vunpack.c.l.b16 %v126
    %v1162 = vunpack.c.h.b16 %v126
    %v1163 = vunpack.c.l.b16 %v127
    %v1164 = vunpack.c.h.b16 %v127
    %v1165 = vunpack.c.l.b16 %v128
    %v1166 = vunpack.c.h.b16 %v128
    %v1167 = vunpack.c.l.b16 %v129
    %v1168 = vunpack.c.h.b16 %v129
    %v1169 = vunpack.c.l.b16 %v130
    %v1170 = vunpack.c.h.b16 %v130
    %v1171 = vunpack.c.l.b16 %v131
    %v1172 = vunpack.c.h.b16 %v131
    %v1173 = vunpack.c.l.b16 %v132
    %v1174 = vunpack.c.h.b16 %v132
    %v1175 = vunpack.c.l.b16 %v133
    %v1176 = vunpack.c.h.b16 %v133
    %v1177 = vunpack.c.l.b16 %v134
    %v1178 = vunpack.c.h.b16 %v134
    %v1179 = vunpack.c.l.b16 %v135
    %v1180 = vunpack.c.h.b16 %v135
    %v1181 = vunpack.c.l.b16 %v136
    %v1182 = vunpack.c.h.b16 %v136
    %v1183 = vunpack.c.l.b16 %v137
    %v1184 = vunpack.c.h.b16 %v137
    %v1185 = vunpack.c.l.b16 %v138
    %v1186 = vunpack.c.h.b16 %v138
    %v1187 = vunpack.c.l.b16 %v139
    %v1188 = vunpack.c.h.b16 %v139
    %v1189 = vunpack.c.l.b16 %v140
    %v1190 = vunpack.c.h.b16 %v140
    %v1191 = vunpack.c.l.b16 %v141
    %v1192 = vunpack.c.h.b16 %v141
    %v1193 = vunpack.c.l.b16 %v142
    %v1194 = vunpack.c.h.b16 %v142
    %v1195 = vunpack.c.l.b16 %v143
    %v1196 = vunpack.c.h.b16 %v143
    %v1197 = vunpack.c.l.b16 %v144
    %v1198 = vunpack.c.h.b16 %v144
    %v1199 = vunpack.c.l.b16 %v145
    %v1200 = vunpack.c.h.b16 %v145
    %v1201 = vunpack.c.l.b16 %v146
    %v1202 = vunpack.c.h.b16 %v146
    %v1203 = vunpack.c.l.b16 %v147
    %v1204 = vunpack.c.h.b16 %v147
    %v1205 = vunpack.c.l.b16 %v148
    %v1206 = vunpack.c.h.b16 %v148
    %v1207 = vunpack.c.l.b16 %v149
    %v1208 = vunpack.c.h.b16 %v149
    %v1209 = vunpack.c.l.b16 %v150
    %v1210 = vunpack.c.h.b16 %v150
    %v1211 = vunpack.c.l.b16 %v151
    %v1212 = vunpack.c.h.b16 %v151
    %v1213 = vunpack.c.l.b16 %v152
    %v1214 = vunpack.c.h.b16 %v152
    %v1215 = vunpack.c.l.b16 %v153
    %v1216 = vunpack.c.h.b16 %v153
    %v1217 = vunpack.c.l.b16 %v154
    %v1218 = vunpack.c.h.b16 %v154
    %v1219 = vunpack.c.l.b16 %v155
    %v1220 = vunpack.c.h.b16 %v155
    %v1221 = vunpack.c.l.b16 %v156
    %v1222 = vunpack.c.h.b16 %v156
    %v1223 = vunpack.c.l.b16 %v157
    %v1224 = vunpack.c.h.b16 %v157
    %v1225 = vunpack.c.l.b16 %v158
    %v1226 = vunpack.c.h.b16 %v158
    %v1227 = vunpack.c.l.b16 %v159
    %v1228 = vunpack.c.h.b16 %v159
    %v1229 = vunpack.c.l.b16 %v160
    %v1230 = vunpack.c.h.b16 %v160
    %v1231 = vunpack.c.l.b16 %v161
    %v1232 = vunpack.c.h.b16 %v161
    %v1233 = vunpack.c.l.b16 %v162
    %v1234 = vunpack.c.h.b16 %v162
    %v1235 = vunpack.c.l.b16 %v163
    %v1236 = vunpack.c.h.b16 %v163
    %v1237 = vunpack.c.l.b16 %v164
    %v1238 = vunpack.c.h.b16 %v164
    %v1239 = vunpack.c.l.b16 %v165
    %v1240 = vunpack.c.h.b16 %v165
    %v1241 = vunpack.c.l.b16 %v166
    %v1242 = vunpack.c.h.b16 %v166
    %v1243 = vunpack.c.l.b16 %v167
    %v1244 = vunpack.c.h.b16 %v167
    %v1245 = vunpack.c.l.b16 %v168
    %v1246 = vunpack.c.h.b16 %v168
    %v1247 = vunpack.c.l.b16 %v169
    %v1248 = vunpack.c.h.b16 %v169
    %v1249 = vunpack.c.l.b16 %v170
    %v1250 = vunpack.c.h.b16 %v170
    %v1251 = vunpack.c.l.b16 %v171
    %v1252 = vunpack.c.h.b16 %v171
    %v1253 = vunpack.c.l.b16 %v172
    %v1254 = vunpack.c.h.b16 %v172
    %v1255 = vunpack.c.l.b16 %v173
    %v1256 = vunpack.c.h.b16 %v173
    %v1257 = vunpack.c.l.b16 %v174
    %v1258 = vunpack.c.h.b16 %v174
    %v1259 = vunpack.c.l.b16 %v175
    %v1260 = vunpack.c.h.b16 %v175
    %v1261 = vunpack.c.l.b16 %v176
    %v1262 = vunpack.c.h.b16 %v176
    %v1263 = vunpack.c.l.b16 %v177
    %v1264 = vunpack.c.h.b16 %v177
    %v1265 = vunpack.c.l.b16 %v178
    %v1266 = vunpack.c.h.b16 %v178
    %v1267 = vunpack.c.l.b16 %v179
    %v1268 = vunpack.c.h.b16 %v179
    %v1269 = vunpack.c.l.b16 %v180
    %v1270 = vunpack.c.h.b16 %v180
    %v1271 = vunpack.c.l.b16 %v181
    %v1272 = vunpack.c.h.b16 %v181
    %v1273 = vunpack.c.l.b16 %v182
    %v1274 = vunpack.c.h.b16 %v182
    %v1275 = vunpack.c.l.b16 %v183
    %v1276 = vunpack.c.h.b16 %v183
    %v1277 = vunpack.c.l.b16 %v184
    %v1278 = vunpack.c.h.b16 %v184
    %v1279 = vunpack.c.l.b16 %v185
    %v1280 = vunpack.c.h.b16 %v185
    %v1281 = vunpack.c.l.b16 %v186
    %v1282 = vunpack.c.h.b16 %v186
    %v1283 = vunpack.c.l.b16 %v187
    %v1284 = vunpack.c.h.b16 %v187
    %v1285 = vunpack.c.l.b16 %v188
    %v1286 = vunpack.c.h.b16 %v188
    %v1287 = vunpack.c.l.b16 %v189
    %v1288 = vunpack.c.h.b16 %v189
    %v1289 = vunpack.c.l.b16 %v190
    %v1290 = vunpack.c.h.b16 %v190
    %v1291 = vunpack.c.l.b16 %v191
    %v1292 = vunpack.c.h.b16 %v191
    %v1293 = vunpack.c.l.b16 %v192
    %v1294 = vunpack.c.h.b16 %v192
    %v1295 = vunpack.c.l.b16 %v193
    %v1296 = vunpack.c.h.b16 %v193
    %v1297 = vunpack.c.l.b16 %v194
    %v1298 = vunpack.c.h.b16 %v194
    %v1299 = vunpack.c.l.b16 %v195
    %v1300 = vunpack.c.h.b16 %v195
    %v1301 = vunpack.c.l.b16 %v196
    %v1302 = vunpack.c.h.b16 %v196
    %v1303 = vunpack.c.l.b16 %v197
    %v1304 = vunpack.c.h.b16 %v197
    %v1305 = vunpack.c.l.b16 %v198
    %v1306 = vunpack.c.h.b16 %v198
    %v1307 = vunpack.c.l.b16 %v199
    %v1308 = vunpack.c.h.b16 %v199
    %v1309 = vunpack.c.l.b16 %v200
    %v1310 = vunpack.c.h.b16 %v200
    %v1311 = vunpack.c.l.b16 %v201
    %v1312 = vunpack.c.h.b16 %v201
    %v1313 = vunpack.c.l.b16 %v202
    %v1314 = vunpack.c.h.b16 %v202
    %v1315 = vunpack.c.l.b16 %v203
    %v1316 = vunpack.c.h.b16 %v203
    %v1317 = vunpack.c.l.b16 %v204
    %v1318 = vunpack.c.h.b16 %v204
    %v1319 = vunpack.c.l.b16 %v205
    %v1320 = vunpack.c.h.b16 %v205
    %v1321 = vunpack.c.l.b16 %v206
    %v1322 = vunpack.c.h.b16 %v206
    %v1323 = vunpack.c.l.b16 %v207
    %v1324 = vunpack.c.h.b16 %v207
    %v1325 = vunpack.c.l.b16 %v208
    %v1326 = vunpack.c.h.b16 %v208
    %v1327 = vunpack.c.l.b16 %v209
    %v1328 = vunpack.c.h.b16 %v209
    %v1329 = vunpack.c.l.b16 %v210
    %v1330 = vunpack.c.h.b16 %v210
    %v1331 = vunpack.c.l.b16 %v211
    %v1332 = vunpack.c.h.b16 %v211
    %v1333 = vunpack.c.l.b16 %v212
    %v1334 = vunpack.c.h.b16 %v212
    %v1335 = vunpack.c.l.b16 %v213
    %v1336 = vunpack.c.h.b16 %v213
    %v1337 = vunpack.c.l.b16 %v214
    %v1338 = vunpack.c.h.b16 %v214
    %v1339 = vunpack.c.l.b16 %v215
    %v1340 = vunpack.c.h.b16 %v215
    %v1341 = vunpack.c.l.b16 %v216
    %v1342 = vunpack.c.h.b16 %v216
    %v1343 = vunpack.c.l.b16 %v217
    %v1344 = vunpack.c.h.b16 %v217
    %v1345 = vunpack.c.l.b16 %v218
    %v1346 = vunpack.c.h.b16 %v218
    %v1347 = vunpack.c.l.b16 %v219
    %v1348 = vunpack.c.h.b16 %v219
    %v1349 = vunpack.c.l.b16 %v220
    %v1350 = vunpack.c.h.b16 %v220
    %v1351 = vunpack.c.l.b16 %v221
    %v1352 = vunpack.c.h.b16 %v221
    %v1353 = vunpack.c.l.b16 %v222
    %v1354 = vunpack.c.h.b16 %v222
    %v1355 = vunpack.c.l.b16 %v223
    %v1356 = vunpack.c.h.b16 %v223
    %v1357 = vunpack.c.l.b16 %v224
    %v1358 = vunpack.c.h.b16 %v224
    %v1359 = vunpack.c.l.b16 %v225
    %v1360 = vunpack.c.h.b16 %v225
    %v1361 = vunpack.c.l.b16 %v226
    %v1362 = vunpack.c.h.b16 %v226
    %v1363 = vunpack.c.l.b16 %v227
    %v1364 = vunpack.c.h.b16 %v227
    %v1365 = vunpack.c.l.b16 %v228
    %v1366 = vunpack.c.h.b16 %v228
    %v1367 = vunpack.c.l.b16 %v229
    %v1368 = vunpack.c.h.b16 %v229
    %v1369 = vunpack.c.l.b16 %v230
    %v1370 = vunpack.c.h.b16 %v230
    %v1371 = vunpack.c.l.b16 %v231
    %v1372 = vunpack.c.h.b16 %v231
    %v1373 = vunpack.c.l.b16 %v232
    %v1374 = vunpack.c.h.b16 %v232
    %v1375 = vunpack.c.l.b16 %v233
    %v1376 = vunpack.c.h.b16 %v233
    %v1377 = vunpack.c.l.b16 %v234
    %v1378 = vunpack.c.h.b16 %v234
    %v1379 = vunpack.c.l.b16 %v235
    %v1380 = vunpack.c.h.b16 %v235
    %v1381 = vunpack.c.l.b16 %v236
    %v1382 = vunpack.c.h.b16 %v236
    %v1383 = vunpack.c.l.b16 %v237
    %v1384 = vunpack.c.h.b16 %v237
    %v1385 = vunpack.c.l.b16 %v238
    %v1386 = vunpack.c.h.b16 %v238
    %v1387 = vunpack.c.l.b16 %v239
    %v1388 = vunpack.c.h.b16 %v239
    %v1389 = vunpack.c.l.b16 %v240
    %v1390 = vunpack.c.h.b16 %v240
    %v1391 = vunpack.c.l.b16 %v241
    %v1392 = vunpack.c.h.b16 %v241
    %v1393 = vunpack.c.l.b16 %v242
    %v1394 = vunpack.c.h.b16 %v242
    %v1395 = vunpack.c.l.b16 %v243
    %v1396 = vunpack.c.h.b16 %v243
    %v1397 = vunpack.c.l.b16 %v244
    %v1398 = vunpack.c.h.b16 %v244
    %v1399 = vunpack.c.l.b16 %v245
    %v1400 = vunpack.c.h.b16 %v245
    %v1401 = vunpack.c.l.b16 %v246
    %v1402 = vunpack.c.h.b16 %v246
    %v1403 = vunpack.c.l.b16 %v247
    %v1404 = vunpack.c.h.b16 %v247
    %v1405 = vunpack.c.l.b16 %v248
    %v1406 = vunpack.c.h.b16 %v248
    %v1407 = vunpack.c.l.b16 %v249
    %v1408 = vunpack.c.h.b16 %v249
    %v1409 = vunpack.c.l.b16 %v250
    %v1410 = vunpack.c.h.b16 %v250
    %v1411 = vunpack.c.l.b16 %v251
    %v1412 = vunpack.c.h.b16 %v251
    %v1413 = vunpack.c.l.b16 %v252
    %v1414 = vunpack.c.h.b16 %v252
    %v1415 = vunpack.c.l.b16 %v253
    %v1416 = vunpack.c.h.b16 %v253
    %v1417 = vunpack.c.l.b16 %v254
    %v1418 = vunpack.c.h.b16 %v254
    %v1419 = vunpack.c.l.b16 %v255
    %v1420 = vunpack.c.h.b16 %v255
    %v1421 = vunpack.c.l.b16 %v256
    %v1422 = vunpack.c.h.b16 %v256
    %v1423 = vunpack.c.l.b16 %v257
    %v1424 = vunpack.c.h.b16 %v257
    %v1425 = vunpack.c.l.b16 %v258
    %v1426 = vunpack.c.h.b16 %v258
    %v1427 = vunpack.c.l.b16 %v259
    %v1428 = vunpack.c.h.b16 %v259
    %v1429 = vunpack.c.l.b16 %v260
    %v1430 = vunpack.c.h.b16 %v260
    %v1431 = vunpack.c.l.b16 %v261
    %v1432 = vunpack.c.h.b16 %v261
    %v1433 = vunpack.c.l.b16 %v262
    %v1434 = vunpack.c.h.b16 %v262
    %v1435 = vunpack.c.l.b16 %v263
    %v1436 = vunpack.c.h.b16 %v263
    %v1437 = vunpack.c.l.b16 %v264
    %v1438 = vunpack.c.h.b16 %v264
    %v1439 = vunpack.c.l.b16 %v265
    %v1440 = vunpack.c.h.b16 %v265
    %v1441 = vunpack.c.l.b16 %v266
    %v1442 = vunpack.c.h.b16 %v266
    %v1443 = vunpack.c.l.b16 %v267
    %v1444 = vunpack.c.h.b16 %v267
    %v1445 = vunpack.c.l.b16 %v268
    %v1446 = vunpack.c.h.b16 %v268
    %v1447 = vunpack.c.l.b16 %v269
    %v1448 = vunpack.c.h.b16 %v269
    %v1449 = vunpack.c.l.b16 %v270
    %v1450 = vunpack.c.h.b16 %v270
    %v1451 = vunpack.c.l.b16 %v271
    %v1452 = vunpack.c.h.b16 %v271
    %v1453 = vunpack.c.l.b16 %v272
    %v1454 = vunpack.c.h.b16 %v272
    %v1455 = vunpack.c.l.b16 %v273
    %v1456 = vunpack.c.h.b16 %v273
    %v1457 = vunpack.c.l.b16 %v274
    %v1458 = vunpack.c.h.b16 %v274
    %v1459 = vunpack.c.l.b16 %v275
    %v1460 = vunpack.c.h.b16 %v275
    %v1461 = vunpack.c.l.b16 %v276
    %v1462 = vunpack.c.h.b16 %v276
    %v1463 = vunpack.c.l.b16 %v277
    %v1464 = vunpack.c.h.b16 %v277
    %v1465 = vunpack.c.l.b16 %v278
    %v1466 = vunpack.c.h.b16 %v278
    %v1467 = vunpack.c.l.b16 %v279
    %v1468 = vunpack.c.h.b16 %v279
    %v1469 = vunpack.c.l.b16 %v280
    %v1470 = vunpack.c.h.b16 %v280
    %v1471 = vunpack.c.l.b16 %v281
    %v1472 = vunpack.c.h.b16 %v281
    %v1473 = vunpack.c.l.b16 %v282
    %v1474 = vunpack.c.h.b16 %v282
    %v1475 = vunpack.c.l.b16 %v283
    %v1476 = vunpack.c.h.b16 %v283
    %v1477 = vunpack.c.l.b16 %v284
    %v1478 = vunpack.c.h.b16 %v284
    %v1479 = vunpack.c.l.b16 %v285
    %v1480 = vunpack.c.h.b16 %v285
    %v1481 = vunpack.c.l.b16 %v286
    %v1482 = vunpack.c.h.b16 %v286
    %v1483 = vunpack.c.l.b16 %v287
    %v1484 = vunpack.c.h.b16 %v287
    %v1485 = vunpack.c.l.b16 %v288
    %v1486 = vunpack.c.h.b16 %v288
    %v1487 = vunpack.c.l.b16 %v289
    %v1488 = vunpack.c.h.b16 %v289
    %v1489 = vunpack.c.l.b16 %v290
    %v1490 = vunpack.c.h.b16 %v290
    %v1491 = vunpack.c.l.b16 %v291
    %v1492 = vunpack.c.h.b16 %v291
    %v1493 = vunpack.c.l.b16 %v292
    %v1494 = vunpack.c.h.b16 %v292
    %v1495 = vunpack.c.l.b16 %v293
    %v1496 = vunpack.c.h.b16 %v293
    %v1497 = vunpack.c.l.b16 %v294
    %v1498 = vunpack.c.h.b16 %v294
    %v1499 = vunpack.c.l.b16 %v295
    %v1500 = vunpack.c.h.b16 %v295
    %v1501 = vunpack.c.l.b16 %v296
    %v1502 = vunpack.c.h.b16 %v296
    %v1503 = vunpack.c.l.b16 %v297
    %v1504 = vunpack.c.h.b16 %v297
    %v1505 = vunpack.c.l.b16 %v298
    %v1506 = vunpack.c.h.b16 %v298
    %v1507 = vunpack.c.l.b16 %v299
    %v1508 = vunpack.c.h.b16 %v299
    %v1509 = vunpack.c.l.b16 %v300
    %v1510 = vunpack.c.h.b16 %v300
    %v1511 = vunpack.c.l.b16 %v301
    %v1512 = vunpack.c.h.b16 %v301
    %v1513 = vunpack.c.l.b16 %v302
    %v1514 = vunpack.c.h.b16 %v302
    %v1515 = vunpack.c.l.b16 %v303
    %v1516 = vunpack.c.h.b16 %v303
    %v1517 = vunpack.c.l.b16 %v304
    %v1518 = vunpack.c.h.b16 %v304
    %v1519 = vunpack.c.l.b16 %v305
    %v1520 = vunpack.c.h.b16 %v305
    %v1521 = vunpack.c.l.b16 %v306
    %v1522 = vunpack.c.h.b16 %v306
    %v1523 = vunpack.c.l.b16 %v307
    %v1524 = vunpack.c.h.b16 %v307
    %v1525 = vunpack.c.l.b16 %v308
    %v1526 = vunpack.c.h.b16 %v308
    %v1527 = vunpack.c.l.b16 %v309
    %v1528 = vunpack.c.h.b16 %v309
    %v1529 = vunpack.c.l.b16 %v310
    %v1530 = vunpack.c.h.b16 %v310
    %v1531 = vunpack.c.l.b16 %v311
    %v1532 = vunpack.c.h.b16 %v311
    %v1533 = vunpack.c.l.b16 %v312
    %v1534 = vunpack.c.h.b16 %v312
    %v1535 = vunpack.c.l.b16 %v313
    %v1536 = vunpack.c.h.b16 %v313
    %v1537 = vunpack.c.l.b16 %v314
    %v1538 = vunpack.c.h.b16 %v314
    %v1539 = vunpack.c.l.b16 %v315
    %v1540 = vunpack.c.h.b16 %v315
    %v1541 = vunpack.c.l.b16 %v316
    %v1542 = vunpack.c.h.b16 %v316
    %v1543 = vunpack.c.l.b16 %v317
    %v1544 = vunpack.c.h.b16 %v317
    %v1545 = vunpack.c.l.b16 %v318
    %v1546 = vunpack.c.h.b16 %v318
    %v1547 = vunpack.c.l.b16 %v319
    %v1548 = vunpack.c.h.b16 %v319
    %v1549 = vunpack.c.l.b16 %v320
    %v1550 = vunpack.c.h.b16 %v320
    %v1551 = vunpack.c.l.b16 %v321
    %v1552 = vunpack.c.h.b16 %v321
    %v1553 = vunpack.c.l.b16 %v322
    %v1554 = vunpack.c.h.b16 %v322
    %v1555 = vunpack.c.l.b16 %v323
    %v1556 = vunpack.c.h.b16 %v323
    %v1557 = vunpack.c.l.b16 %v324
    %v1558 = vunpack.c.h.b16 %v324
    %v1559 = vunpack.c.l.b16 %v325
    %v1560 = vunpack.c.h.b16 %v325
    %v1561 = vunpack.c.l.b16 %v326
    %v1562 = vunpack.c.h.b16 %v326
    %v1563 = vunpack.c.l.b16 %v327
    %v1564 = vunpack.c.h.b16 %v327
    %v1565 = vunpack.c.l.b16 %v328
    %v1566 = vunpack.c.h.b16 %v328
    %v1567 = vunpack.c.l.b16 %v329
    %v1568 = vunpack.c.h.b16 %v329
    %v1569 = vunpack.c.l.b16 %v330
    %v1570 = vunpack.c.h.b16 %v330
    %v1571 = vunpack.c.l.b16 %v331
    %v1572 = vunpack.c.h.b16 %v331
    %v1573 = vunpack.c.l.b16 %v332
    %v1574 = vunpack.c.h.b16 %v332
    %v1575 = vunpack.c.l.b16 %v333
    %v1576 = vunpack.c.h.b16 %v333
    %v1577 = vunpack.c.l.b16 %v334
    %v1578 = vunpack.c.h.b16 %v334
    %v1579 = vunpack.c.l.b16 %v335
    %v1580 = vunpack.c.h.b16 %v335
    %v1581 = vunpack.c.l.b16 %v336
    %v1582 = vunpack.c.h.b16 %v336
    %v1583 = vunpack.c.l.b16 %v337
    %v1584 = vunpack.c.h.b16 %v337
    %v1585 = vunpack.c.l.b16 %v338
    %v1586 = vunpack.c.h.b16 %v338
    %v1587 = vunpack.c.l.b16 %v339
    %v1588 = vunpack.c.h.b16 %v339
    %v1589 = vunpack.c.l.b16 %v340
    %v1590 = vunpack.c.h.b16 %v340
    %v1591 = vunpack.c.l.b16 %v341
    %v1592 = vunpack.c.h.b16 %v341
    %v1593 = vunpack.c.l.b16 %v342
    %v1594 = vunpack.c.h.b16 %v342
    %v1595 = vunpack.c.l.b16 %v343
    %v1596 = vunpack.c.h.b16 %v343
    %v1597 = vunpack.c.l.b16 %v344
    %v1598 = vunpack.c.h.b16 %v344
    %v1599 = vunpack.c.l.b16 %v345
    %v1600 = vunpack.c.h.b16 %v345
    %v1601 = vunpack.c.l.b16 %v346
    %v1602 = vunpack.c.h.b16 %v346
    %v1603 = vunpack.c.l.b16 %v347
    %v1604 = vunpack.c.h.b16 %v347
    %v1605 = vunpack.c.l.b16 %v348
    %v1606 = vunpack.c.h.b16 %v348
    %v1607 = vunpack.c.l.b16 %v349
    %v1608 = vunpack.c.h.b16 %v349
    %v1609 = vunpack.c.l.b16 %v350
    %v1610 = vunpack.c.h.b16 %v350
    %v1611 = vunpack.c.l.b16 %v351
    %v1612 = vunpack.c.h.b16 %v351
    %v1613 = vunpack.c.l.b16 %v352
    %v1614 = vunpack.c.h.b16 %v352
    %v1615 = vunpack.c.l.b16 %v353
    %v1616 = vunpack.c.h.b16 %v353
    %v1617 = vunpack.c.l.b16 %v354
    %v1618 = vunpack.c.h.b16 %v354
    %v1619 = vunpack.c.l.b16 %v355
    %v1620 = vunpack.c.h.b16 %v355
    %v1621 = vunpack.c.l.b16 %v356
    %v1622 = vunpack.c.h.b16 %v356
    %v1623 = vunpack.c.l.b16 %v357
    %v1624 = vunpack.c.h.b16 %v357
    %v1625 = vunpack.c.l.b16 %v358
    %v1626 = vunpack.c.h.b16 %v358
    %v1627 = vunpack.c.l.b16 %v359
    %v1628 = vunpack.c.h.b16 %v359
    %v1629 = vunpack.c.l.b16 %v360
    %v1630 = vunpack.c.h.b16 %v360
    %v1631 = vunpack.c.l.b16 %v361
    %v1632 = vunpack.c.h.b16 %v361
    %v1633 = vunpack.c.l.b16 %v362
    %v1634 = vunpack.c.h.b16 %v362
    %v1635 = vunpack.c.l.b16 %v363
    %v1636 = vunpack.c.h.b16 %v363
    %v1637 = vunpack.c.l.b16 %v364
    %v1638 = vunpack.c.h.b16 %v364
    %v1639 = vunpack.c.l.b16 %v365
    %v1640 = vunpack.c.h.b16 %v365
    %v1641 = vunpack.c.l.b16 %v366
    %v1642 = vunpack.c.h.b16 %v366
    %v1643 = vunpack.c.l.b16 %v367
    %v1644 = vunpack.c.h.b16 %v367
    %v1645 = vunpack.c.l.b16 %v368
    %v1646 = vunpack.c.h.b16 %v368
    %v1647 = vunpack.c.l.b16 %v369
    %v1648 = vunpack.c.h.b16 %v369
    %v1649 = vunpack.c.l.b16 %v370
    %v1650 = vunpack.c.h.b16 %v370
    %v1651 = vunpack.c.l.b16 %v371
    %v1652 = vunpack.c.h.b16 %v371
    %v1653 = vunpack.c.l.b16 %v372
    %v1654 = vunpack.c.h.b16 %v372
    %v1655 = vunpack.c.l.b16 %v373
    %v1656 = vunpack.c.h.b16 %v373
    %v1657 = vunpack.c.l.b16 %v374
    %v1658 = vunpack.c.h.b16 %v374
    %v1659 = vunpack.c.l.b16 %v375
    %v1660 = vunpack.c.h.b16 %v375
    %v1661 = vunpack.c.l.b16 %v376
    %v1662 = vunpack.c.h.b16 %v376
    %v1663 = vunpack.c.l.b16 %v377
    %v1664 = vunpack.c.h.b16 %v377
    %v1665 = vunpack.c.l.b16 %v378
    %v1666 = vunpack.c.h.b16 %v378
    %v1667 = vunpack.c.l.b16 %v379
    %v1668 = vunpack.c.h.b16 %v379
    %v1669 = vunpack.c.l.b16 %v380
    %v1670 = vunpack.c.h.b16 %v380
    %v1671 = vunpack.c.l.b16 %v381
    %v1672 = vunpack.c.h.b16 %v381
    %v1673 = vunpack.c.l.b16 %v382
    %v1674 = vunpack.c.h.b16 %v382
    %v1675 = vunpack.c.l.b16 %v383
    %v1676 = vunpack.c.h.b16 %v383
    %v1677 = vunpack.c.l.b16 %v384
    %v1678 = vunpack.c.h.b16 %v384
    %v1679 = vunpack.c.l.b16 %v385
    %v1680 = vunpack.c.h.b16 %v385
    %v1681 = vunpack.c.l.b16 %v386
    %v1682 = vunpack.c.h.b16 %v386
    %v1683 = vunpack.c.l.b16 %v387
    %v1684 = vunpack.c.h.b16 %v387
    %v1685 = vunpack.c.l.b16 %v388
    %v1686 = vunpack.c.h.b16 %v388
    %v1687 = vunpack.c.l.b16 %v389
    %v1688 = vunpack.c.h.b16 %v389
    %v1689 = vunpack.c.l.b16 %v390
    %v1690 = vunpack.c.h.b16 %v390
    %v1691 = vunpack.c.l.b16 %v391
    %v1692 = vunpack.c.h.b16 %v391
    %v1693 = vunpack.c.l.b16 %v392
    %v1694 = vunpack.c.h.b16 %v392
    %v1695 = vunpack.c.l.b16 %v393
    %v1696 = vunpack.c.h.b16 %v393
    %v1697 = vunpack.c.l.b16 %v394
    %v1698 = vunpack.c.h.b16 %v394
    %v1699 = vunpack.c.l.b16 %v395
    %v1700 = vunpack.c.h.b16 %v395
    %v1701 = vunpack.c.l.b16 %v396
    %v1702 = vunpack.c.h.b16 %v396
    %v1703 = vunpack.c.l.b16 %v397
    %v1704 = vunpack.c.h.b16 %v397
    %v1705 = vunpack.c.l.b16 %v398
    %v1706 = vunpack.c.h.b16 %v398
    %v1707 = vunpack.c.l.b16 %v399
    %v1708 = vunpack.c.h.b16 %v399
    %v1709 = vunpack.c.l.b16 %v400
    %v1710 = vunpack.c.h.b16 %v400
    %v1711 = vunpack.c.l.b16 %v401
    %v1712 = vunpack.c.h.b16 %v401
    %v1713 = vunpack.c.l.b16 %v402
    %v1714 = vunpack.c.h.b16 %v402
    %v1715 = vunpack.c.l.b16 %v403
    %v1716 = vunpack.c.h.b16 %v403
    %v1717 = vunpack.c.l.b16 %v404
    %v1718 = vunpack.c.h.b16 %v404
    %v1719 = vunpack.c.l.b16 %v405
    %v1720 = vunpack.c.h.b16 %v405
    %v1721 = vunpack.c.l.b16 %v406
    %v1722 = vunpack.c.h.b16 %v406
    %v1723 = vunpack.c.l.b16 %v407
    %v1724 = vunpack.c.h.b16 %v407
    %v1725 = vunpack.c.l.b16 %v408
    %v1726 = vunpack.c.h.b16 %v408
    %v1727 = vunpack.c.l.b16 %v409
    %v1728 = vunpack.c.h.b16 %v409
    %v1729 = vunpack.c.l.b16 %v410
    %v1730 = vunpack.c.h.b16 %v410
    %v1731 = vunpack.c.l.b16 %v411
    %v1732 = vunpack.c.h.b16 %v411
    %v1733 = vunpack.c.l.b16 %v412
    %v1734 = vunpack.c.h.b16 %v412
    %v1735 = vunpack.c.l.b16 %v413
    %v1736 = vunpack.c.h.b16 %v413
    %v1737 = vunpack.c.l.b16 %v414
    %v1738 = vunpack.c.h.b16 %v414
    %v1739 = vunpack.c.l.b16 %v415
    %v1740 = vunpack.c.h.b16 %v415
    %v1741 = vunpack.c.l.b16 %v416
    %v1742 = vunpack.c.h.b16 %v416
    %v1743 = vunpack.c.l.b16 %v417
    %v1744 = vunpack.c.h.b16 %v417
    %v1745 = vunpack.c.l.b16 %v418
    %v1746 = vunpack.c.h.b16 %v418
    %v1747 = vunpack.c.l.b16 %v419
    %v1748 = vunpack.c.h.b16 %v419
    %v1749 = vunpack.c.l.b16 %v420
    %v1750 = vunpack.c.h.b16 %v420
    %v1751 = vunpack.c.l.b16 %v421
    %v1752 = vunpack.c.h.b16 %v421
    %v1753 = vunpack.c.l.b16 %v422
    %v1754 = vunpack.c.h.b16 %v422
    %v1755 = vunpack.c.l.b16 %v423
    %v1756 = vunpack.c.h.b16 %v423
    %v1757 = vunpack.c.l.b16 %v424
    %v1758 = vunpack.c.h.b16 %v424
    %v1759 = vunpack.c.l.b16 %v425
    %v1760 = vunpack.c.h.b16 %v425
    %v1761 = vunpack.c.l.b16 %v426
    %v1762 = vunpack.c.h.b16 %v426
    %v1763 = vunpack.c.l.b16 %v427
    %v1764 = vunpack.c.h.b16 %v427
    %v1765 = vunpack.c.l.b16 %v428
    %v1766 = vunpack.c.h.b16 %v428
    %v1767 = vunpack.c.l.b16 %v429
    %v1768 = vunpack.c.h.b16 %v429
    %v1769 = vunpack.c.l.b16 %v430
    %v1770 = vunpack.c.h.b16 %v430
    %v1771 = vunpack.c.l.b16 %v431
    %v1772 = vunpack.c.h.b16 %v431
    %v1773 = vunpack.c.l.b16 %v432
    %v1774 = vunpack.c.h.b16 %v432
    %v1775 = vunpack.c.l.b16 %v433
    %v1776 = vunpack.c.h.b16 %v433
    %v1777 = vunpack.c.l.b16 %v434
    %v1778 = vunpack.c.h.b16 %v434
    %v1779 = vunpack.c.l.b16 %v435
    %v1780 = vunpack.c.h.b16 %v435
    %v1781 = vunpack.c.l.b16 %v436
    %v1782 = vunpack.c.h.b16 %v436
    %v1783 = vunpack.c.l.b16 %v437
    %v1784 = vunpack.c.h.b16 %v437
    %v1785 = vunpack.c.l.b16 %v438
    %v1786 = vunpack.c.h.b16 %v438
    %v1787 = vunpack.c.l.b16 %v439
    %v1788 = vunpack.c.h.b16 %v439
    %v1789 = vunpack.c.l.b16 %v440
    %v1790 = vunpack.c.h.b16 %v440
    %v1791 = vunpack.c.l.b16 %v441
    %v1792 = vunpack.c.h.b16 %v441
    %v1793 = vunpack.c.l.b16 %v442
    %v1794 = vunpack.c.h.b16 %v442
    %v1795 = vunpack.c.l.b16 %v443
    %v1796 = vunpack.c.h.b16 %v443
    %v1797 = vunpack.c.l.b16 %v444
    %v1798 = vunpack.c.h.b16 %v444
    %v1799 = vunpack.c.l.b16 %v445
    %v1800 = vunpack.c.h.b16 %v445
    %v1801 = vunpack.c.l.b16 %v446
    %v1802 = vunpack.c.h.b16 %v446
    %v1803 = vunpack.c.l.b16 %v447
    %v1804 = vunpack.c.h.b16 %v447
    %v1805 = vunpack.c.l.b16 %v448
    %v1806 = vunpack.c.h.b16 %v448
    %v1807 = vunpack.c.l.b16 %v449
    %v1808 = vunpack.c.h.b16 %v449
    %v1809 = vunpack.c.l.b16 %v450
    %v1810 = vunpack.c.h.b16 %v450
    %v1811 = vunpack.c.l.b16 %v451
    %v1812 = vunpack.c.h.b16 %v451
    %v1813 = vunpack.c.l.b16 %v452
    %v1814 = vunpack.c.h.b16 %v452
    %v1815 = vunpack.c.l.b16 %v453
    %v1816 = vunpack.c.h.b16 %v453
    %v1817 = vunpack.c.l.b16 %v454
    %v1818 = vunpack.c.h.b16 %v454
    %v1819 = vunpack.c.l.b16 %v455
    %v1820 = vunpack.c.h.b16 %v455
    %v1821 = vunpack.c.l.b16 %v456
    %v1822 = vunpack.c.h.b16 %v456
    %v1823 = vunpack.c.l.b16 %v457
    %v1824 = vunpack.c.h.b16 %v457
    %v1825 = vunpack.c.l.b16 %v458
    %v1826 = vunpack.c.h.b16 %v458
    %v1827 = vunpack.c.l.b16 %v459
    %v1828 = vunpack.c.h.b16 %v459
    %v1829 = vunpack.c.l.b16 %v460
    %v1830 = vunpack.c.h.b16 %v460
    %v1831 = vunpack.c.l.b16 %v461
    %v1832 = vunpack.c.h.b16 %v461
    %v1833 = vunpack.c.l.b16 %v462
    %v1834 = vunpack.c.h.b16 %v462
    %v1835 = vunpack.c.l.b16 %v463
    %v1836 = vunpack.c.h.b16 %v463
    %v1837 = vunpack.c.l.b16 %v464
    %v1838 = vunpack.c.h.b16 %v464
    %v1839 = vunpack.c.l.b16 %v465
    %v1840 = vunpack.c.h.b16 %v465
    %v1841 = vunpack.c.l.b16 %v466
    %v1842 = vunpack.c.h.b16 %v466
    %v1843 = vunpack.c.l.b16 %v467
    %v1844 = vunpack.c.h.b16 %v467
    %v1845 = vunpack.c.l.b16 %v468
    %v1846 = vunpack.c.h.b16 %v468
    %v1847 = vunpack.c.l.b16 %v469
    %v1848 = vunpack.c.h.b16 %v469
    %v1849 = vunpack.c.l.b16 %v470
    %v1850 = vunpack.c.h.b16 %v470
    %v1851 = vunpack.c.l.b16 %v471
    %v1852 = vunpack.c.h.b16 %v471
    %v1853 = vunpack.c.l.b16 %v472
    %v1854 = vunpack.c.h.b16 %v472
    %v1855 = vunpack.c.l.b16 %v473
    %v1856 = vunpack.c.h.b16 %v473
    %v1857 = vunpack.c.l.b16 %v474
    %v1858 = vunpack.c.h.b16 %v474
    %v1859 = vunpack.c.l.b16 %v475
    %v1860 = vunpack.c.h.b16 %v475
    %v1861 = vunpack.c.l.b16 %v476
    %v1862 = vunpack.c.h.b16 %v476
    %v1863 = vunpack.c.l.b16 %v477
    %v1864 = vunpack.c.h.b16 %v477
    %v1865 = vunpack.c.l.b16 %v478
    %v1866 = vunpack.c.h.b16 %v478
    %v1867 = vunpack.c.l.b16 %v479
    %v1868 = vunpack.c.h.b16 %v479
    %v1869 = vunpack.c.l.b16 %v480
    %v1870 = vunpack.c.h.b16 %v480
    %v1871 = vunpack.c.l.b16 %v481
    %v1872 = vunpack.c.h.b16 %v481
    %v1873 = vunpack.c.l.b16 %v482
    %v1874 = vunpack.c.h.b16 %v482
    %v1875 = vunpack.c.l.b16 %v483
    %v1876 = vunpack.c.h.b16 %v483
    %v1877 = vunpack.c.l.b16 %v484
    %v1878 = vunpack.c.h.b16 %v484
    %v1879 = vunpack.c.l.b16 %v485
    %v1880 = vunpack.c.h.b16 %v485
    %v1881 = vunpack.c.l.b16 %v486
    %v1882 = vunpack.c.h.b16 %v486
    %v1883 = vunpack.c.l.b16 %v487
    %v1884 = vunpack.c.h.b16 %v487
    %v1885 = vunpack.c.l.b16 %v488
    %v1886 = vunpack.c.h.b16 %v488
    %v1887 = vunpack.c.l.b16 %v489
    %v1888 = vunpack.c.h.b16 %v489
    %v1889 = vunpack.c.l.b16 %v490
    %v1890 = vunpack.c.h.b16 %v490
    %v1891 = vunpack.c.l.b16 %v491
    %v1892 = vunpack.c.h.b16 %v491
    %v1893 = vunpack.c.l.b16 %v492
    %v1894 = vunpack.c.h.b16 %v492
    %v1895 = vunpack.c.l.b16 %v493
    %v1896 = vunpack.c.h.b16 %v493
    %v1897 = vunpack.c.l.b16 %v494
    %v1898 = vunpack.c.h.b16 %v494
    %v1899 = vunpack.c.l.b16 %v495
    %v1900 = vunpack.c.h.b16 %v495
    %v1901 = vunpack.c.l.b16 %v496
    %v1902 = vunpack.c.h.b16 %v496
    %v1903 = vunpack.c.l.b16 %v497
    %v1904 = vunpack.c.h.b16 %v497
    %v1905 = vunpack.c.l.b16 %v498
    %v1906 = vunpack.c.h.b16 %v498
    %v1907 = vunpack.c.l.b16 %v499
    %v1908 = vunpack.c.h.b16 %v499
    %v1909 = vunpack.c.l.b16 %v500
    %v1910 = vunpack.c.h.b16 %v500
    %v1911 = vunpack.c.l.b16 %v501
    %v1912 = vunpack.c.h.b16 %v501
    %v1913 = vunpack.c.l.b16 %v502
    %v1914 = vunpack.c.h.b16 %v502
    %v1915 = vunpack.c.l.b16 %v503
    %v1916 = vunpack.c.h.b16 %v503
    %v1917 = vunpack.c.l.b16 %v504
    %v1918 = vunpack.c.h.b16 %v504
    %v1919 = vunpack.c.l.b16 %v505
    %v1920 = vunpack.c.h.b16 %v505
    %v1921 = vunpack.c.l.b16 %v506
    %v1922 = vunpack.c.h.b16 %v506
    %v1923 = vunpack.c.l.b16 %v507
    %v1924 = vunpack.c.h.b16 %v507
    %v1925 = vunpack.c.l.b16 %v508
    %v1926 = vunpack.c.h.b16 %v508
    %v1927 = vunpack.c.l.b16 %v509
    %v1928 = vunpack.c.h.b16 %v509
    %v1929 = vunpack.c.l.b16 %v510
    %v1930 = vunpack.c.h.b16 %v510
    %v1931 = vunpack.c.l.b16 %v511
    %v1932 = vunpack.c.h.b16 %v511
    %v1933 = vunpack.c.l.b16 %v512
    %v1934 = vunpack.c.h.b16 %v512
    %v1935 = vunpack.c.l.b16 %v513
    %v1936 = vunpack.c.h.b16 %v513
    %v1937 = vunpack.c.l.b16 %v514
    %v1938 = vunpack.c.h.b16 %v514
    %v1939 = vunpack.c.l.b16 %v515
    %v1940 = vunpack.c.h.b16 %v515
    %v1941 = vunpack.c.l.b16 %v516
    %v1942 = vunpack.c.h.b16 %v516
    %v1943 = vunpack.c.l.b16 %v517
    %v1944 = vunpack.c.h.b16 %v517
    %v1945 = vunpack.c.l.b16 %v518
    %v1946 = vunpack.c.h.b16 %v518
    %v1947 = vunpack.c.l.b16 %v519
    %v1948 = vunpack.c.h.b16 %v519
    %v1949 = vunpack.c.l.b16 %v520
    %v1950 = vunpack.c.h.b16 %v520
    %v1951 = vunpack.c.l.b16 %v521
    %v1952 = vunpack.c.h.b16 %v521
    %v1953 = vunpack.c.l.b16 %v522
    %v1954 = vunpack.c.h.b16 %v522
    %v1955 = vunpack.c.l.b16 %v523
    %v1956 = vunpack.c.h.b16 %v523
    %v1957 = vunpack.c.l.b16 %v524
    %v1958 = vunpack.c.h.b16 %v524
    %v1959 = vunpack.c.l.b16 %v525
    %v1960 = vunpack.c.h.b16 %v525
    %v1961 = vunpack.c.l.b16 %v526
    %v1962 = vunpack.c.h.b16 %v526
    %v1963 = vunpack.c.l.b16 %v527
    %v1964 = vunpack.c.h.b16 %v527
    %v1965 = vunpack.c.l.b16 %v528
    %v1966 = vunpack.c.h.b16 %v528
    %v1967 = vunpack.c.l.b16 %v529
    %v1968 = vunpack.c.h.b16 %v529
    %v1969 = vunpack.c.l.b16 %v530
    %v1970 = vunpack.c.h.b16 %v530
    %v1971 = vunpack.c.l.b16 %v531
    %v1972 = vunpack.c.h.b16 %v531
    %v1973 = vunpack.c.l.b16 %v532
    %v1974 = vunpack.c.h.b16 %v532
    %v1975 = vunpack.c.l.b16 %v533
    %v1976 = vunpack.c.h.b16 %v533
    %v1977 = vunpack.c.l.b16 %v534
    %v1978 = vunpack.c.h.b16 %v534
    %v1979 = vunpack.c.l.b16 %v535
    %v1980 = vunpack.c.h.b16 %v535
    %v1981 = vunpack.c.l.b16 %v536
    %v1982 = vunpack.c.h.b16 %v536
    %v1983 = vunpack.c.l.b16 %v537
    %v1984 = vunpack.c.h.b16 %v537
    %v1985 = vunpack.c.l.b16 %v538
    %v1986 = vunpack.c.h.b16 %v538
    %v1987 = vunpack.c.l.b16 %v539
    %v1988 = vunpack.c.h.b16 %v539
    %v1989 = vunpack.c.l.b16 %v540
    %v1990 = vunpack.c.h.b16 %v540
    %v1991 = vunpack.c.l.b16 %v541
    %v1992 = vunpack.c.h.b16 %v541
    %v1993 = vunpack.c.l.b16 %v542
    %v1994 = vunpack.c.h.b16 %v542
    %v1995 = vunpack.c.l.b16 %v543
    %v1996 = vunpack.c.h.b16 %v543
    %v1997 = vunpack.c.l.b16 %v544
    %v1998 = vunpack.c.h.b16 %v544
    %v1999 = vunpack.c.l.b16 %v545
    %v2000 = vunpack.c.h.b16 %v545
    %v2001 = vunpack.c.l.b16 %v546
    %v2002 = vunpack.c.h.b16 %v546
    %v2003 = vunpack.c.l.b16 %v547
    %v2004 = vunpack.c.h.b16 %v547
    %v2005 = vunpack.c.l.b16 %v548
    %v2006 = vunpack.c.h.b16 %v548
    %v2007 = vunpack.c.l.b16 %v549
    %v2008 = vunpack.c.h.b16 %v549
    %v2009 = vunpack.c.l.b16 %v550
    %v2010 = vunpack.c.h.b16 %v550
    %v2011 = vunpack.c.l.b16 %v551
    %v2012 = vunpack.c.h.b16 %v551
    %v2013 = vunpack.c.l.b16 %v552
    %v2014 = vunpack.c.h.b16 %v552
    %v2015 = vunpack.c.l.b16 %v553
    %v2016 = vunpack.c.h.b16 %v553
    %v2017 = vunpack.c.l.b16 %v554
    %v2018 = vunpack.c.h.b16 %v554
    %v2019 = vunpack.c.l.b16 %v555
    %v2020 = vunpack.c.h.b16 %v555
    %v2021 = vunpack.c.l.b16 %v556
    %v2022 = vunpack.c.h.b16 %v556
    %v2023 = vunpack.c.l.b16 %v557
    %v2024 = vunpack.c.h.b16 %v557
    %v2025 = vunpack.c.l.b16 %v558
    %v2026 = vunpack.c.h.b16 %v558
    %v2027 = vunpack.c.l.b16 %v559
    %v2028 = vunpack.c.h.b16 %v559
    %v2029 = vunpack.c.l.b16 %v560
    %v2030 = vunpack.c.h.b16 %v560
    %v2031 = vunpack.c.l.b16 %v561
    %v2032 = vunpack.c.h.b16 %v561
    %v2033 = vunpack.c.l.b16 %v562
    %v2034 = vunpack.c.h.b16 %v562
    %v2035 = vunpack.c.l.b16 %v563
    %v2036 = vunpack.c.h.b16 %v563
    %v2037 = vunpack.c.l.b16 %v564
    %v2038 = vunpack.c.h.b16 %v564
    %v2039 = vunpack.c.l.b16 %v565
    %v2040 = vunpack.c.h.b16 %v565
    %v2041 = vunpack.c.l.b16 %v566
    %v2042 = vunpack.c.h.b16 %v566
    %v2043 = vunpack.c.l.b16 %v567
    %v2044 = vunpack.c.h.b16 %v567
    %v2045 = vunpack.c.l.b16 %v568
    %v2046 = vunpack.c.h.b16 %v568
    %v2047 = vunpack.c.l.b16 %v569
    %v2048 = vunpack.c.h.b16 %v569
    %v2049 = vunpack.c.l.b16 %v570
    %v2050 = vunpack.c.h.b16 %v570
    %v2051 = vunpack.c.l.b16 %v571
    %v2052 = vunpack.c.h.b16 %v571
    %v2053 = vunpack.c.l.b16 %v572
    %v2054 = vunpack.c.h.b16 %v572
    %v2055 = vunpack.c.l.b16 %v573
    %v2056 = vunpack.c.h.b16 %v573
    %v2057 = vunpack.c.l.b16 %v574
    %v2058 = vunpack.c.h.b16 %v574
    %v2059 = vunpack.c.l.b16 %v575
    %v2060 = vunpack.c.h.b16 %v575
    %v2061 = vunpack.c.l.b16 %v576
    %v2062 = vunpack.c.h.b16 %v576
    %v2063 = vunpack.c.l.b16 %v577
    %v2064 = vunpack.c.h.b16 %v577
    %v2065 = vunpack.c.l.b16 %v578
    %v2066 = vunpack.c.h.b16 %v578
    %v2067 = vunpack.c.l.b16 %v579
    %v2068 = vunpack.c.h.b16 %v579
    %v2069 = vunpack.c.l.b16 %v580
    %v2070 = vunpack.c.h.b16 %v580
    %v2071 = vunpack.c.l.b16 %v581
    %v2072 = vunpack.c.h.b16 %v581
    %v2073 = vunpack.c.l.b16 %v582
    %v2074 = vunpack.c.h.b16 %v582
    %v2075 = vunpack.c.l.b16 %v583
    %v2076 = vunpack.c.h.b16 %v583
    %v2077 = vunpack.c.l.b16 %v584
    %v2078 = vunpack.c.h.b16 %v584
    %v2079 = vunpack.c.l.b16 %v585
    %v2080 = vunpack.c.h.b16 %v585
    %v2081 = vunpack.c.l.b16 %v586
    %v2082 = vunpack.c.h.b16 %v586
    %v2083 = vunpack.c.l.b16 %v587
    %v2084 = vunpack.c.h.b16 %v587
    %v2085 = vunpack.c.l.b16 %v588
    %v2086 = vunpack.c.h.b16 %v588
    %v2087 = vunpack.c.l.b16 %v589
    %v2088 = vunpack.c.h.b16 %v589
    %v2089 = vunpack.c.l.b16 %v590
    %v2090 = vunpack.c.h.b16 %v590
    %v2091 = vunpack.c.l.b16 %v591
    %v2092 = vunpack.c.h.b16 %v591
    %v2093 = vunpack.c.l.b16 %v592
    %v2094 = vunpack.c.h.b16 %v592
    %v2095 = vunpack.c.l.b16 %v593
    %v2096 = vunpack.c.h.b16 %v593
    %v2097 = vunpack.c.l.b16 %v594
    %v2098 = vunpack.c.h.b16 %v594
    %v2099 = vunpack.c.l.b16 %v595
    %v2100 = vunpack.c.h.b16 %v595
    %v2101 = vunpack.c.l.b16 %v596
    %v2102 = vunpack.c.h.b16 %v596
    %v2103 = vunpack.c.l.b16 %v597
    %v2104 = vunpack.c.h.b16 %v597
    %v2105 = vunpack.c.l.b16 %v598
    %v2106 = vunpack.c.h.b16 %v598
    %v2107 = vunpack.c.l.b16 %v599
    %v2108 = vunpack.c.h.b16 %v599
    %v2109 = vunpack.c.l.b16 %v600
    %v2110 = vunpack.c.h.b16 %v600
    %v2111 = vunpack.c.l.b16 %v601
    %v2112 = vunpack.c.h.b16 %v601
    %v2113 = vunpack.c.l.b16 %v602
    %v2114 = vunpack.c.h.b16 %v602
    %v2115 = vunpack.c.l.b16 %v603
    %v2116 = vunpack.c.h.b16 %v603
    %v2117 = vunpack.c.l.b16 %v604
    %v2118 = vunpack.c.h.b16 %v604
    %v2119 = vunpack.c.l.b16 %v605
    %v2120 = vunpack.c.h.b16 %v605
    %v2121 = vunpack.c.l.b16 %v606
    %v2122 = vunpack.c.h.b16 %v606
    %v2123 = vunpack.c.l.b16 %v607
    %v2124 = vunpack.c.h.b16 %v607
    %v2125 = vunpack.c.l.b16 %v608
    %v2126 = vunpack.c.h.b16 %v608
    %v2127 = vunpack.c.l.b16 %v609
    %v2128 = vunpack.c.h.b16 %v609
    %v2129 = vunpack.c.l.b16 %v610
    %v2130 = vunpack.c.h.b16 %v610
    %v2131 = vunpack.c.l.b16 %v611
    %v2132 = vunpack.c.h.b16 %v611
    %v2133 = vunpack.c.l.b16 %v612
    %v2134 = vunpack.c.h.b16 %v612
    %v2135 = vunpack.c.l.b16 %v613
    %v2136 = vunpack.c.h.b16 %v613
    %v2137 = vunpack.c.l.b16 %v614
    %v2138 = vunpack.c.h.b16 %v614
    %v2139 = vunpack.c.l.b16 %v615
    %v2140 = vunpack.c.h.b16 %v615
    %v2141 = vunpack.c.l.b16 %v616
    %v2142 = vunpack.c.h.b16 %v616
    %v2143 = vunpack.c.l.b16 %v617
    %v2144 = vunpack.c.h.b16 %v617
    %v2145 = vunpack.c.l.b16 %v618
    %v2146 = vunpack.c.h.b16 %v618
    %v2147 = vunpack.c.l.b16 %v619
    %v2148 = vunpack.c.h.b16 %v619
    %v2149 = vunpack.c.l.b16 %v620
    %v2150 = vunpack.c.h.b16 %v620
    %v2151 = vunpack.c.l.b16 %v621
    %v2152 = vunpack.c.h.b16 %v621
    %v2153 = vunpack.c.l.b16 %v622
    %v2154 = vunpack.c.h.b16 %v622
    %v2155 = vunpack.c.l.b16 %v623
    %v2156 = vunpack.c.h.b16 %v623
    %v2157 = vunpack.c.l.b16 %v624
    %v2158 = vunpack.c.h.b16 %v624
    %v2159 = vunpack.c.l.b16 %v625
    %v2160 = vunpack.c.h.b16 %v625
    %v2161 = vunpack.c.l.b16 %v626
    %v2162 = vunpack.c.h.b16 %v626
    %v2163 = vpack.c.b16 %v1147, %v1139
    %v2164 = vpack.c.b16 %v1148, %v1140
    %v2165 = vpack.c.b16 %v1149, %v1141
    %v2166 = vpack.c.b16 %v1150, %v1142
    %v2167 = vpack.c.b16 %v1151, %v1143
    %v2168 = vpack.c.b16 %v1152, %v1144
    %v2169 = vpack.c.b16 %v1153, %v1145
    %v2170 = vpack.c.b16 %v1154, %v1146
    %v2171 = vpack.c.b16 %v1163, %v1155
    %v2172 = vpack.c.b16 %v1164, %v1156
    %v2173 = vpack.c.b16 %v1165, %v1157
    %v2174 = vpack.c.b16 %v1166, %v1158
    %v2175 = vpack.c.b16 %v1167, %v1159
    %v2176 = vpack.c.b16 %v1168, %v1160
    %v2177 = vpack.c.b16 %v1169, %v1161
    %v2178 = vpack.c.b16 %v1170, %v1162
    %v2179 = vpack.c.b16 %v1179, %v1171
    %v2180 = vpack.c.b16 %v1180, %v1172
    %v2181 = vpack.c.b16 %v1181, %v1173
    %v2182 = vpack.c.b16 %v1182, %v1174
    %v2183 = vpack.c.b16 %v1183, %v1175
    %v2184 = vpack.c.b16 %v1184, %v1176
    %v2185 = vpack.c.b16 %v1185, %v1177
    %v2186 = vpack.c.b16 %v1186, %v1178
    %v2187 = vpack.c.b16 %v1195, %v1187
    %v2188 = vpack.c.b16 %v1196, %v1188
    %v2189 = vpack.c.b16 %v1197, %v1189
    %v2190 = vpack.c.b16 %v1198, %v1190
    %v2191 = vpack.c.b16 %v1199, %v1191
    %v2192 = vpack.c.b16 %v1200, %v1192
    %v2193 = vpack.c.b16 %v1201, %v1193
    %v2194 = vpack.c.b16 %v1202, %v1194
    %v2195 = vpack.c.b16 %v1211, %v1203
    %v2196 = vpack.c.b16 %v1212, %v1204
    %v2197 = vpack.c.b16 %v1213, %v1205
    %v2198 = vpack.c.b16 %v1214, %v1206
    %v2199 = vpack.c.b16 %v1215, %v1207
    %v2200 = vpack.c.b16 %v1216, %v1208
    %v2201 = vpack.c.b16 %v1217, %v1209
    %v2202 = vpack.c.b16 %v1218, %v1210
    %v2203 = vpack.c.b16 %v1227, %v1219
    %v2204 = vpack.c.b16 %v1228, %v1220
    %v2205 = vpack.c.b16 %v1229, %v1221
    %v2206 = vpack.c.b16 %v1230, %v1222
    %v2207 = vpack.c.b16 %v1231, %v1223
    %v2208 = vpack.c.b16 %v1232, %v1224
    %v2209 = vpack.c.b16 %v1233, %v1225
    %v2210 = vpack.c.b16 %v1234, %v1226
    %v2211 = vpack.c.b16 %v1243, %v1235
    %v2212 = vpack.c.b16 %v1244, %v1236
    %v2213 = vpack.c.b16 %v1245, %v1237
    %v2214 = vpack.c.b16 %v1246, %v1238
    %v2215 = vpack.c.b16 %v1247, %v1239
    %v2216 = vpack.c.b16 %v1248, %v1240
    %v2217 = vpack.c.b16 %v1249, %v1241
    %v2218 = vpack.c.b16 %v1250, %v1242
    %v2219 = vpack.c.b16 %v1259, %v1251
    %v2220 = vpack.c.b16 %v1260, %v1252
    %v2221 = vpack.c.b16 %v1261, %v1253
    %v2222 = vpack.c.b16 %v1262, %v1254
    %v2223 = vpack.c.b16 %v1263, %v1255
    %v2224 = vpack.c.b16 %v1264, %v1256
    %v2225 = vpack.c.b16 %v1265, %v1257
    %v2226 = vpack.c.b16 %v1266, %v1258
    %v2227 = vpack.c.b16 %v1275, %v1267
    %v2228 = vpack.c.b16 %v1276, %v1268
    %v2229 = vpack.c.b16 %v1277, %v1269
    %v2230 = vpack.c.b16 %v1278, %v1270
    %v2231 = vpack.c.b16 %v1279, %v1271
    %v2232 = vpack.c.b16 %v1280, %v1272
    %v2233 = vpack.c.b16 %v1281, %v1273
    %v2234 = vpack.c.b16 %v1282, %v1274
    %v2235 = vpack.c.b16 %v1291, %v1283
    %v2236 = vpack.c.b16 %v1292, %v1284
    %v2237 = vpack.c.b16 %v1293, %v1285
    %v2238 = vpack.c.b16 %v1294, %v1286
    %v2239 = vpack.c.b16 %v1295, %v1287
    %v2240 = vpack.c.b16 %v1296, %v1288
    %v2241 = vpack.c.b16 %v1297, %v1289
    %v2242 = vpack.c.b16 %v1298, %v1290
    %v2243 = vpack.c.b16 %v1307, %v1299
    %v2244 = vpack.c.b16 %v1308, %v1300
    %v2245 = vpack.c.b16 %v1309, %v1301
    %v2246 = vpack.c.b16 %v1310, %v1302
    %v2247 = vpack.c.b16 %v1311, %v1303
    %v2248 = vpack.c.b16 %v1312, %v1304
    %v2249 = vpack.c.b16 %v1313, %v1305
    %v2250 = vpack.c.b16 %v1314, %v1306
    %v2251 = vpack.c.b16 %v1323, %v1315
    %v2252 = vpack.c.b16 %v1324, %v1316
    %v2253 = vpack.c.b16 %v1325, %v1317
    %v2254 = vpack.c.b16 %v1326, %v1318
    %v2255 = vpack.c.b16 %v1327, %v1319
    %v2256 = vpack.c.b16 %v1328, %v1320
    %v2257 = vpack.c.b16 %v1329, %v1321
    %v2258 = vpack.c.b16 %v1330, %v1322
    %v2259 = vpack.c.b16 %v1339, %v1331
    %v2260 = vpack.c.b16 %v1340, %v1332
    %v2261 = vpack.c.b16 %v1341, %v1333
    %v2262 = vpack.c.b16 %v1342, %v1334
    %v2263 = vpack.c.b16 %v1343, %v1335
    %v2264 = vpack.c.b16 %v1344, %v1336
    %v2265 = vpack.c.b16 %v1345, %v1337
    %v2266 = vpack.c.b16 %v1346, %v1338
    %v2267 = vpack.c.b16 %v1355, %v1347
    %v2268 = vpack.c.b16 %v1356, %v1348
    %v2269 = vpack.c.b16 %v1357, %v1349
    %v2270 = vpack.c.b16 %v1358, %v1350
    %v2271 = vpack.c.b16 %v1359, %v1351
    %v2272 = vpack.c.b16 %v1360, %v1352
    %v2273 = vpack.c.b16 %v1361, %v1353
    %v2274 = vpack.c.b16 %v1362, %v1354
    %v2275 = vpack.c.b16 %v1371, %v1363
    %v2276 = vpack.c.b16 %v1372, %v1364
    %v2277 = vpack.c.b16 %v1373, %v1365
    %v2278 = vpack.c.b16 %v1374, %v1366
    %v2279 = vpack.c.b16 %v1375, %v1367
    %v2280 = vpack.c.b16 %v1376, %v1368
    %v2281 = vpack.c.b16 %v1377, %v1369
    %v2282 = vpack.c.b16 %v1378, %v1370
    %v2283 = vpack.c.b16 %v1387, %v1379
    %v2284 = vpack.c.b16 %v1388, %v1380
    %v2285 = vpack.c.b16 %v1389, %v1381
    %v2286 = vpack.c.b16 %v1390, %v1382
    %v2287 = vpack.c.b16 %v1391, %v1383
    %v2288 = vpack.c.b16 %v1392, %v1384
    %v2289 = vpack.c.b16 %v1393, %v1385
    %v2290 = vpack.c.b16 %v1394, %v1386
    %v2291 = vpack.c.b16 %v1403, %v1395
    %v2292 = vpack.c.b16 %v1404, %v1396
    %v2293 = vpack.c.b16 %v1405, %v1397
    %v2294 = vpack.c.b16 %v1406, %v1398
    %v2295 = vpack.c.b16 %v1407, %v1399
    %v2296 = vpack.c.b16 %v1408, %v1400
    %v2297 = vpack.c.b16 %v1409, %v1401
    %v2298 = vpack.c.b16 %v1410, %v1402
    %v2299 = vpack.c.b16 %v1419, %v1411
    %v2300 = vpack.c.b16 %v1420, %v1412
    %v2301 = vpack.c.b16 %v1421, %v1413
    %v2302 = vpack.c.b16 %v1422, %v1414
    %v2303 = vpack.c.b16 %v1423, %v1415
    %v2304 = vpack.c.b16 %v1424, %v1416
    %v2305 = vpack.c.b16 %v1425, %v1417
    %v2306 = vpack.c.b16 %v1426, %v1418
    %v2307 = vpack.c.b16 %v1435, %v1427
    %v2308 = vpack.c.b16 %v1436, %v1428
    %v2309 = vpack.c.b16 %v1437, %v1429
    %v2310 = vpack.c.b16 %v1438, %v1430
    %v2311 = vpack.c.b16 %v1439, %v1431
    %v2312 = vpack.c.b16 %v1440, %v1432
    %v2313 = vpack.c.b16 %v1441, %v1433
    %v2314 = vpack.c.b16 %v1442, %v1434
    %v2315 = vpack.c.b16 %v1451, %v1443
    %v2316 = vpack.c.b16 %v1452, %v1444
    %v2317 = vpack.c.b16 %v1453, %v1445
    %v2318 = vpack.c.b16 %v1454, %v1446
    %v2319 = vpack.c.b16 %v1455, %v1447
    %v2320 = vpack.c.b16 %v1456, %v1448
    %v2321 = vpack.c.b16 %v1457, %v1449
    %v2322 = vpack.c.b16 %v1458, %v1450
    %v2323 = vpack.c.b16 %v1467, %v1459
    %v2324 = vpack.c.b16 %v1468, %v1460
    %v2325 = vpack.c.b16 %v1469, %v1461
    %v2326 = vpack.c.b16 %v1470, %v1462
    %v2327 = vpack.c.b16 %v1471, %v1463
    %v2328 = vpack.c.b16 %v1472, %v1464
    %v2329 = vpack.c.b16 %v1473, %v1465
    %v2330 = vpack.c.b16 %v1474, %v1466
    %v2331 = vpack.c.b16 %v1483, %v1475
    %v2332 = vpack.c.b16 %v1484, %v1476
    %v2333 = vpack.c.b16 %v1485, %v1477
    %v2334 = vpack.c.b16 %v1486, %v1478
    %v2335 = vpack.c.b16 %v1487, %v1479
    %v2336 = vpack.c.b16 %v1488, %v1480
    %v2337 = vpack.c.b16 %v1489, %v1481
    %v2338 = vpack.c.b16 %v1490, %v1482
    %v2339 = vpack.c.b16 %v1499, %v1491
    %v2340 = vpack.c.b16 %v1500, %v1492
    %v2341 = vpack.c.b16 %v1501, %v1493
    %v2342 = vpack.c.b16 %v1502, %v1494
    %v2343 = vpack.c.b16 %v1503, %v1495
    %v2344 = vpack.c.b16 %v1504, %v1496
    %v2345 = vpack.c.b16 %v1505, %v1497
    %v2346 = vpack.c.b16 %v1506, %v1498
    %v2347 = vpack.c.b16 %v1515, %v1507
    %v2348 = vpack.c.b16 %v1516, %v1508
    %v2349 = vpack.c.b16 %v1517, %v1509
    %v2350 = vpack.c.b16 %v1518, %v1510
    %v2351 = vpack.c.b16 %v1519, %v1511
    %v2352 = vpack.c.b16 %v1520, %v1512
    %v2353 = vpack.c.b16 %v1521, %v1513
    %v2354 = vpack.c.b16 %v1522, %v1514
    %v2355 = vpack.c.b16 %v1531, %v1523
    %v2356 = vpack.c.b16 %v1532, %v1524
    %v2357 = vpack.c.b16 %v1533, %v1525
    %v2358 = vpack.c.b16 %v1534, %v1526
    %v2359 = vpack.c.b16 %v1535, %v1527
    %v2360 = vpack.c.b16 %v1536, %v1528
    %v2361 = vpack.c.b16 %v1537, %v1529
    %v2362 = vpack.c.b16 %v1538, %v1530
    %v2363 = vpack.c.b16 %v1547, %v1539
    %v2364 = vpack.c.b16 %v1548, %v1540
    %v2365 = vpack.c.b16 %v1549, %v1541
    %v2366 = vpack.c.b16 %v1550, %v1542
    %v2367 = vpack.c.b16 %v1551, %v1543
    %v2368 = vpack.c.b16 %v1552, %v1544
    %v2369 = vpack.c.b16 %v1553, %v1545
    %v2370 = vpack.c.b16 %v1554, %v1546
    %v2371 = vpack.c.b16 %v1563, %v1555
    %v2372 = vpack.c.b16 %v1564, %v1556
    %v2373 = vpack.c.b16 %v1565, %v1557
    %v2374 = vpack.c.b16 %v1566, %v1558
    %v2375 = vpack.c.b16 %v1567, %v1559
    %v2376 = vpack.c.b16 %v1568, %v1560
    %v2377 = vpack.c.b16 %v1569, %v1561
    %v2378 = vpack.c.b16 %v1570, %v1562
    %v2379 = vpack.c.b16 %v1579, %v1571
    %v2380 = vpack.c.b16 %v1580, %v1572
    %v2381 = vpack.c.b16 %v1581, %v1573
    %v2382 = vpack.c.b16 %v1582, %v1574
    %v2383 = vpack.c.b16 %v1583, %v1575
    %v2384 = vpack.c.b16 %v1584, %v1576
    %v2385 = vpack.c.b16 %v1585, %v1577
    %v2386 = vpack.c.b16 %v1586, %v1578
    %v2387 = vpack.c.b16 %v1595, %v1587
    %v2388 = vpack.c.b16 %v1596, %v1588
    %v2389 = vpack.c.b16 %v1597, %v1589
    %v2390 = vpack.c.b16 %v1598, %v1590
    %v2391 = vpack.c.b16 %v1599, %v1591
    %v2392 = vpack.c.b16 %v1600, %v1592
    %v2393 = vpack.c.b16 %v1601, %v1593
    %v2394 = vpack.c.b16 %v1602, %v1594
    %v2395 = vpack.c.b16 %v1611, %v1603
    %v2396 = vpack.c.b16 %v1612, %v1604
    %v2397 = vpack.c.b16 %v1613, %v1605
    %v2398 = vpack.c.b16 %v1614, %v1606
    %v2399 = vpack.c.b16 %v1615, %v1607
    %v2400 = vpack.c.b16 %v1616, %v1608
    %v2401 = vpack.c.b16 %v1617, %v1609
    %v2402 = vpack.c.b16 %v1618, %v1610
    %v2403 = vpack.c.b16 %v1627, %v1619
    %v2404 = vpack.c.b16 %v1628, %v1620
    %v2405 = vpack.c.b16 %v1629, %v1621
    %v2406 = vpack.c.b16 %v1630, %v1622
    %v2407 = vpack.c.b16 %v1631, %v1623
    %v2408 = vpack.c.b16 %v1632, %v1624
    %v2409 = vpack.c.b16 %v1633, %v1625
    %v2410 = vpack.c.b16 %v1634, %v1626
    %v2411 = vpack.c.b16 %v1643, %v1635
    %v2412 = vpack.c.b16 %v1644, %v1636
    %v2413 = vpack.c.b16 %v1645, %v1637
    %v2414 = vpack.c.b16 %v1646, %v1638
    %v2415 = vpack.c.b16 %v1647, %v1639
    %v2416 = vpack.c.b16 %v1648, %v1640
    %v2417 = vpack.c.b16 %v1649, %v1641
    %v2418 = vpack.c.b16 %v1650, %v1642
    %v2419 = vpack.c.b16 %v1659, %v1651
    %v2420 = vpack.c.b16 %v1660, %v1652
    %v2421 = vpack.c.b16 %v1661, %v1653
    %v2422 = vpack.c.b16 %v1662, %v1654
    %v2423 = vpack.c.b16 %v1663, %v1655
    %v2424 = vpack.c.b16 %v1664, %v1656
    %v2425 = vpack.c.b16 %v1665, %v1657
    %v2426 = vpack.c.b16 %v1666, %v1658
    %v2427 = vpack.c.b16 %v1675, %v1667
    %v2428 = vpack.c.b16 %v1676, %v1668
    %v2429 = vpack.c.b16 %v1677, %v1669
    %v2430 = vpack.c.b16 %v1678, %v1670
    %v2431 = vpack.c.b16 %v1679, %v1671
    %v2432 = vpack.c.b16 %v1680, %v1672
    %v2433 = vpack.c.b16 %v1681, %v1673
    %v2434 = vpack.c.b16 %v1682, %v1674
    %v2435 = vpack.c.b16 %v1691, %v1683
    %v2436 = vpack.c.b16 %v1692, %v1684
    %v2437 = vpack.c.b16 %v1693, %v1685
    %v2438 = vpack.c.b16 %v1694, %v1686
    %v2439 = vpack.c.b16 %v1695, %v1687
    %v2440 = vpack.c.b16 %v1696, %v1688
    %v2441 = vpack.c.b16 %v1697, %v1689
    %v2442 = vpack.c.b16 %v1698, %v1690
    %v2443 = vpack.c.b16 %v1707, %v1699
    %v2444 = vpack.c.b16 %v1708, %v1700
    %v2445 = vpack.c.b16 %v1709, %v1701
    %v2446 = vpack.c.b16 %v1710, %v1702
    %v2447 = vpack.c.b16 %v1711, %v1703
    %v2448 = vpack.c.b16 %v1712, %v1704
    %v2449 = vpack.c.b16 %v1713, %v1705
    %v2450 = vpack.c.b16 %v1714, %v1706
    %v2451 = vpack.c.b16 %v1723, %v1715
    %v2452 = vpack.c.b16 %v1724, %v1716
    %v2453 = vpack.c.b16 %v1725, %v1717
    %v2454 = vpack.c.b16 %v1726, %v1718
    %v2455 = vpack.c.b16 %v1727, %v1719
    %v2456 = vpack.c.b16 %v1728, %v1720
    %v2457 = vpack.c.b16 %v1729, %v1721
    %v2458 = vpack.c.b16 %v1730, %v1722
    %v2459 = vpack.c.b16 %v1739, %v1731
    %v2460 = vpack.c.b16 %v1740, %v1732
    %v2461 = vpack.c.b16 %v1741, %v1733
    %v2462 = vpack.c.b16 %v1742, %v1734
    %v2463 = vpack.c.b16 %v1743, %v1735
    %v2464 = vpack.c.b16 %v1744, %v1736
    %v2465 = vpack.c.b16 %v1745, %v1737
    %v2466 = vpack.c.b16 %v1746, %v1738
    %v2467 = vpack.c.b16 %v1755, %v1747
    %v2468 = vpack.c.b16 %v1756, %v1748
    %v2469 = vpack.c.b16 %v1757, %v1749
    %v2470 = vpack.c.b16 %v1758, %v1750
    %v2471 = vpack.c.b16 %v1759, %v1751
    %v2472 = vpack.c.b16 %v1760, %v1752
    %v2473 = vpack.c.b16 %v1761, %v1753
    %v2474 = vpack.c.b16 %v1762, %v1754
    %v2475 = vpack.c.b16 %v1771, %v1763
    %v2476 = vpack.c.b16 %v1772, %v1764
    %v2477 = vpack.c.b16 %v1773, %v1765
    %v2478 = vpack.c.b16 %v1774, %v1766
    %v2479 = vpack.c.b16 %v1775, %v1767
    %v2480 = vpack.c.b16 %v1776, %v1768
    %v2481 = vpack.c.b16 %v1777, %v1769
    %v2482 = vpack.c.b16 %v1778, %v1770
    %v2483 = vpack.c.b16 %v1787, %v1779
    %v2484 = vpack.c.b16 %v1788, %v1780
    %v2485 = vpack.c.b16 %v1789, %v1781
    %v2486 = vpack.c.b16 %v1790, %v1782
    %v2487 = vpack.c.b16 %v1791, %v1783
    %v2488 = vpack.c.b16 %v1792, %v1784
    %v2489 = vpack.c.b16 %v1793, %v1785
    %v2490 = vpack.c.b16 %v1794, %v1786
    %v2491 = vpack.c.b16 %v1803, %v1795
    %v2492 = vpack.c.b16 %v1804, %v1796
    %v2493 = vpack.c.b16 %v1805, %v1797
    %v2494 = vpack.c.b16 %v1806, %v1798
    %v2495 = vpack.c.b16 %v1807, %v1799
    %v2496 = vpack.c.b16 %v1808, %v1800
    %v2497 = vpack.c.b16 %v1809, %v1801
    %v2498 = vpack.c.b16 %v1810, %v1802
    %v2499 = vpack.c.b16 %v1819, %v1811
    %v2500 = vpack.c.b16 %v1820, %v1812
    %v2501 = vpack.c.b16 %v1821, %v1813
    %v2502 = vpack.c.b16 %v1822, %v1814
    %v2503 = vpack.c.b16 %v1823, %v1815
    %v2504 = vpack.c.b16 %v1824, %v1816
    %v2505 = vpack.c.b16 %v1825, %v1817
    %v2506 = vpack.c.b16 %v1826, %v1818
    %v2507 = vpack.c.b16 %v1835, %v1827
    %v2508 = vpack.c.b16 %v1836, %v1828
    %v2509 = vpack.c.b16 %v1837, %v1829
    %v2510 = vpack.c.b16 %v1838, %v1830
    %v2511 = vpack.c.b16 %v1839, %v1831
    %v2512 = vpack.c.b16 %v1840, %v1832
    %v2513 = vpack.c.b16 %v1841, %v1833
    %v2514 = vpack.c.b16 %v1842, %v1834
    %v2515 = vpack.c.b16 %v1851, %v1843
    %v2516 = vpack.c.b16 %v1852, %v1844
    %v2517 = vpack.c.b16 %v1853, %v1845
    %v2518 = vpack.c.b16 %v1854, %v1846
    %v2519 = vpack.c.b16 %v1855, %v1847
    %v2520 = vpack.c.b16 %v1856, %v1848
    %v2521 = vpack.c.b16 %v1857, %v1849
    %v2522 = vpack.c.b16 %v1858, %v1850
    %v2523 = vpack.c.b16 %v1867, %v1859
    %v2524 = vpack.c.b16 %v1868, %v1860
    %v2525 = vpack.c.b16 %v1869, %v1861
    %v2526 = vpack.c.b16 %v1870, %v1862
    %v2527 = vpack.c.b16 %v1871, %v1863
    %v2528 = vpack.c.b16 %v1872, %v1864
    %v2529 = vpack.c.b16 %v1873, %v1865
    %v2530 = vpack.c.b16 %v1874, %v1866
    %v2531 = vpack.c.b16 %v1883, %v1875
    %v2532 = vpack.c.b16 %v1884, %v1876
    %v2533 = vpack.c.b16 %v1885, %v1877
    %v2534 = vpack.c.b16 %v1886, %v1878
    %v2535 = vpack.c.b16 %v1887, %v1879
    %v2536 = vpack.c.b16 %v1888, %v1880
    %v2537 = vpack.c.b16 %v1889, %v1881
    %v2538 = vpack.c.b16 %v1890, %v1882
    %v2539 = vpack.c.b16 %v1899, %v1891
    %v2540 = vpack.c.b16 %v1900, %v1892
    %v2541 = vpack.c.b16 %v1901, %v1893
    %v2542 = vpack.c.b16 %v1902, %v1894
    %v2543 = vpack.c.b16 %v1903, %v1895
    %v2544 = vpack.c.b16 %v1904, %v1896
    %v2545 = vpack.c.b16 %v1905, %v1897
    %v2546 = vpack.c.b16 %v1906, %v1898
    %v2547 = vpack.c.b16 %v1915, %v1907
    %v2548 = vpack.c.b16 %v1916, %v1908
    %v2549 = vpack.c.b16 %v1917, %v1909
    %v2550 = vpack.c.b16 %v1918, %v1910
    %v2551 = vpack.c.b16 %v1919, %v1911
    %v2552 = vpack.c.b16 %v1920, %v1912
    %v2553 = vpack.c.b16 %v1921, %v1913
    %v2554 = vpack.c.b16 %v1922, %v1914
    %v2555 = vpack.c.b16 %v1931, %v1923
    %v2556 = vpack.c.b16 %v1932, %v1924
    %v2557 = vpack.c.b16 %v1933, %v1925
    %v2558 = vpack.c.b16 %v1934, %v1926
    %v2559 = vpack.c.b16 %v1935, %v1927
    %v2560 = vpack.c.b16 %v1936, %v1928
    %v2561 = vpack.c.b16 %v1937, %v1929
    %v2562 = vpack.c.b16 %v1938, %v1930
    %v2563 = vpack.c.b16 %v1947, %v1939
    %v2564 = vpack.c.b16 %v1948, %v1940
    %v2565 = vpack.c.b16 %v1949, %v1941
    %v2566 = vpack.c.b16 %v1950, %v1942
    %v2567 = vpack.c.b16 %v1951, %v1943
    %v2568 = vpack.c.b16 %v1952, %v1944
    %v2569 = vpack.c.b16 %v1953, %v1945
    %v2570 = vpack.c.b16 %v1954, %v1946
    %v2571 = vpack.c.b16 %v1963, %v1955
    %v2572 = vpack.c.b16 %v1964, %v1956
    %v2573 = vpack.c.b16 %v1965, %v1957
    %v2574 = vpack.c.b16 %v1966, %v1958
    %v2575 = vpack.c.b16 %v1967, %v1959
    %v2576 = vpack.c.b16 %v1968, %v1960
    %v2577 = vpack.c.b16 %v1969, %v1961
    %v2578 = vpack.c.b16 %v1970, %v1962
    %v2579 = vpack.c.b16 %v1979, %v1971
    %v2580 = vpack.c.b16 %v1980, %v1972
    %v2581 = vpack.c.b16 %v1981, %v1973
    %v2582 = vpack.c.b16 %v1982, %v1974
    %v2583 = vpack.c.b16 %v1983, %v1975
    %v2584 = vpack.c.b16 %v1984, %v1976
    %v2585 = vpack.c.b16 %v1985, %v1977
    %v2586 = vpack.c.b16 %v1986, %v1978
    %v2587 = vpack.c.b16 %v1995, %v1987
    %v2588 = vpack.c.b16 %v1996, %v1988
    %v2589 = vpack.c.b16 %v1997, %v1989
    %v2590 = vpack.c.b16 %v1998, %v1990
    %v2591 = vpack.c.b16 %v1999, %v1991
    %v2592 = vpack.c.b16 %v2000, %v1992
    %v2593 = vpack.c.b16 %v2001, %v1993
    %v2594 = vpack.c.b16 %v2002, %v1994
    %v2595 = vpack.c.b16 %v2011, %v2003
    %v2596 = vpack.c.b16 %v2012, %v2004
    %v2597 = vpack.c.b16 %v2013, %v2005
    %v2598 = vpack.c.b16 %v2014, %v2006
    %v2599 = vpack.c.b16 %v2015, %v2007
    %v2600 = vpack.c.b16 %v2016, %v2008
    %v2601 = vpack.c.b16 %v2017, %v2009
    %v2602 = vpack.c.b16 %v2018, %v2010
    %v2603 = vpack.c.b16 %v2027, %v2019
    %v2604 = vpack.c.b16 %v2028, %v2020
    %v2605 = vpack.c.b16 %v2029, %v2021
    %v2606 = vpack.c.b16 %v2030, %v2022
    %v2607 = vpack.c.b16 %v2031, %v2023
    %v2608 = vpack.c.b16 %v2032, %v2024
    %v2609 = vpack.c.b16 %v2033, %v2025
    %v2610 = vpack.c.b16 %v2034, %v2026
    %v2611 = vpack.c.b16 %v2043, %v2035
    %v2612 = vpack.c.b16 %v2044, %v2036
    %v2613 = vpack.c.b16 %v2045, %v2037
    %v2614 = vpack.c.b16 %v2046, %v2038
    %v2615 = vpack.c.b16 %v2047, %v2039
    %v2616 = vpack.c.b16 %v2048, %v2040
    %v2617 = vpack.c.b16 %v2049, %v2041
    %v2618 = vpack.c.b16 %v2050, %v2042
    %v2619 = vpack.c.b16 %v2059, %v2051
    %v2620 = vpack.c.b16 %v2060, %v2052
    %v2621 = vpack.c.b16 %v2061, %v2053
    %v2622 = vpack.c.b16 %v2062, %v2054
    %v2623 = vpack.c.b16 %v2063, %v2055
    %v2624 = vpack.c.b16 %v2064, %v2056
    %v2625 = vpack.c.b16 %v2065, %v2057
    %v2626 = vpack.c.b16 %v2066, %v2058
    %v2627 = vpack.c.b16 %v2075, %v2067
    %v2628 = vpack.c.b16 %v2076, %v2068
    %v2629 = vpack.c.b16 %v2077, %v2069
    %v2630 = vpack.c.b16 %v2078, %v2070
    %v2631 = vpack.c.b16 %v2079, %v2071
    %v2632 = vpack.c.b16 %v2080, %v2072
    %v2633 = vpack.c.b16 %v2081, %v2073
    %v2634 = vpack.c.b16 %v2082, %v2074
    %v2635 = vpack.c.b16 %v2091, %v2083
    %v2636 = vpack.c.b16 %v2092, %v2084
    %v2637 = vpack.c.b16 %v2093, %v2085
    %v2638 = vpack.c.b16 %v2094, %v2086
    %v2639 = vpack.c.b16 %v2095, %v2087
    %v2640 = vpack.c.b16 %v2096, %v2088
    %v2641 = vpack.c.b16 %v2097, %v2089
    %v2642 = vpack.c.b16 %v2098, %v2090
    %v2643 = vpack.c.b16 %v2107, %v2099
    %v2644 = vpack.c.b16 %v2108, %v2100
    %v2645 = vpack.c.b16 %v2109, %v2101
    %v2646 = vpack.c.b16 %v2110, %v2102
    %v2647 = vpack.c.b16 %v2111, %v2103
    %v2648 = vpack.c.b16 %v2112, %v2104
    %v2649 = vpack.c.b16 %v2113, %v2105
    %v2650 = vpack.c.b16 %v2114, %v2106
    %v2651 = vpack.c.b16 %v2123, %v2115
    %v2652 = vpack.c.b16 %v2124, %v2116
    %v2653 = vpack.c.b16 %v2125, %v2117
    %v2654 = vpack.c.b16 %v2126, %v2118
    %v2655 = vpack.c.b16 %v2127, %v2119
    %v2656 = vpack.c.b16 %v2128, %v2120
    %v2657 = vpack.c.b16 %v2129, %v2121
    %v2658 = vpack.c.b16 %v2130, %v2122
    %v2659 = vpack.c.b16 %v2139, %v2131
    %v2660 = vpack.c.b16 %v2140, %v2132
    %v2661 = vpack.c.b16 %v2141, %v2133
    %v2662 = vpack.c.b16 %v2142, %v2134
    %v2663 = vpack.c.b16 %v2143, %v2135
    %v2664 = vpack.c.b16 %v2144, %v2136
    %v2665 = vpack.c.b16 %v2145, %v2137
    %v2666 = vpack.c.b16 %v2146, %v2138
    %v2667 = vpack.c.b16 %v2155, %v2147
    %v2668 = vpack.c.b16 %v2156, %v2148
    %v2669 = vpack.c.b16 %v2157, %v2149
    %v2670 = vpack.c.b16 %v2158, %v2150
    %v2671 = vpack.c.b16 %v2159, %v2151
    %v2672 = vpack.c.b16 %v2160, %v2152
    %v2673 = vpack.c.b16 %v2161, %v2153
    %v2674 = vpack.c.b16 %v2162, %v2154
    %3187 = vmatpush.bf16.msra.mxu0 %v2219
    %3188 = vmatpush.bf16.msra.mxu0 %v2211
    %3189 = vmatpush.bf16.msra.mxu0 %v2203
    %3190 = vmatpush.bf16.msra.mxu0 %v2195
    %3191 = vmatpush.bf16.msra.mxu0 %v2187
    %3192 = vmatpush.bf16.msra.mxu0 %v2179
    %3193 = vmatpush.bf16.msra.mxu0 %v2171
    %3194 = vmatpush.bf16.msra.mxu0 %v2163
    %3195 = vmatmul.bf16.gmra.mxu0 %v107
    %v3196 = vpop.f32.mrf.mxu0
    %v3197 = vadd.f32 %v65, %v3196
    %v3198 = vpop.f32.mrf.mxu0
    %3199 = vdwg.mxu0
    %3200 = vmatpush.bf16.msra.mxu0 %v2283
    %3201 = vmatpush.bf16.msra.mxu0 %v2275
    %3202 = vmatpush.bf16.msra.mxu0 %v2267
    %3203 = vmatpush.bf16.msra.mxu0 %v2259
    %3204 = vmatpush.bf16.msra.mxu0 %v2251
    %3205 = vmatpush.bf16.msra.mxu0 %v2243
    %3206 = vmatpush.bf16.msra.mxu0 %v2235
    %3207 = vmatpush.bf16.msra.mxu0 %v2227
    %3208 = vmatmul.bf16.gmra.mxu0 %v108
    %v3209 = vpop.f32.mrf.mxu0
    %v3210 = vadd.f32 %v3197, %v3209
    %v3211 = vpop.f32.mrf.mxu0
    %3212 = vdwg.mxu0
    %3213 = vmatpush.bf16.msra.mxu0 %v2347
    %3214 = vmatpush.bf16.msra.mxu0 %v2339
    %3215 = vmatpush.bf16.msra.mxu0 %v2331
    %3216 = vmatpush.bf16.msra.mxu0 %v2323
    %3217 = vmatpush.bf16.msra.mxu0 %v2315
    %3218 = vmatpush.bf16.msra.mxu0 %v2307
    %3219 = vmatpush.bf16.msra.mxu0 %v2299
    %3220 = vmatpush.bf16.msra.mxu0 %v2291
    %3221 = vmatmul.bf16.gmra.mxu0 %v109
    %v3222 = vpop.f32.mrf.mxu0
    %v3223 = vadd.f32 %v3210, %v3222
    %v3224 = vpop.f32.mrf.mxu0
    %3225 = vdwg.mxu0
    %3226 = vmatpush.bf16.msra.mxu0 %v2411
    %3227 = vmatpush.bf16.msra.mxu0 %v2403
    %3228 = vmatpush.bf16.msra.mxu0 %v2395
    %3229 = vmatpush.bf16.msra.mxu0 %v2387
    %3230 = vmatpush.bf16.msra.mxu0 %v2379
    %3231 = vmatpush.bf16.msra.mxu0 %v2371
    %3232 = vmatpush.bf16.msra.mxu0 %v2363
    %3233 = vmatpush.bf16.msra.mxu0 %v2355
    %3234 = vmatmul.bf16.gmra.mxu0 %v110
    %v3235 = vpop.f32.mrf.mxu0
    %v3236 = vadd.f32 %v3223, %v3235
    %v3237 = vpop.f32.mrf.mxu0
    %3238 = vdwg.mxu0
    %3239 = vmatpush.bf16.msra.mxu0 %v2475
    %3240 = vmatpush.bf16.msra.mxu0 %v2467
    %3241 = vmatpush.bf16.msra.mxu0 %v2459
    %3242 = vmatpush.bf16.msra.mxu0 %v2451
    %3243 = vmatpush.bf16.msra.mxu0 %v2443
    %3244 = vmatpush.bf16.msra.mxu0 %v2435
    %3245 = vmatpush.bf16.msra.mxu0 %v2427
    %3246 = vmatpush.bf16.msra.mxu0 %v2419
    %3247 = vmatmul.bf16.gmra.mxu0 %v111
    %v3248 = vpop.f32.mrf.mxu0
    %v3249 = vadd.f32 %v3236, %v3248
    %v3250 = vpop.f32.mrf.mxu0
    %3251 = vdwg.mxu0
    %3252 = vmatpush.bf16.msra.mxu0 %v2539
    %3253 = vmatpush.bf16.msra.mxu0 %v2531
    %3254 = vmatpush.bf16.msra.mxu0 %v2523
    %3255 = vmatpush.bf16.msra.mxu0 %v2515
    %3256 = vmatpush.bf16.msra.mxu0 %v2507
    %3257 = vmatpush.bf16.msra.mxu0 %v2499
    %3258 = vmatpush.bf16.msra.mxu0 %v2491
    %3259 = vmatpush.bf16.msra.mxu0 %v2483
    %3260 = vmatmul.bf16.gmra.mxu0 %v112
    %v3261 = vpop.f32.mrf.mxu0
    %v3262 = vadd.f32 %v3249, %v3261
    %v3263 = vpop.f32.mrf.mxu0
    %3264 = vdwg.mxu0
    %3265 = vmatpush.bf16.msra.mxu0 %v2603
    %3266 = vmatpush.bf16.msra.mxu0 %v2595
    %3267 = vmatpush.bf16.msra.mxu0 %v2587
    %3268 = vmatpush.bf16.msra.mxu0 %v2579
    %3269 = vmatpush.bf16.msra.mxu0 %v2571
    %3270 = vmatpush.bf16.msra.mxu0 %v2563
    %3271 = vmatpush.bf16.msra.mxu0 %v2555
    %3272 = vmatpush.bf16.msra.mxu0 %v2547
    %3273 = vmatmul.bf16.gmra.mxu0 %v113
    %v3274 = vpop.f32.mrf.mxu0
    %v3275 = vadd.f32 %v3262, %v3274
    %v3276 = vpop.f32.mrf.mxu0
    %3277 = vdwg.mxu0
    %3278 = vmatpush.bf16.msra.mxu0 %v2667
    %3279 = vmatpush.bf16.msra.mxu0 %v2659
    %3280 = vmatpush.bf16.msra.mxu0 %v2651
    %3281 = vmatpush.bf16.msra.mxu0 %v2643
    %3282 = vmatpush.bf16.msra.mxu0 %v2635
    %3283 = vmatpush.bf16.msra.mxu0 %v2627
    %3284 = vmatpush.bf16.msra.mxu0 %v2619
    %3285 = vmatpush.bf16.msra.mxu0 %v2611
    %3286 = vmatmul.bf16.gmra.mxu0 %v114
    %v3287 = vpop.f32.mrf.mxu0
    %v3288 = vadd.f32 %v3275, %v3287
    %v3289 = vpop.f32.mrf.mxu0
    %3290 = vdwg.mxu0
    %3291 = vmatpush.bf16.msra.mxu0 %v2220
    %3292 = vmatpush.bf16.msra.mxu0 %v2212
    %3293 = vmatpush.bf16.msra.mxu0 %v2204
    %3294 = vmatpush.bf16.msra.mxu0 %v2196
    %3295 = vmatpush.bf16.msra.mxu0 %v2188
    %3296 = vmatpush.bf16.msra.mxu0 %v2180
    %3297 = vmatpush.bf16.msra.mxu0 %v2172
    %3298 = vmatpush.bf16.msra.mxu0 %v2164
    %3299 = vmatmul.bf16.gmra.mxu0 %v107
    %v3300 = vpop.f32.mrf.mxu0
    %v3301 = vadd.f32 %v66, %v3300
    %v3302 = vpop.f32.mrf.mxu0
    %3303 = vdwg.mxu0
    %3304 = vmatpush.bf16.msra.mxu0 %v2284
    %3305 = vmatpush.bf16.msra.mxu0 %v2276
    %3306 = vmatpush.bf16.msra.mxu0 %v2268
    %3307 = vmatpush.bf16.msra.mxu0 %v2260
    %3308 = vmatpush.bf16.msra.mxu0 %v2252
    %3309 = vmatpush.bf16.msra.mxu0 %v2244
    %3310 = vmatpush.bf16.msra.mxu0 %v2236
    %3311 = vmatpush.bf16.msra.mxu0 %v2228
    %3312 = vmatmul.bf16.gmra.mxu0 %v108
    %v3313 = vpop.f32.mrf.mxu0
    %v3314 = vadd.f32 %v3301, %v3313
    %v3315 = vpop.f32.mrf.mxu0
    %3316 = vdwg.mxu0
    %3317 = vmatpush.bf16.msra.mxu0 %v2348
    %3318 = vmatpush.bf16.msra.mxu0 %v2340
    %3319 = vmatpush.bf16.msra.mxu0 %v2332
    %3320 = vmatpush.bf16.msra.mxu0 %v2324
    %3321 = vmatpush.bf16.msra.mxu0 %v2316
    %3322 = vmatpush.bf16.msra.mxu0 %v2308
    %3323 = vmatpush.bf16.msra.mxu0 %v2300
    %3324 = vmatpush.bf16.msra.mxu0 %v2292
    %3325 = vmatmul.bf16.gmra.mxu0 %v109
    %v3326 = vpop.f32.mrf.mxu0
    %v3327 = vadd.f32 %v3314, %v3326
    %v3328 = vpop.f32.mrf.mxu0
    %3329 = vdwg.mxu0
    %3330 = vmatpush.bf16.msra.mxu0 %v2412
    %3331 = vmatpush.bf16.msra.mxu0 %v2404
    %3332 = vmatpush.bf16.msra.mxu0 %v2396
    %3333 = vmatpush.bf16.msra.mxu0 %v2388
    %3334 = vmatpush.bf16.msra.mxu0 %v2380
    %3335 = vmatpush.bf16.msra.mxu0 %v2372
    %3336 = vmatpush.bf16.msra.mxu0 %v2364
    %3337 = vmatpush.bf16.msra.mxu0 %v2356
    %3338 = vmatmul.bf16.gmra.mxu0 %v110
    %v3339 = vpop.f32.mrf.mxu0
    %v3340 = vadd.f32 %v3327, %v3339
    %v3341 = vpop.f32.mrf.mxu0
    %3342 = vdwg.mxu0
    %3343 = vmatpush.bf16.msra.mxu0 %v2476
    %3344 = vmatpush.bf16.msra.mxu0 %v2468
    %3345 = vmatpush.bf16.msra.mxu0 %v2460
    %3346 = vmatpush.bf16.msra.mxu0 %v2452
    %3347 = vmatpush.bf16.msra.mxu0 %v2444
    %3348 = vmatpush.bf16.msra.mxu0 %v2436
    %3349 = vmatpush.bf16.msra.mxu0 %v2428
    %3350 = vmatpush.bf16.msra.mxu0 %v2420
    %3351 = vmatmul.bf16.gmra.mxu0 %v111
    %v3352 = vpop.f32.mrf.mxu0
    %v3353 = vadd.f32 %v3340, %v3352
    %v3354 = vpop.f32.mrf.mxu0
    %3355 = vdwg.mxu0
    %3356 = vmatpush.bf16.msra.mxu0 %v2540
    %3357 = vmatpush.bf16.msra.mxu0 %v2532
    %3358 = vmatpush.bf16.msra.mxu0 %v2524
    %3359 = vmatpush.bf16.msra.mxu0 %v2516
    %3360 = vmatpush.bf16.msra.mxu0 %v2508
    %3361 = vmatpush.bf16.msra.mxu0 %v2500
    %3362 = vmatpush.bf16.msra.mxu0 %v2492
    %3363 = vmatpush.bf16.msra.mxu0 %v2484
    %3364 = vmatmul.bf16.gmra.mxu0 %v112
    %v3365 = vpop.f32.mrf.mxu0
    %v3366 = vadd.f32 %v3353, %v3365
    %v3367 = vpop.f32.mrf.mxu0
    %3368 = vdwg.mxu0
    %3369 = vmatpush.bf16.msra.mxu0 %v2604
    %3370 = vmatpush.bf16.msra.mxu0 %v2596
    %3371 = vmatpush.bf16.msra.mxu0 %v2588
    %3372 = vmatpush.bf16.msra.mxu0 %v2580
    %3373 = vmatpush.bf16.msra.mxu0 %v2572
    %3374 = vmatpush.bf16.msra.mxu0 %v2564
    %3375 = vmatpush.bf16.msra.mxu0 %v2556
    %3376 = vmatpush.bf16.msra.mxu0 %v2548
    %3377 = vmatmul.bf16.gmra.mxu0 %v113
    %v3378 = vpop.f32.mrf.mxu0
    %v3379 = vadd.f32 %v3366, %v3378
    %v3380 = vpop.f32.mrf.mxu0
    %3381 = vdwg.mxu0
    %3382 = vmatpush.bf16.msra.mxu0 %v2668
    %3383 = vmatpush.bf16.msra.mxu0 %v2660
    %3384 = vmatpush.bf16.msra.mxu0 %v2652
    %3385 = vmatpush.bf16.msra.mxu0 %v2644
    %3386 = vmatpush.bf16.msra.mxu0 %v2636
    %3387 = vmatpush.bf16.msra.mxu0 %v2628
    %3388 = vmatpush.bf16.msra.mxu0 %v2620
    %3389 = vmatpush.bf16.msra.mxu0 %v2612
    %3390 = vmatmul.bf16.gmra.mxu0 %v114
    %v3391 = vpop.f32.mrf.mxu0
    %v3392 = vadd.f32 %v3379, %v3391
    %v3393 = vpop.f32.mrf.mxu0
    %3394 = vdwg.mxu0
    %3395 = vmatpush.bf16.msra.mxu0 %v2221
    %3396 = vmatpush.bf16.msra.mxu0 %v2213
    %3397 = vmatpush.bf16.msra.mxu0 %v2205
    %3398 = vmatpush.bf16.msra.mxu0 %v2197
    %3399 = vmatpush.bf16.msra.mxu0 %v2189
    %3400 = vmatpush.bf16.msra.mxu0 %v2181
    %3401 = vmatpush.bf16.msra.mxu0 %v2173
    %3402 = vmatpush.bf16.msra.mxu0 %v2165
    %3403 = vmatmul.bf16.gmra.mxu0 %v107
    %v3404 = vpop.f32.mrf.mxu0
    %v3405 = vadd.f32 %v67, %v3404
    %v3406 = vpop.f32.mrf.mxu0
    %3407 = vdwg.mxu0
    %3408 = vmatpush.bf16.msra.mxu0 %v2285
    %3409 = vmatpush.bf16.msra.mxu0 %v2277
    %3410 = vmatpush.bf16.msra.mxu0 %v2269
    %3411 = vmatpush.bf16.msra.mxu0 %v2261
    %3412 = vmatpush.bf16.msra.mxu0 %v2253
    %3413 = vmatpush.bf16.msra.mxu0 %v2245
    %3414 = vmatpush.bf16.msra.mxu0 %v2237
    %3415 = vmatpush.bf16.msra.mxu0 %v2229
    %3416 = vmatmul.bf16.gmra.mxu0 %v108
    %v3417 = vpop.f32.mrf.mxu0
    %v3418 = vadd.f32 %v3405, %v3417
    %v3419 = vpop.f32.mrf.mxu0
    %3420 = vdwg.mxu0
    %3421 = vmatpush.bf16.msra.mxu0 %v2349
    %3422 = vmatpush.bf16.msra.mxu0 %v2341
    %3423 = vmatpush.bf16.msra.mxu0 %v2333
    %3424 = vmatpush.bf16.msra.mxu0 %v2325
    %3425 = vmatpush.bf16.msra.mxu0 %v2317
    %3426 = vmatpush.bf16.msra.mxu0 %v2309
    %3427 = vmatpush.bf16.msra.mxu0 %v2301
    %3428 = vmatpush.bf16.msra.mxu0 %v2293
    %3429 = vmatmul.bf16.gmra.mxu0 %v109
    %v3430 = vpop.f32.mrf.mxu0
    %v3431 = vadd.f32 %v3418, %v3430
    %v3432 = vpop.f32.mrf.mxu0
    %3433 = vdwg.mxu0
    %3434 = vmatpush.bf16.msra.mxu0 %v2413
    %3435 = vmatpush.bf16.msra.mxu0 %v2405
    %3436 = vmatpush.bf16.msra.mxu0 %v2397
    %3437 = vmatpush.bf16.msra.mxu0 %v2389
    %3438 = vmatpush.bf16.msra.mxu0 %v2381
    %3439 = vmatpush.bf16.msra.mxu0 %v2373
    %3440 = vmatpush.bf16.msra.mxu0 %v2365
    %3441 = vmatpush.bf16.msra.mxu0 %v2357
    %3442 = vmatmul.bf16.gmra.mxu0 %v110
    %v3443 = vpop.f32.mrf.mxu0
    %v3444 = vadd.f32 %v3431, %v3443
    %v3445 = vpop.f32.mrf.mxu0
    %3446 = vdwg.mxu0
    %3447 = vmatpush.bf16.msra.mxu0 %v2477
    %3448 = vmatpush.bf16.msra.mxu0 %v2469
    %3449 = vmatpush.bf16.msra.mxu0 %v2461
    %3450 = vmatpush.bf16.msra.mxu0 %v2453
    %3451 = vmatpush.bf16.msra.mxu0 %v2445
    %3452 = vmatpush.bf16.msra.mxu0 %v2437
    %3453 = vmatpush.bf16.msra.mxu0 %v2429
    %3454 = vmatpush.bf16.msra.mxu0 %v2421
    %3455 = vmatmul.bf16.gmra.mxu0 %v111
    %v3456 = vpop.f32.mrf.mxu0
    %v3457 = vadd.f32 %v3444, %v3456
    %v3458 = vpop.f32.mrf.mxu0
    %3459 = vdwg.mxu0
    %3460 = vmatpush.bf16.msra.mxu0 %v2541
    %3461 = vmatpush.bf16.msra.mxu0 %v2533
    %3462 = vmatpush.bf16.msra.mxu0 %v2525
    %3463 = vmatpush.bf16.msra.mxu0 %v2517
    %3464 = vmatpush.bf16.msra.mxu0 %v2509
    %3465 = vmatpush.bf16.msra.mxu0 %v2501
    %3466 = vmatpush.bf16.msra.mxu0 %v2493
    %3467 = vmatpush.bf16.msra.mxu0 %v2485
    %3468 = vmatmul.bf16.gmra.mxu0 %v112
    %v3469 = vpop.f32.mrf.mxu0
    %v3470 = vadd.f32 %v3457, %v3469
    %v3471 = vpop.f32.mrf.mxu0
    %3472 = vdwg.mxu0
    %3473 = vmatpush.bf16.msra.mxu0 %v2605
    %3474 = vmatpush.bf16.msra.mxu0 %v2597
    %3475 = vmatpush.bf16.msra.mxu0 %v2589
    %3476 = vmatpush.bf16.msra.mxu0 %v2581
    %3477 = vmatpush.bf16.msra.mxu0 %v2573
    %3478 = vmatpush.bf16.msra.mxu0 %v2565
    %3479 = vmatpush.bf16.msra.mxu0 %v2557
    %3480 = vmatpush.bf16.msra.mxu0 %v2549
    %3481 = vmatmul.bf16.gmra.mxu0 %v113
    %v3482 = vpop.f32.mrf.mxu0
    %v3483 = vadd.f32 %v3470, %v3482
    %v3484 = vpop.f32.mrf.mxu0
    %3485 = vdwg.mxu0
    %3486 = vmatpush.bf16.msra.mxu0 %v2669
    %3487 = vmatpush.bf16.msra.mxu0 %v2661
    %3488 = vmatpush.bf16.msra.mxu0 %v2653
    %3489 = vmatpush.bf16.msra.mxu0 %v2645
    %3490 = vmatpush.bf16.msra.mxu0 %v2637
    %3491 = vmatpush.bf16.msra.mxu0 %v2629
    %3492 = vmatpush.bf16.msra.mxu0 %v2621
    %3493 = vmatpush.bf16.msra.mxu0 %v2613
    %3494 = vmatmul.bf16.gmra.mxu0 %v114
    %v3495 = vpop.f32.mrf.mxu0
    %v3496 = vadd.f32 %v3483, %v3495
    %v3497 = vpop.f32.mrf.mxu0
    %3498 = vdwg.mxu0
    %3499 = vmatpush.bf16.msra.mxu0 %v2222
    %3500 = vmatpush.bf16.msra.mxu0 %v2214
    %3501 = vmatpush.bf16.msra.mxu0 %v2206
    %3502 = vmatpush.bf16.msra.mxu0 %v2198
    %3503 = vmatpush.bf16.msra.mxu0 %v2190
    %3504 = vmatpush.bf16.msra.mxu0 %v2182
    %3505 = vmatpush.bf16.msra.mxu0 %v2174
    %3506 = vmatpush.bf16.msra.mxu0 %v2166
    %3507 = vmatmul.bf16.gmra.mxu0 %v107
    %v3508 = vpop.f32.mrf.mxu0
    %v3509 = vadd.f32 %v68, %v3508
    %v3510 = vpop.f32.mrf.mxu0
    %3511 = vdwg.mxu0
    %3512 = vmatpush.bf16.msra.mxu0 %v2286
    %3513 = vmatpush.bf16.msra.mxu0 %v2278
    %3514 = vmatpush.bf16.msra.mxu0 %v2270
    %3515 = vmatpush.bf16.msra.mxu0 %v2262
    %3516 = vmatpush.bf16.msra.mxu0 %v2254
    %3517 = vmatpush.bf16.msra.mxu0 %v2246
    %3518 = vmatpush.bf16.msra.mxu0 %v2238
    %3519 = vmatpush.bf16.msra.mxu0 %v2230
    %3520 = vmatmul.bf16.gmra.mxu0 %v108
    %v3521 = vpop.f32.mrf.mxu0
    %v3522 = vadd.f32 %v3509, %v3521
    %v3523 = vpop.f32.mrf.mxu0
    %3524 = vdwg.mxu0
    %3525 = vmatpush.bf16.msra.mxu0 %v2350
    %3526 = vmatpush.bf16.msra.mxu0 %v2342
    %3527 = vmatpush.bf16.msra.mxu0 %v2334
    %3528 = vmatpush.bf16.msra.mxu0 %v2326
    %3529 = vmatpush.bf16.msra.mxu0 %v2318
    %3530 = vmatpush.bf16.msra.mxu0 %v2310
    %3531 = vmatpush.bf16.msra.mxu0 %v2302
    %3532 = vmatpush.bf16.msra.mxu0 %v2294
    %3533 = vmatmul.bf16.gmra.mxu0 %v109
    %v3534 = vpop.f32.mrf.mxu0
    %v3535 = vadd.f32 %v3522, %v3534
    %v3536 = vpop.f32.mrf.mxu0
    %3537 = vdwg.mxu0
    %3538 = vmatpush.bf16.msra.mxu0 %v2414
    %3539 = vmatpush.bf16.msra.mxu0 %v2406
    %3540 = vmatpush.bf16.msra.mxu0 %v2398
    %3541 = vmatpush.bf16.msra.mxu0 %v2390
    %3542 = vmatpush.bf16.msra.mxu0 %v2382
    %3543 = vmatpush.bf16.msra.mxu0 %v2374
    %3544 = vmatpush.bf16.msra.mxu0 %v2366
    %3545 = vmatpush.bf16.msra.mxu0 %v2358
    %3546 = vmatmul.bf16.gmra.mxu0 %v110
    %v3547 = vpop.f32.mrf.mxu0
    %v3548 = vadd.f32 %v3535, %v3547
    %v3549 = vpop.f32.mrf.mxu0
    %3550 = vdwg.mxu0
    %3551 = vmatpush.bf16.msra.mxu0 %v2478
    %3552 = vmatpush.bf16.msra.mxu0 %v2470
    %3553 = vmatpush.bf16.msra.mxu0 %v2462
    %3554 = vmatpush.bf16.msra.mxu0 %v2454
    %3555 = vmatpush.bf16.msra.mxu0 %v2446
    %3556 = vmatpush.bf16.msra.mxu0 %v2438
    %3557 = vmatpush.bf16.msra.mxu0 %v2430
    %3558 = vmatpush.bf16.msra.mxu0 %v2422
    %3559 = vmatmul.bf16.gmra.mxu0 %v111
    %v3560 = vpop.f32.mrf.mxu0
    %v3561 = vadd.f32 %v3548, %v3560
    %v3562 = vpop.f32.mrf.mxu0
    %3563 = vdwg.mxu0
    %3564 = vmatpush.bf16.msra.mxu0 %v2542
    %3565 = vmatpush.bf16.msra.mxu0 %v2534
    %3566 = vmatpush.bf16.msra.mxu0 %v2526
    %3567 = vmatpush.bf16.msra.mxu0 %v2518
    %3568 = vmatpush.bf16.msra.mxu0 %v2510
    %3569 = vmatpush.bf16.msra.mxu0 %v2502
    %3570 = vmatpush.bf16.msra.mxu0 %v2494
    %3571 = vmatpush.bf16.msra.mxu0 %v2486
    %3572 = vmatmul.bf16.gmra.mxu0 %v112
    %v3573 = vpop.f32.mrf.mxu0
    %v3574 = vadd.f32 %v3561, %v3573
    %v3575 = vpop.f32.mrf.mxu0
    %3576 = vdwg.mxu0
    %3577 = vmatpush.bf16.msra.mxu0 %v2606
    %3578 = vmatpush.bf16.msra.mxu0 %v2598
    %3579 = vmatpush.bf16.msra.mxu0 %v2590
    %3580 = vmatpush.bf16.msra.mxu0 %v2582
    %3581 = vmatpush.bf16.msra.mxu0 %v2574
    %3582 = vmatpush.bf16.msra.mxu0 %v2566
    %3583 = vmatpush.bf16.msra.mxu0 %v2558
    %3584 = vmatpush.bf16.msra.mxu0 %v2550
    %3585 = vmatmul.bf16.gmra.mxu0 %v113
    %v3586 = vpop.f32.mrf.mxu0
    %v3587 = vadd.f32 %v3574, %v3586
    %v3588 = vpop.f32.mrf.mxu0
    %3589 = vdwg.mxu0
    %3590 = vmatpush.bf16.msra.mxu0 %v2670
    %3591 = vmatpush.bf16.msra.mxu0 %v2662
    %3592 = vmatpush.bf16.msra.mxu0 %v2654
    %3593 = vmatpush.bf16.msra.mxu0 %v2646
    %3594 = vmatpush.bf16.msra.mxu0 %v2638
    %3595 = vmatpush.bf16.msra.mxu0 %v2630
    %3596 = vmatpush.bf16.msra.mxu0 %v2622
    %3597 = vmatpush.bf16.msra.mxu0 %v2614
    %3598 = vmatmul.bf16.gmra.mxu0 %v114
    %v3599 = vpop.f32.mrf.mxu0
    %v3600 = vadd.f32 %v3587, %v3599
    %v3601 = vpop.f32.mrf.mxu0
    %3602 = vdwg.mxu0
    %3603 = vmatpush.bf16.msra.mxu0 %v2223
    %3604 = vmatpush.bf16.msra.mxu0 %v2215
    %3605 = vmatpush.bf16.msra.mxu0 %v2207
    %3606 = vmatpush.bf16.msra.mxu0 %v2199
    %3607 = vmatpush.bf16.msra.mxu0 %v2191
    %3608 = vmatpush.bf16.msra.mxu0 %v2183
    %3609 = vmatpush.bf16.msra.mxu0 %v2175
    %3610 = vmatpush.bf16.msra.mxu0 %v2167
    %3611 = vmatmul.bf16.gmra.mxu0 %v107
    %v3612 = vpop.f32.mrf.mxu0
    %v3613 = vadd.f32 %v69, %v3612
    %v3614 = vpop.f32.mrf.mxu0
    %3615 = vdwg.mxu0
    %3616 = vmatpush.bf16.msra.mxu0 %v2287
    %3617 = vmatpush.bf16.msra.mxu0 %v2279
    %3618 = vmatpush.bf16.msra.mxu0 %v2271
    %3619 = vmatpush.bf16.msra.mxu0 %v2263
    %3620 = vmatpush.bf16.msra.mxu0 %v2255
    %3621 = vmatpush.bf16.msra.mxu0 %v2247
    %3622 = vmatpush.bf16.msra.mxu0 %v2239
    %3623 = vmatpush.bf16.msra.mxu0 %v2231
    %3624 = vmatmul.bf16.gmra.mxu0 %v108
    %v3625 = vpop.f32.mrf.mxu0
    %v3626 = vadd.f32 %v3613, %v3625
    %v3627 = vpop.f32.mrf.mxu0
    %3628 = vdwg.mxu0
    %3629 = vmatpush.bf16.msra.mxu0 %v2351
    %3630 = vmatpush.bf16.msra.mxu0 %v2343
    %3631 = vmatpush.bf16.msra.mxu0 %v2335
    %3632 = vmatpush.bf16.msra.mxu0 %v2327
    %3633 = vmatpush.bf16.msra.mxu0 %v2319
    %3634 = vmatpush.bf16.msra.mxu0 %v2311
    %3635 = vmatpush.bf16.msra.mxu0 %v2303
    %3636 = vmatpush.bf16.msra.mxu0 %v2295
    %3637 = vmatmul.bf16.gmra.mxu0 %v109
    %v3638 = vpop.f32.mrf.mxu0
    %v3639 = vadd.f32 %v3626, %v3638
    %v3640 = vpop.f32.mrf.mxu0
    %3641 = vdwg.mxu0
    %3642 = vmatpush.bf16.msra.mxu0 %v2415
    %3643 = vmatpush.bf16.msra.mxu0 %v2407
    %3644 = vmatpush.bf16.msra.mxu0 %v2399
    %3645 = vmatpush.bf16.msra.mxu0 %v2391
    %3646 = vmatpush.bf16.msra.mxu0 %v2383
    %3647 = vmatpush.bf16.msra.mxu0 %v2375
    %3648 = vmatpush.bf16.msra.mxu0 %v2367
    %3649 = vmatpush.bf16.msra.mxu0 %v2359
    %3650 = vmatmul.bf16.gmra.mxu0 %v110
    %v3651 = vpop.f32.mrf.mxu0
    %v3652 = vadd.f32 %v3639, %v3651
    %v3653 = vpop.f32.mrf.mxu0
    %3654 = vdwg.mxu0
    %3655 = vmatpush.bf16.msra.mxu0 %v2479
    %3656 = vmatpush.bf16.msra.mxu0 %v2471
    %3657 = vmatpush.bf16.msra.mxu0 %v2463
    %3658 = vmatpush.bf16.msra.mxu0 %v2455
    %3659 = vmatpush.bf16.msra.mxu0 %v2447
    %3660 = vmatpush.bf16.msra.mxu0 %v2439
    %3661 = vmatpush.bf16.msra.mxu0 %v2431
    %3662 = vmatpush.bf16.msra.mxu0 %v2423
    %3663 = vmatmul.bf16.gmra.mxu0 %v111
    %v3664 = vpop.f32.mrf.mxu0
    %v3665 = vadd.f32 %v3652, %v3664
    %v3666 = vpop.f32.mrf.mxu0
    %3667 = vdwg.mxu0
    %3668 = vmatpush.bf16.msra.mxu0 %v2543
    %3669 = vmatpush.bf16.msra.mxu0 %v2535
    %3670 = vmatpush.bf16.msra.mxu0 %v2527
    %3671 = vmatpush.bf16.msra.mxu0 %v2519
    %3672 = vmatpush.bf16.msra.mxu0 %v2511
    %3673 = vmatpush.bf16.msra.mxu0 %v2503
    %3674 = vmatpush.bf16.msra.mxu0 %v2495
    %3675 = vmatpush.bf16.msra.mxu0 %v2487
    %3676 = vmatmul.bf16.gmra.mxu0 %v112
    %v3677 = vpop.f32.mrf.mxu0
    %v3678 = vadd.f32 %v3665, %v3677
    %v3679 = vpop.f32.mrf.mxu0
    %3680 = vdwg.mxu0
    %3681 = vmatpush.bf16.msra.mxu0 %v2607
    %3682 = vmatpush.bf16.msra.mxu0 %v2599
    %3683 = vmatpush.bf16.msra.mxu0 %v2591
    %3684 = vmatpush.bf16.msra.mxu0 %v2583
    %3685 = vmatpush.bf16.msra.mxu0 %v2575
    %3686 = vmatpush.bf16.msra.mxu0 %v2567
    %3687 = vmatpush.bf16.msra.mxu0 %v2559
    %3688 = vmatpush.bf16.msra.mxu0 %v2551
    %3689 = vmatmul.bf16.gmra.mxu0 %v113
    %v3690 = vpop.f32.mrf.mxu0
    %v3691 = vadd.f32 %v3678, %v3690
    %v3692 = vpop.f32.mrf.mxu0
    %3693 = vdwg.mxu0
    %3694 = vmatpush.bf16.msra.mxu0 %v2671
    %3695 = vmatpush.bf16.msra.mxu0 %v2663
    %3696 = vmatpush.bf16.msra.mxu0 %v2655
    %3697 = vmatpush.bf16.msra.mxu0 %v2647
    %3698 = vmatpush.bf16.msra.mxu0 %v2639
    %3699 = vmatpush.bf16.msra.mxu0 %v2631
    %3700 = vmatpush.bf16.msra.mxu0 %v2623
    %3701 = vmatpush.bf16.msra.mxu0 %v2615
    %3702 = vmatmul.bf16.gmra.mxu0 %v114
    %v3703 = vpop.f32.mrf.mxu0
    %v3704 = vadd.f32 %v3691, %v3703
    %v3705 = vpop.f32.mrf.mxu0
    %3706 = vdwg.mxu0
    %3707 = vmatpush.bf16.msra.mxu0 %v2224
    %3708 = vmatpush.bf16.msra.mxu0 %v2216
    %3709 = vmatpush.bf16.msra.mxu0 %v2208
    %3710 = vmatpush.bf16.msra.mxu0 %v2200
    %3711 = vmatpush.bf16.msra.mxu0 %v2192
    %3712 = vmatpush.bf16.msra.mxu0 %v2184
    %3713 = vmatpush.bf16.msra.mxu0 %v2176
    %3714 = vmatpush.bf16.msra.mxu0 %v2168
    %3715 = vmatmul.bf16.gmra.mxu0 %v107
    %v3716 = vpop.f32.mrf.mxu0
    %v3717 = vadd.f32 %v70, %v3716
    %v3718 = vpop.f32.mrf.mxu0
    %3719 = vdwg.mxu0
    %3720 = vmatpush.bf16.msra.mxu0 %v2288
    %3721 = vmatpush.bf16.msra.mxu0 %v2280
    %3722 = vmatpush.bf16.msra.mxu0 %v2272
    %3723 = vmatpush.bf16.msra.mxu0 %v2264
    %3724 = vmatpush.bf16.msra.mxu0 %v2256
    %3725 = vmatpush.bf16.msra.mxu0 %v2248
    %3726 = vmatpush.bf16.msra.mxu0 %v2240
    %3727 = vmatpush.bf16.msra.mxu0 %v2232
    %3728 = vmatmul.bf16.gmra.mxu0 %v108
    %v3729 = vpop.f32.mrf.mxu0
    %v3730 = vadd.f32 %v3717, %v3729
    %v3731 = vpop.f32.mrf.mxu0
    %3732 = vdwg.mxu0
    %3733 = vmatpush.bf16.msra.mxu0 %v2352
    %3734 = vmatpush.bf16.msra.mxu0 %v2344
    %3735 = vmatpush.bf16.msra.mxu0 %v2336
    %3736 = vmatpush.bf16.msra.mxu0 %v2328
    %3737 = vmatpush.bf16.msra.mxu0 %v2320
    %3738 = vmatpush.bf16.msra.mxu0 %v2312
    %3739 = vmatpush.bf16.msra.mxu0 %v2304
    %3740 = vmatpush.bf16.msra.mxu0 %v2296
    %3741 = vmatmul.bf16.gmra.mxu0 %v109
    %v3742 = vpop.f32.mrf.mxu0
    %v3743 = vadd.f32 %v3730, %v3742
    %v3744 = vpop.f32.mrf.mxu0
    %3745 = vdwg.mxu0
    %3746 = vmatpush.bf16.msra.mxu0 %v2416
    %3747 = vmatpush.bf16.msra.mxu0 %v2408
    %3748 = vmatpush.bf16.msra.mxu0 %v2400
    %3749 = vmatpush.bf16.msra.mxu0 %v2392
    %3750 = vmatpush.bf16.msra.mxu0 %v2384
    %3751 = vmatpush.bf16.msra.mxu0 %v2376
    %3752 = vmatpush.bf16.msra.mxu0 %v2368
    %3753 = vmatpush.bf16.msra.mxu0 %v2360
    %3754 = vmatmul.bf16.gmra.mxu0 %v110
    %v3755 = vpop.f32.mrf.mxu0
    %v3756 = vadd.f32 %v3743, %v3755
    %v3757 = vpop.f32.mrf.mxu0
    %3758 = vdwg.mxu0
    %3759 = vmatpush.bf16.msra.mxu0 %v2480
    %3760 = vmatpush.bf16.msra.mxu0 %v2472
    %3761 = vmatpush.bf16.msra.mxu0 %v2464
    %3762 = vmatpush.bf16.msra.mxu0 %v2456
    %3763 = vmatpush.bf16.msra.mxu0 %v2448
    %3764 = vmatpush.bf16.msra.mxu0 %v2440
    %3765 = vmatpush.bf16.msra.mxu0 %v2432
    %3766 = vmatpush.bf16.msra.mxu0 %v2424
    %3767 = vmatmul.bf16.gmra.mxu0 %v111
    %v3768 = vpop.f32.mrf.mxu0
    %v3769 = vadd.f32 %v3756, %v3768
    %v3770 = vpop.f32.mrf.mxu0
    %3771 = vdwg.mxu0
    %3772 = vmatpush.bf16.msra.mxu0 %v2544
    %3773 = vmatpush.bf16.msra.mxu0 %v2536
    %3774 = vmatpush.bf16.msra.mxu0 %v2528
    %3775 = vmatpush.bf16.msra.mxu0 %v2520
    %3776 = vmatpush.bf16.msra.mxu0 %v2512
    %3777 = vmatpush.bf16.msra.mxu0 %v2504
    %3778 = vmatpush.bf16.msra.mxu0 %v2496
    %3779 = vmatpush.bf16.msra.mxu0 %v2488
    %3780 = vmatmul.bf16.gmra.mxu0 %v112
    %v3781 = vpop.f32.mrf.mxu0
    %v3782 = vadd.f32 %v3769, %v3781
    %v3783 = vpop.f32.mrf.mxu0
    %3784 = vdwg.mxu0
    %3785 = vmatpush.bf16.msra.mxu0 %v2608
    %3786 = vmatpush.bf16.msra.mxu0 %v2600
    %3787 = vmatpush.bf16.msra.mxu0 %v2592
    %3788 = vmatpush.bf16.msra.mxu0 %v2584
    %3789 = vmatpush.bf16.msra.mxu0 %v2576
    %3790 = vmatpush.bf16.msra.mxu0 %v2568
    %3791 = vmatpush.bf16.msra.mxu0 %v2560
    %3792 = vmatpush.bf16.msra.mxu0 %v2552
    %3793 = vmatmul.bf16.gmra.mxu0 %v113
    %v3794 = vpop.f32.mrf.mxu0
    %v3795 = vadd.f32 %v3782, %v3794
    %v3796 = vpop.f32.mrf.mxu0
    %3797 = vdwg.mxu0
    %3798 = vmatpush.bf16.msra.mxu0 %v2672
    %3799 = vmatpush.bf16.msra.mxu0 %v2664
    %3800 = vmatpush.bf16.msra.mxu0 %v2656
    %3801 = vmatpush.bf16.msra.mxu0 %v2648
    %3802 = vmatpush.bf16.msra.mxu0 %v2640
    %3803 = vmatpush.bf16.msra.mxu0 %v2632
    %3804 = vmatpush.bf16.msra.mxu0 %v2624
    %3805 = vmatpush.bf16.msra.mxu0 %v2616
    %3806 = vmatmul.bf16.gmra.mxu0 %v114
    %v3807 = vpop.f32.mrf.mxu0
    %v3808 = vadd.f32 %v3795, %v3807
    %v3809 = vpop.f32.mrf.mxu0
    %3810 = vdwg.mxu0
    %3811 = vmatpush.bf16.msra.mxu0 %v2225
    %3812 = vmatpush.bf16.msra.mxu0 %v2217
    %3813 = vmatpush.bf16.msra.mxu0 %v2209
    %3814 = vmatpush.bf16.msra.mxu0 %v2201
    %3815 = vmatpush.bf16.msra.mxu0 %v2193
    %3816 = vmatpush.bf16.msra.mxu0 %v2185
    %3817 = vmatpush.bf16.msra.mxu0 %v2177
    %3818 = vmatpush.bf16.msra.mxu0 %v2169
    %3819 = vmatmul.bf16.gmra.mxu0 %v107
    %v3820 = vpop.f32.mrf.mxu0
    %v3821 = vadd.f32 %v71, %v3820
    %v3822 = vpop.f32.mrf.mxu0
    %3823 = vdwg.mxu0
    %3824 = vmatpush.bf16.msra.mxu0 %v2289
    %3825 = vmatpush.bf16.msra.mxu0 %v2281
    %3826 = vmatpush.bf16.msra.mxu0 %v2273
    %3827 = vmatpush.bf16.msra.mxu0 %v2265
    %3828 = vmatpush.bf16.msra.mxu0 %v2257
    %3829 = vmatpush.bf16.msra.mxu0 %v2249
    %3830 = vmatpush.bf16.msra.mxu0 %v2241
    %3831 = vmatpush.bf16.msra.mxu0 %v2233
    %3832 = vmatmul.bf16.gmra.mxu0 %v108
    %v3833 = vpop.f32.mrf.mxu0
    %v3834 = vadd.f32 %v3821, %v3833
    %v3835 = vpop.f32.mrf.mxu0
    %3836 = vdwg.mxu0
    %3837 = vmatpush.bf16.msra.mxu0 %v2353
    %3838 = vmatpush.bf16.msra.mxu0 %v2345
    %3839 = vmatpush.bf16.msra.mxu0 %v2337
    %3840 = vmatpush.bf16.msra.mxu0 %v2329
    %3841 = vmatpush.bf16.msra.mxu0 %v2321
    %3842 = vmatpush.bf16.msra.mxu0 %v2313
    %3843 = vmatpush.bf16.msra.mxu0 %v2305
    %3844 = vmatpush.bf16.msra.mxu0 %v2297
    %3845 = vmatmul.bf16.gmra.mxu0 %v109
    %v3846 = vpop.f32.mrf.mxu0
    %v3847 = vadd.f32 %v3834, %v3846
    %v3848 = vpop.f32.mrf.mxu0
    %3849 = vdwg.mxu0
    %3850 = vmatpush.bf16.msra.mxu0 %v2417
    %3851 = vmatpush.bf16.msra.mxu0 %v2409
    %3852 = vmatpush.bf16.msra.mxu0 %v2401
    %3853 = vmatpush.bf16.msra.mxu0 %v2393
    %3854 = vmatpush.bf16.msra.mxu0 %v2385
    %3855 = vmatpush.bf16.msra.mxu0 %v2377
    %3856 = vmatpush.bf16.msra.mxu0 %v2369
    %3857 = vmatpush.bf16.msra.mxu0 %v2361
    %3858 = vmatmul.bf16.gmra.mxu0 %v110
    %v3859 = vpop.f32.mrf.mxu0
    %v3860 = vadd.f32 %v3847, %v3859
    %v3861 = vpop.f32.mrf.mxu0
    %3862 = vdwg.mxu0
    %3863 = vmatpush.bf16.msra.mxu0 %v2481
    %3864 = vmatpush.bf16.msra.mxu0 %v2473
    %3865 = vmatpush.bf16.msra.mxu0 %v2465
    %3866 = vmatpush.bf16.msra.mxu0 %v2457
    %3867 = vmatpush.bf16.msra.mxu0 %v2449
    %3868 = vmatpush.bf16.msra.mxu0 %v2441
    %3869 = vmatpush.bf16.msra.mxu0 %v2433
    %3870 = vmatpush.bf16.msra.mxu0 %v2425
    %3871 = vmatmul.bf16.gmra.mxu0 %v111
    %v3872 = vpop.f32.mrf.mxu0
    %v3873 = vadd.f32 %v3860, %v3872
    %v3874 = vpop.f32.mrf.mxu0
    %3875 = vdwg.mxu0
    %3876 = vmatpush.bf16.msra.mxu0 %v2545
    %3877 = vmatpush.bf16.msra.mxu0 %v2537
    %3878 = vmatpush.bf16.msra.mxu0 %v2529
    %3879 = vmatpush.bf16.msra.mxu0 %v2521
    %3880 = vmatpush.bf16.msra.mxu0 %v2513
    %3881 = vmatpush.bf16.msra.mxu0 %v2505
    %3882 = vmatpush.bf16.msra.mxu0 %v2497
    %3883 = vmatpush.bf16.msra.mxu0 %v2489
    %3884 = vmatmul.bf16.gmra.mxu0 %v112
    %v3885 = vpop.f32.mrf.mxu0
    %v3886 = vadd.f32 %v3873, %v3885
    %v3887 = vpop.f32.mrf.mxu0
    %3888 = vdwg.mxu0
    %3889 = vmatpush.bf16.msra.mxu0 %v2609
    %3890 = vmatpush.bf16.msra.mxu0 %v2601
    %3891 = vmatpush.bf16.msra.mxu0 %v2593
    %3892 = vmatpush.bf16.msra.mxu0 %v2585
    %3893 = vmatpush.bf16.msra.mxu0 %v2577
    %3894 = vmatpush.bf16.msra.mxu0 %v2569
    %3895 = vmatpush.bf16.msra.mxu0 %v2561
    %3896 = vmatpush.bf16.msra.mxu0 %v2553
    %3897 = vmatmul.bf16.gmra.mxu0 %v113
    %v3898 = vpop.f32.mrf.mxu0
    %v3899 = vadd.f32 %v3886, %v3898
    %v3900 = vpop.f32.mrf.mxu0
    %3901 = vdwg.mxu0
    %3902 = vmatpush.bf16.msra.mxu0 %v2673
    %3903 = vmatpush.bf16.msra.mxu0 %v2665
    %3904 = vmatpush.bf16.msra.mxu0 %v2657
    %3905 = vmatpush.bf16.msra.mxu0 %v2649
    %3906 = vmatpush.bf16.msra.mxu0 %v2641
    %3907 = vmatpush.bf16.msra.mxu0 %v2633
    %3908 = vmatpush.bf16.msra.mxu0 %v2625
    %3909 = vmatpush.bf16.msra.mxu0 %v2617
    %3910 = vmatmul.bf16.gmra.mxu0 %v114
    %v3911 = vpop.f32.mrf.mxu0
    %v3912 = vadd.f32 %v3899, %v3911
    %v3913 = vpop.f32.mrf.mxu0
    %3914 = vdwg.mxu0
    %3915 = vmatpush.bf16.msra.mxu0 %v2226
    %3916 = vmatpush.bf16.msra.mxu0 %v2218
    %3917 = vmatpush.bf16.msra.mxu0 %v2210
    %3918 = vmatpush.bf16.msra.mxu0 %v2202
    %3919 = vmatpush.bf16.msra.mxu0 %v2194
    %3920 = vmatpush.bf16.msra.mxu0 %v2186
    %3921 = vmatpush.bf16.msra.mxu0 %v2178
    %3922 = vmatpush.bf16.msra.mxu0 %v2170
    %3923 = vmatmul.bf16.gmra.mxu0 %v107
    %v3924 = vpop.f32.mrf.mxu0
    %v3925 = vadd.f32 %v72, %v3924
    %v3926 = vpop.f32.mrf.mxu0
    %3927 = vdwg.mxu0
    %3928 = vmatpush.bf16.msra.mxu0 %v2290
    %3929 = vmatpush.bf16.msra.mxu0 %v2282
    %3930 = vmatpush.bf16.msra.mxu0 %v2274
    %3931 = vmatpush.bf16.msra.mxu0 %v2266
    %3932 = vmatpush.bf16.msra.mxu0 %v2258
    %3933 = vmatpush.bf16.msra.mxu0 %v2250
    %3934 = vmatpush.bf16.msra.mxu0 %v2242
    %3935 = vmatpush.bf16.msra.mxu0 %v2234
    %3936 = vmatmul.bf16.gmra.mxu0 %v108
    %v3937 = vpop.f32.mrf.mxu0
    %v3938 = vadd.f32 %v3925, %v3937
    %v3939 = vpop.f32.mrf.mxu0
    %3940 = vdwg.mxu0
    %3941 = vmatpush.bf16.msra.mxu0 %v2354
    %3942 = vmatpush.bf16.msra.mxu0 %v2346
    %3943 = vmatpush.bf16.msra.mxu0 %v2338
    %3944 = vmatpush.bf16.msra.mxu0 %v2330
    %3945 = vmatpush.bf16.msra.mxu0 %v2322
    %3946 = vmatpush.bf16.msra.mxu0 %v2314
    %3947 = vmatpush.bf16.msra.mxu0 %v2306
    %3948 = vmatpush.bf16.msra.mxu0 %v2298
    %3949 = vmatmul.bf16.gmra.mxu0 %v109
    %v3950 = vpop.f32.mrf.mxu0
    %v3951 = vadd.f32 %v3938, %v3950
    %v3952 = vpop.f32.mrf.mxu0
    %3953 = vdwg.mxu0
    %3954 = vmatpush.bf16.msra.mxu0 %v2418
    %3955 = vmatpush.bf16.msra.mxu0 %v2410
    %3956 = vmatpush.bf16.msra.mxu0 %v2402
    %3957 = vmatpush.bf16.msra.mxu0 %v2394
    %3958 = vmatpush.bf16.msra.mxu0 %v2386
    %3959 = vmatpush.bf16.msra.mxu0 %v2378
    %3960 = vmatpush.bf16.msra.mxu0 %v2370
    %3961 = vmatpush.bf16.msra.mxu0 %v2362
    %3962 = vmatmul.bf16.gmra.mxu0 %v110
    %v3963 = vpop.f32.mrf.mxu0
    %v3964 = vadd.f32 %v3951, %v3963
    %v3965 = vpop.f32.mrf.mxu0
    %3966 = vdwg.mxu0
    %3967 = vmatpush.bf16.msra.mxu0 %v2482
    %3968 = vmatpush.bf16.msra.mxu0 %v2474
    %3969 = vmatpush.bf16.msra.mxu0 %v2466
    %3970 = vmatpush.bf16.msra.mxu0 %v2458
    %3971 = vmatpush.bf16.msra.mxu0 %v2450
    %3972 = vmatpush.bf16.msra.mxu0 %v2442
    %3973 = vmatpush.bf16.msra.mxu0 %v2434
    %3974 = vmatpush.bf16.msra.mxu0 %v2426
    %3975 = vmatmul.bf16.gmra.mxu0 %v111
    %v3976 = vpop.f32.mrf.mxu0
    %v3977 = vadd.f32 %v3964, %v3976
    %v3978 = vpop.f32.mrf.mxu0
    %3979 = vdwg.mxu0
    %3980 = vmatpush.bf16.msra.mxu0 %v2546
    %3981 = vmatpush.bf16.msra.mxu0 %v2538
    %3982 = vmatpush.bf16.msra.mxu0 %v2530
    %3983 = vmatpush.bf16.msra.mxu0 %v2522
    %3984 = vmatpush.bf16.msra.mxu0 %v2514
    %3985 = vmatpush.bf16.msra.mxu0 %v2506
    %3986 = vmatpush.bf16.msra.mxu0 %v2498
    %3987 = vmatpush.bf16.msra.mxu0 %v2490
    %3988 = vmatmul.bf16.gmra.mxu0 %v112
    %v3989 = vpop.f32.mrf.mxu0
    %v3990 = vadd.f32 %v3977, %v3989
    %v3991 = vpop.f32.mrf.mxu0
    %3992 = vdwg.mxu0
    %3993 = vmatpush.bf16.msra.mxu0 %v2610
    %3994 = vmatpush.bf16.msra.mxu0 %v2602
    %3995 = vmatpush.bf16.msra.mxu0 %v2594
    %3996 = vmatpush.bf16.msra.mxu0 %v2586
    %3997 = vmatpush.bf16.msra.mxu0 %v2578
    %3998 = vmatpush.bf16.msra.mxu0 %v2570
    %3999 = vmatpush.bf16.msra.mxu0 %v2562
    %4000 = vmatpush.bf16.msra.mxu0 %v2554
    %4001 = vmatmul.bf16.gmra.mxu0 %v113
    %v4002 = vpop.f32.mrf.mxu0
    %v4003 = vadd.f32 %v3990, %v4002
    %v4004 = vpop.f32.mrf.mxu0
    %4005 = vdwg.mxu0
    %4006 = vmatpush.bf16.msra.mxu0 %v2674
    %4007 = vmatpush.bf16.msra.mxu0 %v2666
    %4008 = vmatpush.bf16.msra.mxu0 %v2658
    %4009 = vmatpush.bf16.msra.mxu0 %v2650
    %4010 = vmatpush.bf16.msra.mxu0 %v2642
    %4011 = vmatpush.bf16.msra.mxu0 %v2634
    %4012 = vmatpush.bf16.msra.mxu0 %v2626
    %4013 = vmatpush.bf16.msra.mxu0 %v2618
    %4014 = vmatmul.bf16.gmra.mxu0 %v114
    %v4015 = vpop.f32.mrf.mxu0
    %v4016 = vadd.f32 %v4003, %v4015
    %v4017 = vpop.f32.mrf.mxu0
    %4018 = vdwg.mxu0
    %v4019 = vsub.f32 %v3288, %v56
    %v4020 = vsub.f32 %v3392, %v57
    %v4021 = vsub.f32 %v3496, %v58
    %v4022 = vsub.f32 %v3600, %v59
    %v4023 = vsub.f32 %v3704, %v60
    %v4024 = vsub.f32 %v3808, %v61
    %v4025 = vsub.f32 %v3912, %v62
    %v4026 = vsub.f32 %v4016, %v63
    %v4027 = vmul.f32 %v4019, %v4019
    %v4028 = vmul.f32 %v4020, %v4020
    %v4029 = vmul.f32 %v4021, %v4021
    %v4030 = vmul.f32 %v4022, %v4022
    %v4031 = vmul.f32 %v4023, %v4023
    %v4032 = vmul.f32 %v4024, %v4024
    %v4033 = vmul.f32 %v4025, %v4025
    %v4034 = vmul.f32 %v4026, %v4026
    %v4035 = vadd.f32 %v4027, 0.0
    %v4036 = vadd.f32 %v4028, 0.0
    %v4037 = vadd.f32 %v4029, 0.0
    %v4038 = vadd.f32 %v4030, 0.0
    %v4039 = vadd.f32 %v4031, 0.0
    %v4040 = vadd.f32 %v4032, 0.0
    %v4041 = vadd.f32 %v4033, 0.0
    %v4042 = vadd.f32 %v4034, 0.0
    %4043 = vst [vmem:[#allocation7] sm:$0xff] %v4035
    %4044 = vst [vmem:[#allocation7 + $0x8] sm:$0xff] %v4036
    %4045 = vst [vmem:[#allocation7 + $0x10] sm:$0xff] %v4037
    %4046 = vst [vmem:[#allocation7 + $0x18] sm:$0xff] %v4038
    %4047 = vst [vmem:[#allocation7 + $0x20] sm:$0xff] %v4039
    %4048 = vst [vmem:[#allocation7 + $0x28] sm:$0xff] %v4040
    %4049 = vst [vmem:[#allocation7 + $0x30] sm:$0xff] %v4041
    %4050 = vst [vmem:[#allocation7 + $0x38] sm:$0xff] %v4042
    // Predicated region
    $region22: #{tpu_custom_call.1} parent=1 // pred_check
      _
    $region23: #{tpu_custom_call.1} parent=1 // pred_check_branch
      %4052 = sbr.rel (0) target = $region25
    $region24: #{tpu_custom_call.1} parent=1 // pred_region
      %4054 = vsyncadd [#allocation4], 0
      %s4056 = sshll.u32 [#allocation7], 4
      %s4057 = int_to_ptr.vmem [resolvable:$true] %s4056
      %s4058 = sshll.u32 %s3, 4
      %s4059 = int_to_ptr.hbm [resolvable:$true] %s4058
      %4061 = dma.vmem_to_hbm [thread:$0]  %s4057, 1024, %s4059, [#allocation4]
    $region25: #{tpu_custom_call.1} parent=1 // pred_fallthru
      _
    // Predicated region
    $region26: #{tpu_custom_call.1} parent=1 // pred_check
      _
    $region27: #{tpu_custom_call.1} parent=1 // pred_check_branch
      %4063 = sbr.rel (0) target = $region29
    $region28: #{tpu_custom_call.1} parent=1 // pred_region
      %4065 = dma.done [#allocation4], 1024
    $region29: #{tpu_custom_call.1} parent=1 // pred_fallthru
      _
    %4066 = vsyncpa [#allocation3], 1
    %4067 = vsyncpa [#allocation6], 1
    %4068 = vsyncpa [#allocation4], 1

</llo_original>
